<compile_context>
chip_gen: v6e
topology: v6e:2x2x1
jax: 0.10.0
libtpu: 0.0.40
codegen_flags: <defaults>
</compile_context>

<pallas_src>
import functools

import jax
import jax.numpy as jnp
from jax.experimental import pallas as pl
from jax.experimental.pallas import tpu as pltpu


def _layer_norm(v, g, b, eps=1e-5):
    mu = jnp.mean(v, axis=-1, keepdims=True)
    c = v - mu
    var = jnp.mean(c * c, axis=-1, keepdims=True)
    return c * jax.lax.rsqrt(var + eps) * g + b


# ----------------------------------------------------------------------------
# fused kernel: [GDT layer] x L  ->  classifier
# ----------------------------------------------------------------------------
def fused_gdt_kernel(*refs, proj_res_flags, num_heads, hop_num, alpha, slope):
    # refs = (x, bias, per-layer params..., w_cls_pad, b_cls_pad, out)
    x_ref, bias_ref = refs[0], refs[1]
    out_ref = refs[-1]
    b_cls_ref = refs[-2]
    w_cls_ref = refs[-3]
    params = refs[2:-3]

    bias = bias_ref[...]                      # (N_dst, N_src) additive mask, f32
    h = x_ref[...].astype(jnp.float32)        # (N, Din)

    i = 0
    for proj_res in proj_res_flags:           # static unroll over layers
        w_cat = params[i][...]; i += 1        # (Din, D + H [+ D])  bf16
        w_eh_t = params[i][...]; i += 1       # (H, Din)            bf16
        ln1_g = params[i][...]; i += 1
        ln1_b = params[i][...]; i += 1
        w_ff1 = params[i][...]; i += 1        # (D, 4D)             bf16
        b_ff1 = params[i][...]; i += 1
        w_ff2 = params[i][...]; i += 1        # (4D, D)             bf16
        b_ff2 = params[i][...]; i += 1
        ln2_g = params[i][...]; i += 1
        ln2_b = params[i][...]; i += 1

        out_dim = ln1_g.shape[-1]
        head_dim = out_dim // num_heads

        h_bf = h.astype(jnp.bfloat16)

        # Single fused projection matmul: [feat_ent | et | (res)] = h @ W_cat.
        proj = jnp.dot(h_bf, w_cat, preferred_element_type=jnp.float32)
        feat_ent = proj[:, :out_dim]                                    # (N, D)
        et_all = proj[:, out_dim:out_dim + num_heads]                   # (N, H)
        # Per-source scores laid out along the lane axis: (H, N_src).
        # One contracted matmul (MXU) instead of a (N,H)->(H,N) relayout.
        eh_rows = jax.lax.dot_general(
            w_eh_t, h_bf, (((1,), (1,)), ((), ())),
            preferred_element_type=jnp.float32)                         # (H, N)

        heads = []
        for hd in range(num_heads):            # static unroll over heads
            lo = hd * head_dim
            # e[dst, src] = et[dst] + eh[src]; LeakyReLU; masked softmax over src
            s = et_all[:, hd:hd + 1] + eh_rows[hd:hd + 1, :]   # (N_dst, N_src)
            s = jnp.maximum(s, slope * s)                      # LeakyReLU
            e = s + bias                                       # additive mask
            e_max = jnp.max(e, axis=-1, keepdims=True)
            # masked lanes underflow to exactly 0 after exp (self-loops guarantee
            # >= 1 unmasked in-edge per destination row).
            p = jnp.exp(e - e_max)
            denom = jnp.sum(p, axis=-1, keepdims=True)
            attn = p * pl.reciprocal(denom + 1e-16, approx=True)
            # fold (1 - alpha) into the attention matrix once
            attn_bf = ((1.0 - alpha) * attn).astype(jnp.bfloat16)

            # PPR-style diffusion: feat <- (1-alpha) A feat + alpha feat0
            feat0 = feat_ent[:, lo:lo + head_dim]              # (N, d)  f32
            afeat0 = alpha * feat0
            feat = feat0
            for _ in range(hop_num):
                feat = jnp.dot(attn_bf, feat.astype(jnp.bfloat16),
                               preferred_element_type=jnp.float32) + afeat0
            heads.append(feat)

        # assemble heads in registers (no VMEM scratch round-trip)
        rst = jnp.concatenate(heads, axis=-1) if num_heads > 1 else heads[0]

        # residual (+ projection only when in_dim != out_dim); res slice comes
        # from the same fused projection matmul.
        if proj_res:
            res = proj[:, out_dim + num_heads:out_dim + num_heads + out_dim]
        else:
            res = h
        x1 = _layer_norm(rst + res, ln1_g, ln1_b)

        # position-wise feed-forward + residual + LN
        y = jnp.dot(x1.astype(jnp.bfloat16), w_ff1,
                    preferred_element_type=jnp.float32) + b_ff1
        y = jnp.maximum(y, 0.0)
        y = jnp.dot(y.astype(jnp.bfloat16), w_ff2,
                    preferred_element_type=jnp.float32) + b_ff2
        h = _layer_norm(x1 + y, ln2_g, ln2_b)

    # classifier epilogue fused in; output is lane-dense (padded to 128 classes)
    logits = jnp.dot(h.astype(jnp.bfloat16), w_cls_ref[...],
                     preferred_element_type=jnp.float32) + b_cls_ref[...]
    out_ref[...] = logits.astype(out_ref.dtype)


# ----------------------------------------------------------------------------
# wrapper
# ----------------------------------------------------------------------------
def graph_node_classification(x, adj, layer_params, w_cls, b_cls, cfg):
    n = x.shape[0]
    hidden = cfg["hidden_dim"]
    num_classes = w_cls.shape[1]

    # additive softmax bias over incoming edges: bias[dst, src]
    bias = jnp.where(adj.T > 0.0, 0.0, -1e30).astype(jnp.float32)

    # pad classifier columns to a lane multiple so the final store is lane-dense
    cls_pad = max(128, -(-num_classes // 128) * 128)
    w_cls_pad = jnp.zeros((hidden, cls_pad), jnp.float32).at[:, :num_classes].set(w_cls)
    b_cls_pad = jnp.zeros((1, cls_pad), jnp.float32).at[:, :num_classes].set(b_cls)

    flat_params = []
    proj_res_flags = []
    for p in layer_params:
        proj = p["w_res"] is not None
        proj_res_flags.append(proj)
        pieces = [p["w_ent"], p["w_et"]]
        if proj:
            pieces.append(p["w_res"])
        w_cat = jnp.concatenate(pieces, axis=1).astype(jnp.bfloat16)
        flat_params.append(w_cat)
        flat_params.append(p["w_eh_t"].astype(jnp.bfloat16))
        flat_params += [p["ln1_g"], p["ln1_b"],
                        p["w_ff1"].astype(jnp.bfloat16), p["b_ff1"],
                        p["w_ff2"].astype(jnp.bfloat16), p["b_ff2"],
                        p["ln2_g"], p["ln2_b"]]

    args = (x, bias, *flat_params, w_cls_pad.astype(jnp.bfloat16), b_cls_pad)

    kernel = functools.partial(
        fused_gdt_kernel,
        proj_res_flags=tuple(proj_res_flags),
        num_heads=cfg["head_num"],
        hop_num=cfg["gnn_hop_num"],
        alpha=cfg["alpha"],
        slope=0.2)

    out = pl.pallas_call(
        kernel,
        out_shape=jax.ShapeDtypeStruct((n, cls_pad), jnp.float32),
        in_specs=[pl.BlockSpec(memory_space=pltpu.MemorySpace.VMEM)] * len(args),
        out_specs=pl.BlockSpec(memory_space=pltpu.MemorySpace.VMEM),
    )(*args)
    return out[:, :num_classes]


# ----------------------------------------------------------------------------
# deterministic parameter init (synthetic — no checkpoint loading)
# ----------------------------------------------------------------------------
def xavier(key, shape):
    fan_in, fan_out = shape
    limit = (6.0 / (fan_in + fan_out)) ** 0.5
    return jax.random.uniform(key, shape, jnp.float32, -limit, limit)


def init_gdt_layer_params(key, in_dim, out_dim, num_heads):
    ks = jax.random.split(key, 8)
    head_dim = out_dim // num_heads
    w_head = xavier(ks[0], (in_dim, out_dim))
    w_tail = xavier(ks[1], (in_dim, out_dim))
    attn_h = 0.1 * jax.random.normal(ks[3], (num_heads, head_dim), jnp.float32)
    attn_t = 0.1 * jax.random.normal(ks[4], (num_heads, head_dim), jnp.float32)
    # fold attention vectors into the projections (done once, outside the kernel):
    #   eh[i, h] = <(x_i W_head)[h*d:(h+1)*d], attn_h[h]>  ==  (x W_eh)[i, h]
    w_eh = jnp.einsum("dhk,hk->dh", w_head.reshape(in_dim, num_heads, head_dim), attn_h)
    w_et = jnp.einsum("dhk,hk->dh", w_tail.reshape(in_dim, num_heads, head_dim), attn_t)
    w_res = None if in_dim == out_dim else xavier(ks[5], (in_dim, out_dim))
    return {
        "w_ent": xavier(ks[2], (in_dim, out_dim)),
        "w_eh_t": w_eh.T,                       # (H, Din)
        "w_et": w_et,                           # (Din, H)
        "w_res": w_res,                         # None => identity residual
        "ln1_g": jnp.ones((1, out_dim), jnp.float32),
        "ln1_b": jnp.zeros((1, out_dim), jnp.float32),
        "w_ff1": xavier(ks[6], (out_dim, 4 * out_dim)),
        "b_ff1": jnp.zeros((1, 4 * out_dim), jnp.float32),
        "w_ff2": xavier(ks[7], (4 * out_dim, out_dim)),
        "b_ff2": jnp.zeros((1, out_dim), jnp.float32),
        "ln2_g": jnp.ones((1, out_dim), jnp.float32),
        "ln2_b": jnp.zeros((1, out_dim), jnp.float32),
    }


if __name__ == "__main__":
    cfg = dict(node_emb_dim=16, hidden_dim=32, head_num=4, gnn_hop_num=3,
               alpha=0.15, layers=2, num_classes=4)
    N = 16  # number of graph nodes

    key = jax.random.PRNGKey(0)
    k_x, k_adj, k_l1, k_l2, k_cls = jax.random.split(key, 5)

    # node features (N, node_emb_dim) and dense adjacency (src, dst) with self-loops
    x = jax.random.normal(k_x, (N, cfg["node_emb_dim"]), jnp.float32)
    adj = (jax.random.uniform(k_adj, (N, N)) < 0.25).astype(jnp.float32)
    adj = jnp.maximum(adj, jnp.eye(N, dtype=jnp.float32))

    layer_params = [
        init_gdt_layer_params(k_l1, cfg["node_emb_dim"], cfg["hidden_dim"],
                              cfg["head_num"]),
        init_gdt_layer_params(k_l2, cfg["hidden_dim"], cfg["hidden_dim"],
                              cfg["head_num"]),
    ]
    k_cw, _ = jax.random.split(k_cls)
    w_cls = xavier(k_cw, (cfg["hidden_dim"], cfg["num_classes"]))
    b_cls = jnp.zeros((1, cfg["num_classes"]), jnp.float32)

    logits = graph_node_classification(x, adj, layer_params, w_cls, b_cls, cfg)
    logits = jax.block_until_ready(logits)

    assert logits.shape == (N, cfg["num_classes"])
    assert bool(jnp.all(jnp.isfinite(logits)))
    print("KERNEL_OK")
</pallas_src>

<mosaic_0001>
module attributes {stable_mosaic.version = 11 : i64} {
  func.func @fused_gdt_kernel(%arg0: memref<16x16xf32, #tpu.memory_space<vmem>>, %arg1: memref<16x16xf32, #tpu.memory_space<vmem>>, %arg2: memref<16x68xbf16, #tpu.memory_space<vmem>>, %arg3: memref<4x16xbf16, #tpu.memory_space<vmem>>, %arg4: memref<1x32xf32, #tpu.memory_space<vmem>>, %arg5: memref<1x32xf32, #tpu.memory_space<vmem>>, %arg6: memref<32x128xbf16, #tpu.memory_space<vmem>>, %arg7: memref<1x128xf32, #tpu.memory_space<vmem>>, %arg8: memref<128x32xbf16, #tpu.memory_space<vmem>>, %arg9: memref<1x32xf32, #tpu.memory_space<vmem>>, %arg10: memref<1x32xf32, #tpu.memory_space<vmem>>, %arg11: memref<1x32xf32, #tpu.memory_space<vmem>>, %arg12: memref<32x36xbf16, #tpu.memory_space<vmem>>, %arg13: memref<4x32xbf16, #tpu.memory_space<vmem>>, %arg14: memref<1x32xf32, #tpu.memory_space<vmem>>, %arg15: memref<1x32xf32, #tpu.memory_space<vmem>>, %arg16: memref<32x128xbf16, #tpu.memory_space<vmem>>, %arg17: memref<1x128xf32, #tpu.memory_space<vmem>>, %arg18: memref<128x32xbf16, #tpu.memory_space<vmem>>, %arg19: memref<1x32xf32, #tpu.memory_space<vmem>>, %arg20: memref<1x32xf32, #tpu.memory_space<vmem>>, %arg21: memref<1x32xf32, #tpu.memory_space<vmem>>, %arg22: memref<32x128xbf16, #tpu.memory_space<vmem>>, %arg23: memref<1x128xf32, #tpu.memory_space<vmem>>, %arg24: memref<16x128xf32, #tpu.memory_space<vmem>>) attributes {dimension_semantics = [], scalar_prefetch = 0 : i64, scratch_operands = 0 : i64, tpu.core_type = #tpu.core_type<tc>} {
    %c0 = arith.constant 0 : index
    %c0_0 = arith.constant 0 : index
    %0 = vector.load %arg1[%c0, %c0_0] : memref<16x16xf32, #tpu.memory_space<vmem>>, vector<16x16xf32>
    %c0_1 = arith.constant 0 : index
    %c0_2 = arith.constant 0 : index
    %1 = vector.load %arg0[%c0_1, %c0_2] : memref<16x16xf32, #tpu.memory_space<vmem>>, vector<16x16xf32>
    %c0_3 = arith.constant 0 : index
    %c0_4 = arith.constant 0 : index
    %2 = vector.load %arg2[%c0_3, %c0_4] : memref<16x68xbf16, #tpu.memory_space<vmem>>, vector<16x68xbf16>
    %c0_5 = arith.constant 0 : index
    %c0_6 = arith.constant 0 : index
    %3 = vector.load %arg3[%c0_5, %c0_6] : memref<4x16xbf16, #tpu.memory_space<vmem>>, vector<4x16xbf16>
    %c0_7 = arith.constant 0 : index
    %c0_8 = arith.constant 0 : index
    %4 = vector.load %arg4[%c0_7, %c0_8] : memref<1x32xf32, #tpu.memory_space<vmem>>, vector<1x32xf32>
    %c0_9 = arith.constant 0 : index
    %c0_10 = arith.constant 0 : index
    %5 = vector.load %arg5[%c0_9, %c0_10] : memref<1x32xf32, #tpu.memory_space<vmem>>, vector<1x32xf32>
    %c0_11 = arith.constant 0 : index
    %c0_12 = arith.constant 0 : index
    %6 = vector.load %arg6[%c0_11, %c0_12] : memref<32x128xbf16, #tpu.memory_space<vmem>>, vector<32x128xbf16>
    %c0_13 = arith.constant 0 : index
    %c0_14 = arith.constant 0 : index
    %7 = vector.load %arg7[%c0_13, %c0_14] : memref<1x128xf32, #tpu.memory_space<vmem>>, vector<1x128xf32>
    %c0_15 = arith.constant 0 : index
    %c0_16 = arith.constant 0 : index
    %8 = vector.load %arg8[%c0_15, %c0_16] : memref<128x32xbf16, #tpu.memory_space<vmem>>, vector<128x32xbf16>
    %c0_17 = arith.constant 0 : index
    %c0_18 = arith.constant 0 : index
    %9 = vector.load %arg9[%c0_17, %c0_18] : memref<1x32xf32, #tpu.memory_space<vmem>>, vector<1x32xf32>
    %c0_19 = arith.constant 0 : index
    %c0_20 = arith.constant 0 : index
    %10 = vector.load %arg10[%c0_19, %c0_20] : memref<1x32xf32, #tpu.memory_space<vmem>>, vector<1x32xf32>
    %c0_21 = arith.constant 0 : index
    %c0_22 = arith.constant 0 : index
    %11 = vector.load %arg11[%c0_21, %c0_22] : memref<1x32xf32, #tpu.memory_space<vmem>>, vector<1x32xf32>
    %12 = arith.truncf %1 : vector<16x16xf32> to vector<16x16xbf16>
    %cst = arith.constant dense<0.000000e+00> : vector<16x68xf32>
    %13 = tpu.matmul %12, %2, %cst {dimension_numbers = #tpu.dot_dimension_numbers<[1], [0], [0], [1], [0, 0, 1, 1], [], []>} : vector<16x16xbf16>, vector<16x68xbf16>, vector<16x68xf32> -> vector<16x68xf32>
    %14 = vector.extract_strided_slice %13 {offsets = [0, 0], sizes = [16, 32], strides = [1, 1]} : vector<16x68xf32> to vector<16x32xf32>
    %15 = vector.extract_strided_slice %13 {offsets = [0, 32], sizes = [16, 4], strides = [1, 1]} : vector<16x68xf32> to vector<16x4xf32>
    %cst_23 = arith.constant dense<0.000000e+00> : vector<4x16xf32>
    %16 = tpu.matmul %3, %12, %cst_23 {dimension_numbers = #tpu.dot_dimension_numbers<[1], [1], [0], [0], [0, 0, 1, 0], [], []>} : vector<4x16xbf16>, vector<16x16xbf16>, vector<4x16xf32> -> vector<4x16xf32>
    %17 = vector.extract_strided_slice %15 {offsets = [0, 0], sizes = [16, 1], strides = [1, 1]} : vector<16x4xf32> to vector<16x1xf32>
    %18 = vector.extract_strided_slice %16 {offsets = [0, 0], sizes = [1, 16], strides = [1, 1]} : vector<4x16xf32> to vector<1x16xf32>
    %19 = vector.broadcast %17 : vector<16x1xf32> to vector<16x16xf32>
    %20 = vector.broadcast %18 : vector<1x16xf32> to vector<16x16xf32>
    %21 = arith.addf %19, %20 : vector<16x16xf32>
    %cst_24 = arith.constant 2.000000e-01 : f32
    %22 = vector.broadcast %cst_24 : f32 to vector<16x16xf32>
    %23 = arith.mulf %22, %21 : vector<16x16xf32>
    %24 = arith.maximumf %21, %23 : vector<16x16xf32>
    %25 = arith.addf %24, %0 : vector<16x16xf32>
    %cst_25 = arith.constant dense<0xFF800000> : vector<16xf32>
    %26 = vector.multi_reduction <maximumf>, %25, %cst_25 [1] : vector<16x16xf32> to vector<16xf32>
    %27 = vector.shape_cast %26 : vector<16xf32> to vector<16x1xf32>
    %28 = vector.broadcast %27 : vector<16x1xf32> to vector<16x16xf32>
    %29 = arith.subf %25, %28 : vector<16x16xf32>
    %30 = math.exp %29 : vector<16x16xf32>
    %cst_26 = arith.constant dense<0.000000e+00> : vector<16xf32>
    %31 = vector.multi_reduction <add>, %30, %cst_26 [1] : vector<16x16xf32> to vector<16xf32>
    %32 = vector.shape_cast %31 : vector<16xf32> to vector<16x1xf32>
    %cst_27 = arith.constant 1.000000e-16 : f32
    %33 = vector.broadcast %cst_27 : f32 to vector<16x1xf32>
    %34 = arith.addf %32, %33 : vector<16x1xf32>
    %35 = tpu.reciprocal %34 {approx = true} : vector<16x1xf32> -> vector<16x1xf32>
    %36 = vector.broadcast %35 : vector<16x1xf32> to vector<16x16xf32>
    %37 = arith.mulf %30, %36 : vector<16x16xf32>
    %cst_28 = arith.constant 8.500000e-01 : f32
    %38 = vector.broadcast %cst_28 : f32 to vector<16x16xf32>
    %39 = arith.mulf %38, %37 : vector<16x16xf32>
    %40 = arith.truncf %39 : vector<16x16xf32> to vector<16x16xbf16>
    %41 = vector.extract_strided_slice %14 {offsets = [0, 0], sizes = [16, 8], strides = [1, 1]} : vector<16x32xf32> to vector<16x8xf32>
    %cst_29 = arith.constant 1.500000e-01 : f32
    %42 = vector.broadcast %cst_29 : f32 to vector<16x8xf32>
    %43 = arith.mulf %42, %41 : vector<16x8xf32>
    %44 = arith.truncf %41 : vector<16x8xf32> to vector<16x8xbf16>
    %cst_30 = arith.constant dense<0.000000e+00> : vector<16x8xf32>
    %45 = tpu.matmul %40, %44, %cst_30 {dimension_numbers = #tpu.dot_dimension_numbers<[1], [0], [0], [1], [0, 0, 1, 1], [], []>} : vector<16x16xbf16>, vector<16x8xbf16>, vector<16x8xf32> -> vector<16x8xf32>
    %46 = arith.addf %45, %43 : vector<16x8xf32>
    %47 = arith.truncf %46 : vector<16x8xf32> to vector<16x8xbf16>
    %cst_31 = arith.constant dense<0.000000e+00> : vector<16x8xf32>
    %48 = tpu.matmul %40, %47, %cst_31 {dimension_numbers = #tpu.dot_dimension_numbers<[1], [0], [0], [1], [0, 0, 1, 1], [], []>} : vector<16x16xbf16>, vector<16x8xbf16>, vector<16x8xf32> -> vector<16x8xf32>
    %49 = arith.addf %48, %43 : vector<16x8xf32>
    %50 = arith.truncf %49 : vector<16x8xf32> to vector<16x8xbf16>
    %cst_32 = arith.constant dense<0.000000e+00> : vector<16x8xf32>
    %51 = tpu.matmul %40, %50, %cst_32 {dimension_numbers = #tpu.dot_dimension_numbers<[1], [0], [0], [1], [0, 0, 1, 1], [], []>} : vector<16x16xbf16>, vector<16x8xbf16>, vector<16x8xf32> -> vector<16x8xf32>
    %52 = arith.addf %51, %43 : vector<16x8xf32>
    %53 = vector.extract_strided_slice %15 {offsets = [0, 1], sizes = [16, 1], strides = [1, 1]} : vector<16x4xf32> to vector<16x1xf32>
    %54 = vector.extract_strided_slice %16 {offsets = [1, 0], sizes = [1, 16], strides = [1, 1]} : vector<4x16xf32> to vector<1x16xf32>
    %55 = vector.broadcast %53 : vector<16x1xf32> to vector<16x16xf32>
    %56 = vector.broadcast %54 : vector<1x16xf32> to vector<16x16xf32>
    %57 = arith.addf %55, %56 : vector<16x16xf32>
    %cst_33 = arith.constant 2.000000e-01 : f32
    %58 = vector.broadcast %cst_33 : f32 to vector<16x16xf32>
    %59 = arith.mulf %58, %57 : vector<16x16xf32>
    %60 = arith.maximumf %57, %59 : vector<16x16xf32>
    %61 = arith.addf %60, %0 : vector<16x16xf32>
    %cst_34 = arith.constant dense<0xFF800000> : vector<16xf32>
    %62 = vector.multi_reduction <maximumf>, %61, %cst_34 [1] : vector<16x16xf32> to vector<16xf32>
    %63 = vector.shape_cast %62 : vector<16xf32> to vector<16x1xf32>
    %64 = vector.broadcast %63 : vector<16x1xf32> to vector<16x16xf32>
    %65 = arith.subf %61, %64 : vector<16x16xf32>
    %66 = math.exp %65 : vector<16x16xf32>
    %cst_35 = arith.constant dense<0.000000e+00> : vector<16xf32>
    %67 = vector.multi_reduction <add>, %66, %cst_35 [1] : vector<16x16xf32> to vector<16xf32>
    %68 = vector.shape_cast %67 : vector<16xf32> to vector<16x1xf32>
    %cst_36 = arith.constant 1.000000e-16 : f32
    %69 = vector.broadcast %cst_36 : f32 to vector<16x1xf32>
    %70 = arith.addf %68, %69 : vector<16x1xf32>
    %71 = tpu.reciprocal %70 {approx = true} : vector<16x1xf32> -> vector<16x1xf32>
    %72 = vector.broadcast %71 : vector<16x1xf32> to vector<16x16xf32>
    %73 = arith.mulf %66, %72 : vector<16x16xf32>
    %cst_37 = arith.constant 8.500000e-01 : f32
    %74 = vector.broadcast %cst_37 : f32 to vector<16x16xf32>
    %75 = arith.mulf %74, %73 : vector<16x16xf32>
    %76 = arith.truncf %75 : vector<16x16xf32> to vector<16x16xbf16>
    %77 = vector.extract_strided_slice %14 {offsets = [0, 8], sizes = [16, 8], strides = [1, 1]} : vector<16x32xf32> to vector<16x8xf32>
    %cst_38 = arith.constant 1.500000e-01 : f32
    %78 = vector.broadcast %cst_38 : f32 to vector<16x8xf32>
    %79 = arith.mulf %78, %77 : vector<16x8xf32>
    %80 = arith.truncf %77 : vector<16x8xf32> to vector<16x8xbf16>
    %cst_39 = arith.constant dense<0.000000e+00> : vector<16x8xf32>
    %81 = tpu.matmul %76, %80, %cst_39 {dimension_numbers = #tpu.dot_dimension_numbers<[1], [0], [0], [1], [0, 0, 1, 1], [], []>} : vector<16x16xbf16>, vector<16x8xbf16>, vector<16x8xf32> -> vector<16x8xf32>
    %82 = arith.addf %81, %79 : vector<16x8xf32>
    %83 = arith.truncf %82 : vector<16x8xf32> to vector<16x8xbf16>
    %cst_40 = arith.constant dense<0.000000e+00> : vector<16x8xf32>
    %84 = tpu.matmul %76, %83, %cst_40 {dimension_numbers = #tpu.dot_dimension_numbers<[1], [0], [0], [1], [0, 0, 1, 1], [], []>} : vector<16x16xbf16>, vector<16x8xbf16>, vector<16x8xf32> -> vector<16x8xf32>
    %85 = arith.addf %84, %79 : vector<16x8xf32>
    %86 = arith.truncf %85 : vector<16x8xf32> to vector<16x8xbf16>
    %cst_41 = arith.constant dense<0.000000e+00> : vector<16x8xf32>
    %87 = tpu.matmul %76, %86, %cst_41 {dimension_numbers = #tpu.dot_dimension_numbers<[1], [0], [0], [1], [0, 0, 1, 1], [], []>} : vector<16x16xbf16>, vector<16x8xbf16>, vector<16x8xf32> -> vector<16x8xf32>
    %88 = arith.addf %87, %79 : vector<16x8xf32>
    %89 = vector.extract_strided_slice %15 {offsets = [0, 2], sizes = [16, 1], strides = [1, 1]} : vector<16x4xf32> to vector<16x1xf32>
    %90 = vector.extract_strided_slice %16 {offsets = [2, 0], sizes = [1, 16], strides = [1, 1]} : vector<4x16xf32> to vector<1x16xf32>
    %91 = vector.broadcast %89 : vector<16x1xf32> to vector<16x16xf32>
    %92 = vector.broadcast %90 : vector<1x16xf32> to vector<16x16xf32>
    %93 = arith.addf %91, %92 : vector<16x16xf32>
    %cst_42 = arith.constant 2.000000e-01 : f32
    %94 = vector.broadcast %cst_42 : f32 to vector<16x16xf32>
    %95 = arith.mulf %94, %93 : vector<16x16xf32>
    %96 = arith.maximumf %93, %95 : vector<16x16xf32>
    %97 = arith.addf %96, %0 : vector<16x16xf32>
    %cst_43 = arith.constant dense<0xFF800000> : vector<16xf32>
    %98 = vector.multi_reduction <maximumf>, %97, %cst_43 [1] : vector<16x16xf32> to vector<16xf32>
    %99 = vector.shape_cast %98 : vector<16xf32> to vector<16x1xf32>
    %100 = vector.broadcast %99 : vector<16x1xf32> to vector<16x16xf32>
    %101 = arith.subf %97, %100 : vector<16x16xf32>
    %102 = math.exp %101 : vector<16x16xf32>
    %cst_44 = arith.constant dense<0.000000e+00> : vector<16xf32>
    %103 = vector.multi_reduction <add>, %102, %cst_44 [1] : vector<16x16xf32> to vector<16xf32>
    %104 = vector.shape_cast %103 : vector<16xf32> to vector<16x1xf32>
    %cst_45 = arith.constant 1.000000e-16 : f32
    %105 = vector.broadcast %cst_45 : f32 to vector<16x1xf32>
    %106 = arith.addf %104, %105 : vector<16x1xf32>
    %107 = tpu.reciprocal %106 {approx = true} : vector<16x1xf32> -> vector<16x1xf32>
    %108 = vector.broadcast %107 : vector<16x1xf32> to vector<16x16xf32>
    %109 = arith.mulf %102, %108 : vector<16x16xf32>
    %cst_46 = arith.constant 8.500000e-01 : f32
    %110 = vector.broadcast %cst_46 : f32 to vector<16x16xf32>
    %111 = arith.mulf %110, %109 : vector<16x16xf32>
    %112 = arith.truncf %111 : vector<16x16xf32> to vector<16x16xbf16>
    %113 = vector.extract_strided_slice %14 {offsets = [0, 16], sizes = [16, 8], strides = [1, 1]} : vector<16x32xf32> to vector<16x8xf32>
    %cst_47 = arith.constant 1.500000e-01 : f32
    %114 = vector.broadcast %cst_47 : f32 to vector<16x8xf32>
    %115 = arith.mulf %114, %113 : vector<16x8xf32>
    %116 = arith.truncf %113 : vector<16x8xf32> to vector<16x8xbf16>
    %cst_48 = arith.constant dense<0.000000e+00> : vector<16x8xf32>
    %117 = tpu.matmul %112, %116, %cst_48 {dimension_numbers = #tpu.dot_dimension_numbers<[1], [0], [0], [1], [0, 0, 1, 1], [], []>} : vector<16x16xbf16>, vector<16x8xbf16>, vector<16x8xf32> -> vector<16x8xf32>
    %118 = arith.addf %117, %115 : vector<16x8xf32>
    %119 = arith.truncf %118 : vector<16x8xf32> to vector<16x8xbf16>
    %cst_49 = arith.constant dense<0.000000e+00> : vector<16x8xf32>
    %120 = tpu.matmul %112, %119, %cst_49 {dimension_numbers = #tpu.dot_dimension_numbers<[1], [0], [0], [1], [0, 0, 1, 1], [], []>} : vector<16x16xbf16>, vector<16x8xbf16>, vector<16x8xf32> -> vector<16x8xf32>
    %121 = arith.addf %120, %115 : vector<16x8xf32>
    %122 = arith.truncf %121 : vector<16x8xf32> to vector<16x8xbf16>
    %cst_50 = arith.constant dense<0.000000e+00> : vector<16x8xf32>
    %123 = tpu.matmul %112, %122, %cst_50 {dimension_numbers = #tpu.dot_dimension_numbers<[1], [0], [0], [1], [0, 0, 1, 1], [], []>} : vector<16x16xbf16>, vector<16x8xbf16>, vector<16x8xf32> -> vector<16x8xf32>
    %124 = arith.addf %123, %115 : vector<16x8xf32>
    %125 = vector.extract_strided_slice %15 {offsets = [0, 3], sizes = [16, 1], strides = [1, 1]} : vector<16x4xf32> to vector<16x1xf32>
    %126 = vector.extract_strided_slice %16 {offsets = [3, 0], sizes = [1, 16], strides = [1, 1]} : vector<4x16xf32> to vector<1x16xf32>
    %127 = vector.broadcast %125 : vector<16x1xf32> to vector<16x16xf32>
    %128 = vector.broadcast %126 : vector<1x16xf32> to vector<16x16xf32>
    %129 = arith.addf %127, %128 : vector<16x16xf32>
    %cst_51 = arith.constant 2.000000e-01 : f32
    %130 = vector.broadcast %cst_51 : f32 to vector<16x16xf32>
    %131 = arith.mulf %130, %129 : vector<16x16xf32>
    %132 = arith.maximumf %129, %131 : vector<16x16xf32>
    %133 = arith.addf %132, %0 : vector<16x16xf32>
    %cst_52 = arith.constant dense<0xFF800000> : vector<16xf32>
    %134 = vector.multi_reduction <maximumf>, %133, %cst_52 [1] : vector<16x16xf32> to vector<16xf32>
    %135 = vector.shape_cast %134 : vector<16xf32> to vector<16x1xf32>
    %136 = vector.broadcast %135 : vector<16x1xf32> to vector<16x16xf32>
    %137 = arith.subf %133, %136 : vector<16x16xf32>
    %138 = math.exp %137 : vector<16x16xf32>
    %cst_53 = arith.constant dense<0.000000e+00> : vector<16xf32>
    %139 = vector.multi_reduction <add>, %138, %cst_53 [1] : vector<16x16xf32> to vector<16xf32>
    %140 = vector.shape_cast %139 : vector<16xf32> to vector<16x1xf32>
    %cst_54 = arith.constant 1.000000e-16 : f32
    %141 = vector.broadcast %cst_54 : f32 to vector<16x1xf32>
    %142 = arith.addf %140, %141 : vector<16x1xf32>
    %143 = tpu.reciprocal %142 {approx = true} : vector<16x1xf32> -> vector<16x1xf32>
    %144 = vector.broadcast %143 : vector<16x1xf32> to vector<16x16xf32>
    %145 = arith.mulf %138, %144 : vector<16x16xf32>
    %cst_55 = arith.constant 8.500000e-01 : f32
    %146 = vector.broadcast %cst_55 : f32 to vector<16x16xf32>
    %147 = arith.mulf %146, %145 : vector<16x16xf32>
    %148 = arith.truncf %147 : vector<16x16xf32> to vector<16x16xbf16>
    %149 = vector.extract_strided_slice %14 {offsets = [0, 24], sizes = [16, 8], strides = [1, 1]} : vector<16x32xf32> to vector<16x8xf32>
    %cst_56 = arith.constant 1.500000e-01 : f32
    %150 = vector.broadcast %cst_56 : f32 to vector<16x8xf32>
    %151 = arith.mulf %150, %149 : vector<16x8xf32>
    %152 = arith.truncf %149 : vector<16x8xf32> to vector<16x8xbf16>
    %cst_57 = arith.constant dense<0.000000e+00> : vector<16x8xf32>
    %153 = tpu.matmul %148, %152, %cst_57 {dimension_numbers = #tpu.dot_dimension_numbers<[1], [0], [0], [1], [0, 0, 1, 1], [], []>} : vector<16x16xbf16>, vector<16x8xbf16>, vector<16x8xf32> -> vector<16x8xf32>
    %154 = arith.addf %153, %151 : vector<16x8xf32>
    %155 = arith.truncf %154 : vector<16x8xf32> to vector<16x8xbf16>
    %cst_58 = arith.constant dense<0.000000e+00> : vector<16x8xf32>
    %156 = tpu.matmul %148, %155, %cst_58 {dimension_numbers = #tpu.dot_dimension_numbers<[1], [0], [0], [1], [0, 0, 1, 1], [], []>} : vector<16x16xbf16>, vector<16x8xbf16>, vector<16x8xf32> -> vector<16x8xf32>
    %157 = arith.addf %156, %151 : vector<16x8xf32>
    %158 = arith.truncf %157 : vector<16x8xf32> to vector<16x8xbf16>
    %cst_59 = arith.constant dense<0.000000e+00> : vector<16x8xf32>
    %159 = tpu.matmul %148, %158, %cst_59 {dimension_numbers = #tpu.dot_dimension_numbers<[1], [0], [0], [1], [0, 0, 1, 1], [], []>} : vector<16x16xbf16>, vector<16x8xbf16>, vector<16x8xf32> -> vector<16x8xf32>
    %160 = arith.addf %159, %151 : vector<16x8xf32>
    %161 = tpu.concatenate %52, %88, %124, %160 in 1 : vector<16x8xf32>, vector<16x8xf32>, vector<16x8xf32>, vector<16x8xf32> -> vector<16x32xf32>
    %162 = vector.extract_strided_slice %13 {offsets = [0, 36], sizes = [16, 32], strides = [1, 1]} : vector<16x68xf32> to vector<16x32xf32>
    %163 = arith.addf %161, %162 : vector<16x32xf32>
    %cst_60 = arith.constant dense<0.000000e+00> : vector<16xf32>
    %164 = vector.multi_reduction <add>, %163, %cst_60 [1] : vector<16x32xf32> to vector<16xf32>
    %165 = vector.shape_cast %164 : vector<16xf32> to vector<16x1xf32>
    %cst_61 = arith.constant 3.200000e+01 : f32
    %166 = vector.broadcast %cst_61 : f32 to vector<16x1xf32>
    %167 = arith.divf %165, %166 : vector<16x1xf32>
    %168 = vector.broadcast %167 : vector<16x1xf32> to vector<16x32xf32>
    %169 = arith.subf %163, %168 : vector<16x32xf32>
    %170 = arith.mulf %169, %169 : vector<16x32xf32>
    %cst_62 = arith.constant dense<0.000000e+00> : vector<16xf32>
    %171 = vector.multi_reduction <add>, %170, %cst_62 [1] : vector<16x32xf32> to vector<16xf32>
    %172 = vector.shape_cast %171 : vector<16xf32> to vector<16x1xf32>
    %cst_63 = arith.constant 3.200000e+01 : f32
    %173 = vector.broadcast %cst_63 : f32 to vector<16x1xf32>
    %174 = arith.divf %172, %173 : vector<16x1xf32>
    %cst_64 = arith.constant 9.99999974E-6 : f32
    %175 = vector.broadcast %cst_64 : f32 to vector<16x1xf32>
    %176 = arith.addf %174, %175 : vector<16x1xf32>
    %177 = math.rsqrt %176 : vector<16x1xf32>
    %178 = vector.broadcast %177 : vector<16x1xf32> to vector<16x32xf32>
    %179 = arith.mulf %169, %178 : vector<16x32xf32>
    %180 = vector.broadcast %4 : vector<1x32xf32> to vector<16x32xf32>
    %181 = arith.mulf %179, %180 : vector<16x32xf32>
    %182 = vector.broadcast %5 : vector<1x32xf32> to vector<16x32xf32>
    %183 = arith.addf %181, %182 : vector<16x32xf32>
    %184 = arith.truncf %183 : vector<16x32xf32> to vector<16x32xbf16>
    %cst_65 = arith.constant dense<0.000000e+00> : vector<16x128xf32>
    %185 = tpu.matmul %184, %6, %cst_65 {dimension_numbers = #tpu.dot_dimension_numbers<[1], [0], [0], [1], [0, 0, 1, 1], [], []>} : vector<16x32xbf16>, vector<32x128xbf16>, vector<16x128xf32> -> vector<16x128xf32>
    %186 = vector.broadcast %7 : vector<1x128xf32> to vector<16x128xf32>
    %187 = arith.addf %185, %186 : vector<16x128xf32>
    %cst_66 = arith.constant 0.000000e+00 : f32
    %188 = vector.broadcast %cst_66 : f32 to vector<16x128xf32>
    %189 = arith.maximumf %187, %188 : vector<16x128xf32>
    %190 = arith.truncf %189 : vector<16x128xf32> to vector<16x128xbf16>
    %cst_67 = arith.constant dense<0.000000e+00> : vector<16x32xf32>
    %191 = tpu.matmul %190, %8, %cst_67 {dimension_numbers = #tpu.dot_dimension_numbers<[1], [0], [0], [1], [0, 0, 1, 1], [], []>} : vector<16x128xbf16>, vector<128x32xbf16>, vector<16x32xf32> -> vector<16x32xf32>
    %192 = vector.broadcast %9 : vector<1x32xf32> to vector<16x32xf32>
    %193 = arith.addf %191, %192 : vector<16x32xf32>
    %194 = arith.addf %183, %193 : vector<16x32xf32>
    %cst_68 = arith.constant dense<0.000000e+00> : vector<16xf32>
    %195 = vector.multi_reduction <add>, %194, %cst_68 [1] : vector<16x32xf32> to vector<16xf32>
    %196 = vector.shape_cast %195 : vector<16xf32> to vector<16x1xf32>
    %cst_69 = arith.constant 3.200000e+01 : f32
    %197 = vector.broadcast %cst_69 : f32 to vector<16x1xf32>
    %198 = arith.divf %196, %197 : vector<16x1xf32>
    %199 = vector.broadcast %198 : vector<16x1xf32> to vector<16x32xf32>
    %200 = arith.subf %194, %199 : vector<16x32xf32>
    %201 = arith.mulf %200, %200 : vector<16x32xf32>
    %cst_70 = arith.constant dense<0.000000e+00> : vector<16xf32>
    %202 = vector.multi_reduction <add>, %201, %cst_70 [1] : vector<16x32xf32> to vector<16xf32>
    %203 = vector.shape_cast %202 : vector<16xf32> to vector<16x1xf32>
    %cst_71 = arith.constant 3.200000e+01 : f32
    %204 = vector.broadcast %cst_71 : f32 to vector<16x1xf32>
    %205 = arith.divf %203, %204 : vector<16x1xf32>
    %cst_72 = arith.constant 9.99999974E-6 : f32
    %206 = vector.broadcast %cst_72 : f32 to vector<16x1xf32>
    %207 = arith.addf %205, %206 : vector<16x1xf32>
    %208 = math.rsqrt %207 : vector<16x1xf32>
    %209 = vector.broadcast %208 : vector<16x1xf32> to vector<16x32xf32>
    %210 = arith.mulf %200, %209 : vector<16x32xf32>
    %211 = vector.broadcast %10 : vector<1x32xf32> to vector<16x32xf32>
    %212 = arith.mulf %210, %211 : vector<16x32xf32>
    %213 = vector.broadcast %11 : vector<1x32xf32> to vector<16x32xf32>
    %214 = arith.addf %212, %213 : vector<16x32xf32>
    %c0_73 = arith.constant 0 : index
    %c0_74 = arith.constant 0 : index
    %215 = vector.load %arg12[%c0_73, %c0_74] : memref<32x36xbf16, #tpu.memory_space<vmem>>, vector<32x36xbf16>
    %c0_75 = arith.constant 0 : index
    %c0_76 = arith.constant 0 : index
    %216 = vector.load %arg13[%c0_75, %c0_76] : memref<4x32xbf16, #tpu.memory_space<vmem>>, vector<4x32xbf16>
    %c0_77 = arith.constant 0 : index
    %c0_78 = arith.constant 0 : index
    %217 = vector.load %arg14[%c0_77, %c0_78] : memref<1x32xf32, #tpu.memory_space<vmem>>, vector<1x32xf32>
    %c0_79 = arith.constant 0 : index
    %c0_80 = arith.constant 0 : index
    %218 = vector.load %arg15[%c0_79, %c0_80] : memref<1x32xf32, #tpu.memory_space<vmem>>, vector<1x32xf32>
    %c0_81 = arith.constant 0 : index
    %c0_82 = arith.constant 0 : index
    %219 = vector.load %arg16[%c0_81, %c0_82] : memref<32x128xbf16, #tpu.memory_space<vmem>>, vector<32x128xbf16>
    %c0_83 = arith.constant 0 : index
    %c0_84 = arith.constant 0 : index
    %220 = vector.load %arg17[%c0_83, %c0_84] : memref<1x128xf32, #tpu.memory_space<vmem>>, vector<1x128xf32>
    %c0_85 = arith.constant 0 : index
    %c0_86 = arith.constant 0 : index
    %221 = vector.load %arg18[%c0_85, %c0_86] : memref<128x32xbf16, #tpu.memory_space<vmem>>, vector<128x32xbf16>
    %c0_87 = arith.constant 0 : index
    %c0_88 = arith.constant 0 : index
    %222 = vector.load %arg19[%c0_87, %c0_88] : memref<1x32xf32, #tpu.memory_space<vmem>>, vector<1x32xf32>
    %c0_89 = arith.constant 0 : index
    %c0_90 = arith.constant 0 : index
    %223 = vector.load %arg20[%c0_89, %c0_90] : memref<1x32xf32, #tpu.memory_space<vmem>>, vector<1x32xf32>
    %c0_91 = arith.constant 0 : index
    %c0_92 = arith.constant 0 : index
    %224 = vector.load %arg21[%c0_91, %c0_92] : memref<1x32xf32, #tpu.memory_space<vmem>>, vector<1x32xf32>
    %225 = arith.truncf %214 : vector<16x32xf32> to vector<16x32xbf16>
    %cst_93 = arith.constant dense<0.000000e+00> : vector<16x36xf32>
    %226 = tpu.matmul %225, %215, %cst_93 {dimension_numbers = #tpu.dot_dimension_numbers<[1], [0], [0], [1], [0, 0, 1, 1], [], []>} : vector<16x32xbf16>, vector<32x36xbf16>, vector<16x36xf32> -> vector<16x36xf32>
    %227 = vector.extract_strided_slice %226 {offsets = [0, 0], sizes = [16, 32], strides = [1, 1]} : vector<16x36xf32> to vector<16x32xf32>
    %228 = vector.extract_strided_slice %226 {offsets = [0, 32], sizes = [16, 4], strides = [1, 1]} : vector<16x36xf32> to vector<16x4xf32>
    %cst_94 = arith.constant dense<0.000000e+00> : vector<4x16xf32>
    %229 = tpu.matmul %216, %225, %cst_94 {dimension_numbers = #tpu.dot_dimension_numbers<[1], [1], [0], [0], [0, 0, 1, 0], [], []>} : vector<4x32xbf16>, vector<16x32xbf16>, vector<4x16xf32> -> vector<4x16xf32>
    %230 = vector.extract_strided_slice %228 {offsets = [0, 0], sizes = [16, 1], strides = [1, 1]} : vector<16x4xf32> to vector<16x1xf32>
    %231 = vector.extract_strided_slice %229 {offsets = [0, 0], sizes = [1, 16], strides = [1, 1]} : vector<4x16xf32> to vector<1x16xf32>
    %232 = vector.broadcast %230 : vector<16x1xf32> to vector<16x16xf32>
    %233 = vector.broadcast %231 : vector<1x16xf32> to vector<16x16xf32>
    %234 = arith.addf %232, %233 : vector<16x16xf32>
    %cst_95 = arith.constant 2.000000e-01 : f32
    %235 = vector.broadcast %cst_95 : f32 to vector<16x16xf32>
    %236 = arith.mulf %235, %234 : vector<16x16xf32>
    %237 = arith.maximumf %234, %236 : vector<16x16xf32>
    %238 = arith.addf %237, %0 : vector<16x16xf32>
    %cst_96 = arith.constant dense<0xFF800000> : vector<16xf32>
    %239 = vector.multi_reduction <maximumf>, %238, %cst_96 [1] : vector<16x16xf32> to vector<16xf32>
    %240 = vector.shape_cast %239 : vector<16xf32> to vector<16x1xf32>
    %241 = vector.broadcast %240 : vector<16x1xf32> to vector<16x16xf32>
    %242 = arith.subf %238, %241 : vector<16x16xf32>
    %243 = math.exp %242 : vector<16x16xf32>
    %cst_97 = arith.constant dense<0.000000e+00> : vector<16xf32>
    %244 = vector.multi_reduction <add>, %243, %cst_97 [1] : vector<16x16xf32> to vector<16xf32>
    %245 = vector.shape_cast %244 : vector<16xf32> to vector<16x1xf32>
    %cst_98 = arith.constant 1.000000e-16 : f32
    %246 = vector.broadcast %cst_98 : f32 to vector<16x1xf32>
    %247 = arith.addf %245, %246 : vector<16x1xf32>
    %248 = tpu.reciprocal %247 {approx = true} : vector<16x1xf32> -> vector<16x1xf32>
    %249 = vector.broadcast %248 : vector<16x1xf32> to vector<16x16xf32>
    %250 = arith.mulf %243, %249 : vector<16x16xf32>
    %cst_99 = arith.constant 8.500000e-01 : f32
    %251 = vector.broadcast %cst_99 : f32 to vector<16x16xf32>
    %252 = arith.mulf %251, %250 : vector<16x16xf32>
    %253 = arith.truncf %252 : vector<16x16xf32> to vector<16x16xbf16>
    %254 = vector.extract_strided_slice %227 {offsets = [0, 0], sizes = [16, 8], strides = [1, 1]} : vector<16x32xf32> to vector<16x8xf32>
    %cst_100 = arith.constant 1.500000e-01 : f32
    %255 = vector.broadcast %cst_100 : f32 to vector<16x8xf32>
    %256 = arith.mulf %255, %254 : vector<16x8xf32>
    %257 = arith.truncf %254 : vector<16x8xf32> to vector<16x8xbf16>
    %cst_101 = arith.constant dense<0.000000e+00> : vector<16x8xf32>
    %258 = tpu.matmul %253, %257, %cst_101 {dimension_numbers = #tpu.dot_dimension_numbers<[1], [0], [0], [1], [0, 0, 1, 1], [], []>} : vector<16x16xbf16>, vector<16x8xbf16>, vector<16x8xf32> -> vector<16x8xf32>
    %259 = arith.addf %258, %256 : vector<16x8xf32>
    %260 = arith.truncf %259 : vector<16x8xf32> to vector<16x8xbf16>
    %cst_102 = arith.constant dense<0.000000e+00> : vector<16x8xf32>
    %261 = tpu.matmul %253, %260, %cst_102 {dimension_numbers = #tpu.dot_dimension_numbers<[1], [0], [0], [1], [0, 0, 1, 1], [], []>} : vector<16x16xbf16>, vector<16x8xbf16>, vector<16x8xf32> -> vector<16x8xf32>
    %262 = arith.addf %261, %256 : vector<16x8xf32>
    %263 = arith.truncf %262 : vector<16x8xf32> to vector<16x8xbf16>
    %cst_103 = arith.constant dense<0.000000e+00> : vector<16x8xf32>
    %264 = tpu.matmul %253, %263, %cst_103 {dimension_numbers = #tpu.dot_dimension_numbers<[1], [0], [0], [1], [0, 0, 1, 1], [], []>} : vector<16x16xbf16>, vector<16x8xbf16>, vector<16x8xf32> -> vector<16x8xf32>
    %265 = arith.addf %264, %256 : vector<16x8xf32>
    %266 = vector.extract_strided_slice %228 {offsets = [0, 1], sizes = [16, 1], strides = [1, 1]} : vector<16x4xf32> to vector<16x1xf32>
    %267 = vector.extract_strided_slice %229 {offsets = [1, 0], sizes = [1, 16], strides = [1, 1]} : vector<4x16xf32> to vector<1x16xf32>
    %268 = vector.broadcast %266 : vector<16x1xf32> to vector<16x16xf32>
    %269 = vector.broadcast %267 : vector<1x16xf32> to vector<16x16xf32>
    %270 = arith.addf %268, %269 : vector<16x16xf32>
    %cst_104 = arith.constant 2.000000e-01 : f32
    %271 = vector.broadcast %cst_104 : f32 to vector<16x16xf32>
    %272 = arith.mulf %271, %270 : vector<16x16xf32>
    %273 = arith.maximumf %270, %272 : vector<16x16xf32>
    %274 = arith.addf %273, %0 : vector<16x16xf32>
    %cst_105 = arith.constant dense<0xFF800000> : vector<16xf32>
    %275 = vector.multi_reduction <maximumf>, %274, %cst_105 [1] : vector<16x16xf32> to vector<16xf32>
    %276 = vector.shape_cast %275 : vector<16xf32> to vector<16x1xf32>
    %277 = vector.broadcast %276 : vector<16x1xf32> to vector<16x16xf32>
    %278 = arith.subf %274, %277 : vector<16x16xf32>
    %279 = math.exp %278 : vector<16x16xf32>
    %cst_106 = arith.constant dense<0.000000e+00> : vector<16xf32>
    %280 = vector.multi_reduction <add>, %279, %cst_106 [1] : vector<16x16xf32> to vector<16xf32>
    %281 = vector.shape_cast %280 : vector<16xf32> to vector<16x1xf32>
    %cst_107 = arith.constant 1.000000e-16 : f32
    %282 = vector.broadcast %cst_107 : f32 to vector<16x1xf32>
    %283 = arith.addf %281, %282 : vector<16x1xf32>
    %284 = tpu.reciprocal %283 {approx = true} : vector<16x1xf32> -> vector<16x1xf32>
    %285 = vector.broadcast %284 : vector<16x1xf32> to vector<16x16xf32>
    %286 = arith.mulf %279, %285 : vector<16x16xf32>
    %cst_108 = arith.constant 8.500000e-01 : f32
    %287 = vector.broadcast %cst_108 : f32 to vector<16x16xf32>
    %288 = arith.mulf %287, %286 : vector<16x16xf32>
    %289 = arith.truncf %288 : vector<16x16xf32> to vector<16x16xbf16>
    %290 = vector.extract_strided_slice %227 {offsets = [0, 8], sizes = [16, 8], strides = [1, 1]} : vector<16x32xf32> to vector<16x8xf32>
    %cst_109 = arith.constant 1.500000e-01 : f32
    %291 = vector.broadcast %cst_109 : f32 to vector<16x8xf32>
    %292 = arith.mulf %291, %290 : vector<16x8xf32>
    %293 = arith.truncf %290 : vector<16x8xf32> to vector<16x8xbf16>
    %cst_110 = arith.constant dense<0.000000e+00> : vector<16x8xf32>
    %294 = tpu.matmul %289, %293, %cst_110 {dimension_numbers = #tpu.dot_dimension_numbers<[1], [0], [0], [1], [0, 0, 1, 1], [], []>} : vector<16x16xbf16>, vector<16x8xbf16>, vector<16x8xf32> -> vector<16x8xf32>
    %295 = arith.addf %294, %292 : vector<16x8xf32>
    %296 = arith.truncf %295 : vector<16x8xf32> to vector<16x8xbf16>
    %cst_111 = arith.constant dense<0.000000e+00> : vector<16x8xf32>
    %297 = tpu.matmul %289, %296, %cst_111 {dimension_numbers = #tpu.dot_dimension_numbers<[1], [0], [0], [1], [0, 0, 1, 1], [], []>} : vector<16x16xbf16>, vector<16x8xbf16>, vector<16x8xf32> -> vector<16x8xf32>
    %298 = arith.addf %297, %292 : vector<16x8xf32>
    %299 = arith.truncf %298 : vector<16x8xf32> to vector<16x8xbf16>
    %cst_112 = arith.constant dense<0.000000e+00> : vector<16x8xf32>
    %300 = tpu.matmul %289, %299, %cst_112 {dimension_numbers = #tpu.dot_dimension_numbers<[1], [0], [0], [1], [0, 0, 1, 1], [], []>} : vector<16x16xbf16>, vector<16x8xbf16>, vector<16x8xf32> -> vector<16x8xf32>
    %301 = arith.addf %300, %292 : vector<16x8xf32>
    %302 = vector.extract_strided_slice %228 {offsets = [0, 2], sizes = [16, 1], strides = [1, 1]} : vector<16x4xf32> to vector<16x1xf32>
    %303 = vector.extract_strided_slice %229 {offsets = [2, 0], sizes = [1, 16], strides = [1, 1]} : vector<4x16xf32> to vector<1x16xf32>
    %304 = vector.broadcast %302 : vector<16x1xf32> to vector<16x16xf32>
    %305 = vector.broadcast %303 : vector<1x16xf32> to vector<16x16xf32>
    %306 = arith.addf %304, %305 : vector<16x16xf32>
    %cst_113 = arith.constant 2.000000e-01 : f32
    %307 = vector.broadcast %cst_113 : f32 to vector<16x16xf32>
    %308 = arith.mulf %307, %306 : vector<16x16xf32>
    %309 = arith.maximumf %306, %308 : vector<16x16xf32>
    %310 = arith.addf %309, %0 : vector<16x16xf32>
    %cst_114 = arith.constant dense<0xFF800000> : vector<16xf32>
    %311 = vector.multi_reduction <maximumf>, %310, %cst_114 [1] : vector<16x16xf32> to vector<16xf32>
    %312 = vector.shape_cast %311 : vector<16xf32> to vector<16x1xf32>
    %313 = vector.broadcast %312 : vector<16x1xf32> to vector<16x16xf32>
    %314 = arith.subf %310, %313 : vector<16x16xf32>
    %315 = math.exp %314 : vector<16x16xf32>
    %cst_115 = arith.constant dense<0.000000e+00> : vector<16xf32>
    %316 = vector.multi_reduction <add>, %315, %cst_115 [1] : vector<16x16xf32> to vector<16xf32>
    %317 = vector.shape_cast %316 : vector<16xf32> to vector<16x1xf32>
    %cst_116 = arith.constant 1.000000e-16 : f32
    %318 = vector.broadcast %cst_116 : f32 to vector<16x1xf32>
    %319 = arith.addf %317, %318 : vector<16x1xf32>
    %320 = tpu.reciprocal %319 {approx = true} : vector<16x1xf32> -> vector<16x1xf32>
    %321 = vector.broadcast %320 : vector<16x1xf32> to vector<16x16xf32>
    %322 = arith.mulf %315, %321 : vector<16x16xf32>
    %cst_117 = arith.constant 8.500000e-01 : f32
    %323 = vector.broadcast %cst_117 : f32 to vector<16x16xf32>
    %324 = arith.mulf %323, %322 : vector<16x16xf32>
    %325 = arith.truncf %324 : vector<16x16xf32> to vector<16x16xbf16>
    %326 = vector.extract_strided_slice %227 {offsets = [0, 16], sizes = [16, 8], strides = [1, 1]} : vector<16x32xf32> to vector<16x8xf32>
    %cst_118 = arith.constant 1.500000e-01 : f32
    %327 = vector.broadcast %cst_118 : f32 to vector<16x8xf32>
    %328 = arith.mulf %327, %326 : vector<16x8xf32>
    %329 = arith.truncf %326 : vector<16x8xf32> to vector<16x8xbf16>
    %cst_119 = arith.constant dense<0.000000e+00> : vector<16x8xf32>
    %330 = tpu.matmul %325, %329, %cst_119 {dimension_numbers = #tpu.dot_dimension_numbers<[1], [0], [0], [1], [0, 0, 1, 1], [], []>} : vector<16x16xbf16>, vector<16x8xbf16>, vector<16x8xf32> -> vector<16x8xf32>
    %331 = arith.addf %330, %328 : vector<16x8xf32>
    %332 = arith.truncf %331 : vector<16x8xf32> to vector<16x8xbf16>
    %cst_120 = arith.constant dense<0.000000e+00> : vector<16x8xf32>
    %333 = tpu.matmul %325, %332, %cst_120 {dimension_numbers = #tpu.dot_dimension_numbers<[1], [0], [0], [1], [0, 0, 1, 1], [], []>} : vector<16x16xbf16>, vector<16x8xbf16>, vector<16x8xf32> -> vector<16x8xf32>
    %334 = arith.addf %333, %328 : vector<16x8xf32>
    %335 = arith.truncf %334 : vector<16x8xf32> to vector<16x8xbf16>
    %cst_121 = arith.constant dense<0.000000e+00> : vector<16x8xf32>
    %336 = tpu.matmul %325, %335, %cst_121 {dimension_numbers = #tpu.dot_dimension_numbers<[1], [0], [0], [1], [0, 0, 1, 1], [], []>} : vector<16x16xbf16>, vector<16x8xbf16>, vector<16x8xf32> -> vector<16x8xf32>
    %337 = arith.addf %336, %328 : vector<16x8xf32>
    %338 = vector.extract_strided_slice %228 {offsets = [0, 3], sizes = [16, 1], strides = [1, 1]} : vector<16x4xf32> to vector<16x1xf32>
    %339 = vector.extract_strided_slice %229 {offsets = [3, 0], sizes = [1, 16], strides = [1, 1]} : vector<4x16xf32> to vector<1x16xf32>
    %340 = vector.broadcast %338 : vector<16x1xf32> to vector<16x16xf32>
    %341 = vector.broadcast %339 : vector<1x16xf32> to vector<16x16xf32>
    %342 = arith.addf %340, %341 : vector<16x16xf32>
    %cst_122 = arith.constant 2.000000e-01 : f32
    %343 = vector.broadcast %cst_122 : f32 to vector<16x16xf32>
    %344 = arith.mulf %343, %342 : vector<16x16xf32>
    %345 = arith.maximumf %342, %344 : vector<16x16xf32>
    %346 = arith.addf %345, %0 : vector<16x16xf32>
    %cst_123 = arith.constant dense<0xFF800000> : vector<16xf32>
    %347 = vector.multi_reduction <maximumf>, %346, %cst_123 [1] : vector<16x16xf32> to vector<16xf32>
    %348 = vector.shape_cast %347 : vector<16xf32> to vector<16x1xf32>
    %349 = vector.broadcast %348 : vector<16x1xf32> to vector<16x16xf32>
    %350 = arith.subf %346, %349 : vector<16x16xf32>
    %351 = math.exp %350 : vector<16x16xf32>
    %cst_124 = arith.constant dense<0.000000e+00> : vector<16xf32>
    %352 = vector.multi_reduction <add>, %351, %cst_124 [1] : vector<16x16xf32> to vector<16xf32>
    %353 = vector.shape_cast %352 : vector<16xf32> to vector<16x1xf32>
    %cst_125 = arith.constant 1.000000e-16 : f32
    %354 = vector.broadcast %cst_125 : f32 to vector<16x1xf32>
    %355 = arith.addf %353, %354 : vector<16x1xf32>
    %356 = tpu.reciprocal %355 {approx = true} : vector<16x1xf32> -> vector<16x1xf32>
    %357 = vector.broadcast %356 : vector<16x1xf32> to vector<16x16xf32>
    %358 = arith.mulf %351, %357 : vector<16x16xf32>
    %cst_126 = arith.constant 8.500000e-01 : f32
    %359 = vector.broadcast %cst_126 : f32 to vector<16x16xf32>
    %360 = arith.mulf %359, %358 : vector<16x16xf32>
    %361 = arith.truncf %360 : vector<16x16xf32> to vector<16x16xbf16>
    %362 = vector.extract_strided_slice %227 {offsets = [0, 24], sizes = [16, 8], strides = [1, 1]} : vector<16x32xf32> to vector<16x8xf32>
    %cst_127 = arith.constant 1.500000e-01 : f32
    %363 = vector.broadcast %cst_127 : f32 to vector<16x8xf32>
    %364 = arith.mulf %363, %362 : vector<16x8xf32>
    %365 = arith.truncf %362 : vector<16x8xf32> to vector<16x8xbf16>
    %cst_128 = arith.constant dense<0.000000e+00> : vector<16x8xf32>
    %366 = tpu.matmul %361, %365, %cst_128 {dimension_numbers = #tpu.dot_dimension_numbers<[1], [0], [0], [1], [0, 0, 1, 1], [], []>} : vector<16x16xbf16>, vector<16x8xbf16>, vector<16x8xf32> -> vector<16x8xf32>
    %367 = arith.addf %366, %364 : vector<16x8xf32>
    %368 = arith.truncf %367 : vector<16x8xf32> to vector<16x8xbf16>
    %cst_129 = arith.constant dense<0.000000e+00> : vector<16x8xf32>
    %369 = tpu.matmul %361, %368, %cst_129 {dimension_numbers = #tpu.dot_dimension_numbers<[1], [0], [0], [1], [0, 0, 1, 1], [], []>} : vector<16x16xbf16>, vector<16x8xbf16>, vector<16x8xf32> -> vector<16x8xf32>
    %370 = arith.addf %369, %364 : vector<16x8xf32>
    %371 = arith.truncf %370 : vector<16x8xf32> to vector<16x8xbf16>
    %cst_130 = arith.constant dense<0.000000e+00> : vector<16x8xf32>
    %372 = tpu.matmul %361, %371, %cst_130 {dimension_numbers = #tpu.dot_dimension_numbers<[1], [0], [0], [1], [0, 0, 1, 1], [], []>} : vector<16x16xbf16>, vector<16x8xbf16>, vector<16x8xf32> -> vector<16x8xf32>
    %373 = arith.addf %372, %364 : vector<16x8xf32>
    %374 = tpu.concatenate %265, %301, %337, %373 in 1 : vector<16x8xf32>, vector<16x8xf32>, vector<16x8xf32>, vector<16x8xf32> -> vector<16x32xf32>
    %375 = arith.addf %374, %214 : vector<16x32xf32>
    %cst_131 = arith.constant dense<0.000000e+00> : vector<16xf32>
    %376 = vector.multi_reduction <add>, %375, %cst_131 [1] : vector<16x32xf32> to vector<16xf32>
    %377 = vector.shape_cast %376 : vector<16xf32> to vector<16x1xf32>
    %cst_132 = arith.constant 3.200000e+01 : f32
    %378 = vector.broadcast %cst_132 : f32 to vector<16x1xf32>
    %379 = arith.divf %377, %378 : vector<16x1xf32>
    %380 = vector.broadcast %379 : vector<16x1xf32> to vector<16x32xf32>
    %381 = arith.subf %375, %380 : vector<16x32xf32>
    %382 = arith.mulf %381, %381 : vector<16x32xf32>
    %cst_133 = arith.constant dense<0.000000e+00> : vector<16xf32>
    %383 = vector.multi_reduction <add>, %382, %cst_133 [1] : vector<16x32xf32> to vector<16xf32>
    %384 = vector.shape_cast %383 : vector<16xf32> to vector<16x1xf32>
    %cst_134 = arith.constant 3.200000e+01 : f32
    %385 = vector.broadcast %cst_134 : f32 to vector<16x1xf32>
    %386 = arith.divf %384, %385 : vector<16x1xf32>
    %cst_135 = arith.constant 9.99999974E-6 : f32
    %387 = vector.broadcast %cst_135 : f32 to vector<16x1xf32>
    %388 = arith.addf %386, %387 : vector<16x1xf32>
    %389 = math.rsqrt %388 : vector<16x1xf32>
    %390 = vector.broadcast %389 : vector<16x1xf32> to vector<16x32xf32>
    %391 = arith.mulf %381, %390 : vector<16x32xf32>
    %392 = vector.broadcast %217 : vector<1x32xf32> to vector<16x32xf32>
    %393 = arith.mulf %391, %392 : vector<16x32xf32>
    %394 = vector.broadcast %218 : vector<1x32xf32> to vector<16x32xf32>
    %395 = arith.addf %393, %394 : vector<16x32xf32>
    %396 = arith.truncf %395 : vector<16x32xf32> to vector<16x32xbf16>
    %cst_136 = arith.constant dense<0.000000e+00> : vector<16x128xf32>
    %397 = tpu.matmul %396, %219, %cst_136 {dimension_numbers = #tpu.dot_dimension_numbers<[1], [0], [0], [1], [0, 0, 1, 1], [], []>} : vector<16x32xbf16>, vector<32x128xbf16>, vector<16x128xf32> -> vector<16x128xf32>
    %398 = vector.broadcast %220 : vector<1x128xf32> to vector<16x128xf32>
    %399 = arith.addf %397, %398 : vector<16x128xf32>
    %cst_137 = arith.constant 0.000000e+00 : f32
    %400 = vector.broadcast %cst_137 : f32 to vector<16x128xf32>
    %401 = arith.maximumf %399, %400 : vector<16x128xf32>
    %402 = arith.truncf %401 : vector<16x128xf32> to vector<16x128xbf16>
    %cst_138 = arith.constant dense<0.000000e+00> : vector<16x32xf32>
    %403 = tpu.matmul %402, %221, %cst_138 {dimension_numbers = #tpu.dot_dimension_numbers<[1], [0], [0], [1], [0, 0, 1, 1], [], []>} : vector<16x128xbf16>, vector<128x32xbf16>, vector<16x32xf32> -> vector<16x32xf32>
    %404 = vector.broadcast %222 : vector<1x32xf32> to vector<16x32xf32>
    %405 = arith.addf %403, %404 : vector<16x32xf32>
    %406 = arith.addf %395, %405 : vector<16x32xf32>
    %cst_139 = arith.constant dense<0.000000e+00> : vector<16xf32>
    %407 = vector.multi_reduction <add>, %406, %cst_139 [1] : vector<16x32xf32> to vector<16xf32>
    %408 = vector.shape_cast %407 : vector<16xf32> to vector<16x1xf32>
    %cst_140 = arith.constant 3.200000e+01 : f32
    %409 = vector.broadcast %cst_140 : f32 to vector<16x1xf32>
    %410 = arith.divf %408, %409 : vector<16x1xf32>
    %411 = vector.broadcast %410 : vector<16x1xf32> to vector<16x32xf32>
    %412 = arith.subf %406, %411 : vector<16x32xf32>
    %413 = arith.mulf %412, %412 : vector<16x32xf32>
    %cst_141 = arith.constant dense<0.000000e+00> : vector<16xf32>
    %414 = vector.multi_reduction <add>, %413, %cst_141 [1] : vector<16x32xf32> to vector<16xf32>
    %415 = vector.shape_cast %414 : vector<16xf32> to vector<16x1xf32>
    %cst_142 = arith.constant 3.200000e+01 : f32
    %416 = vector.broadcast %cst_142 : f32 to vector<16x1xf32>
    %417 = arith.divf %415, %416 : vector<16x1xf32>
    %cst_143 = arith.constant 9.99999974E-6 : f32
    %418 = vector.broadcast %cst_143 : f32 to vector<16x1xf32>
    %419 = arith.addf %417, %418 : vector<16x1xf32>
    %420 = math.rsqrt %419 : vector<16x1xf32>
    %421 = vector.broadcast %420 : vector<16x1xf32> to vector<16x32xf32>
    %422 = arith.mulf %412, %421 : vector<16x32xf32>
    %423 = vector.broadcast %223 : vector<1x32xf32> to vector<16x32xf32>
    %424 = arith.mulf %422, %423 : vector<16x32xf32>
    %425 = vector.broadcast %224 : vector<1x32xf32> to vector<16x32xf32>
    %426 = arith.addf %424, %425 : vector<16x32xf32>
    %427 = arith.truncf %426 : vector<16x32xf32> to vector<16x32xbf16>
    %c0_144 = arith.constant 0 : index
    %c0_145 = arith.constant 0 : index
    %428 = vector.load %arg22[%c0_144, %c0_145] : memref<32x128xbf16, #tpu.memory_space<vmem>>, vector<32x128xbf16>
    %cst_146 = arith.constant dense<0.000000e+00> : vector<16x128xf32>
    %429 = tpu.matmul %427, %428, %cst_146 {dimension_numbers = #tpu.dot_dimension_numbers<[1], [0], [0], [1], [0, 0, 1, 1], [], []>} : vector<16x32xbf16>, vector<32x128xbf16>, vector<16x128xf32> -> vector<16x128xf32>
    %c0_147 = arith.constant 0 : index
    %c0_148 = arith.constant 0 : index
    %430 = vector.load %arg23[%c0_147, %c0_148] : memref<1x128xf32, #tpu.memory_space<vmem>>, vector<1x128xf32>
    %431 = vector.broadcast %430 : vector<1x128xf32> to vector<16x128xf32>
    %432 = arith.addf %429, %431 : vector<16x128xf32>
    %c0_149 = arith.constant 0 : index
    %c0_150 = arith.constant 0 : index
    %433 = vector.load %arg24[%c0_149, %c0_150] : memref<16x128xf32, #tpu.memory_space<vmem>>, vector<16x128xf32>
    tpu.vector_store %arg24[%c0_149, %c0_150], %432 {strides = array<i32>} : memref<16x128xf32, #tpu.memory_space<vmem>>, vector<16x128xf32>,
    return
  }
}

</mosaic_0001>

<llo_original>
// kernel: tpu_custom_call.1
$region0: #{tpu_custom_call.1}
  #allocation0 [shape = 'u32[]', space=smem, size = 0x4, offset = 0x4, fixed_abs, tag = 'smem constant byte address 0x4 - core index']
  #allocation1 [shape = 'u32[144,128]{1,0:T(1,128)}', space=vmem, size = 0x12000, scoped, tag = 'internal scratch']
  %s0 = inlined_call_operand.vmem [shape: f32[16,16], index: 0, kind: input, shape index: {}]
  %s1 = inlined_call_operand.vmem [shape: f32[16,16], index: 1, kind: input, shape index: {}]
  %s2 = inlined_call_operand.vmem [shape: bf16[16,68], index: 2, kind: input, shape index: {}]
  %s3 = inlined_call_operand.vmem [shape: bf16[4,16], index: 3, kind: input, shape index: {}]
  %s4 = inlined_call_operand.vmem [shape: f32[1,32], index: 4, kind: input, shape index: {}]
  %s5 = inlined_call_operand.vmem [shape: f32[1,32], index: 5, kind: input, shape index: {}]
  %s6 = inlined_call_operand.vmem [shape: bf16[32,128], index: 6, kind: input, shape index: {}]
  %s7 = inlined_call_operand.vmem [shape: f32[1,128], index: 7, kind: input, shape index: {}]
  %s8 = inlined_call_operand.vmem [shape: bf16[128,32], index: 8, kind: input, shape index: {}]
  %s9 = inlined_call_operand.vmem [shape: f32[1,32], index: 9, kind: input, shape index: {}]
  %s10 = inlined_call_operand.vmem [shape: f32[1,32], index: 10, kind: input, shape index: {}]
  %s11 = inlined_call_operand.vmem [shape: f32[1,32], index: 11, kind: input, shape index: {}]
  %s12 = inlined_call_operand.vmem [shape: bf16[32,36], index: 12, kind: input, shape index: {}]
  %s13 = inlined_call_operand.vmem [shape: bf16[4,32], index: 13, kind: input, shape index: {}]
  %s14 = inlined_call_operand.vmem [shape: f32[1,32], index: 14, kind: input, shape index: {}]
  %s15 = inlined_call_operand.vmem [shape: f32[1,32], index: 15, kind: input, shape index: {}]
  %s16 = inlined_call_operand.vmem [shape: bf16[32,128], index: 16, kind: input, shape index: {}]
  %s17 = inlined_call_operand.vmem [shape: f32[1,128], index: 17, kind: input, shape index: {}]
  %s18 = inlined_call_operand.vmem [shape: bf16[128,32], index: 18, kind: input, shape index: {}]
  %s19 = inlined_call_operand.vmem [shape: f32[1,32], index: 19, kind: input, shape index: {}]
  %s20 = inlined_call_operand.vmem [shape: f32[1,32], index: 20, kind: input, shape index: {}]
  %s21 = inlined_call_operand.vmem [shape: f32[1,32], index: 21, kind: input, shape index: {}]
  %s22 = inlined_call_operand.vmem [shape: bf16[32,128], index: 22, kind: input, shape index: {}]
  %s23 = inlined_call_operand.vmem [shape: f32[1,128], index: 23, kind: input, shape index: {}]
  %s24 = inlined_call_operand.hbm [shape: f32[16,128], index: 24, kind: output, shape index: {}]
  %s25 = sld [smem:[#allocation0]]
  $region106: #{tpu_custom_call.1} parent=0
    _
  %s27 = ssub.s32 1, %s25
  %s28 = scalar_select 0, %s27, %s25
  $region1: #{tpu_custom_call.1} parent=0
    #allocation2 [shape = 'u8[8192]{0}', space=vmem, size = 0x2000, scoped, tag = 'output window, operand 0, single buffered']
    #allocation3 [shape = 's32[1]{0}', space=sflag, size = 0x4, scoped, tag = 'scoped memory for tpu_custom_call.1']
    %29 = vsyncpa [#allocation3], 0
    // Predicated region
    $region2: #{tpu_custom_call.1} parent=1 // pred_check
      _
    $region3: #{tpu_custom_call.1} parent=1 // pred_check_branch
      %31 = sbr.rel (0) target = $region5
    $region4: #{tpu_custom_call.1} parent=1 // pred_region
      _
    $region5: #{tpu_custom_call.1} parent=1 // pred_fallthru
      _
    // Predicated region
    $region6: #{tpu_custom_call.1} parent=1 // pred_check
      _
    $region7: #{tpu_custom_call.1} parent=1 // pred_check_branch
      %33 = sbr.rel (0) target = $region9
    $region8: #{tpu_custom_call.1} parent=1 // pred_region
      _
    $region9: #{tpu_custom_call.1} parent=1 // pred_fallthru
      _
    // Predicated region
    $region10: #{tpu_custom_call.1} parent=1 // pred_check
      _
    $region11: #{tpu_custom_call.1} parent=1 // pred_check_branch
      %35 = sbr.rel (0) target = $region13
    $region12: #{tpu_custom_call.1} parent=1 // pred_region
      _
    $region13: #{tpu_custom_call.1} parent=1 // pred_fallthru
      _
    // Predicated region
    $region14: #{tpu_custom_call.1} parent=1 // pred_check
      _
    $region15: #{tpu_custom_call.1} parent=1 // pred_check_branch
      %37 = sbr.rel (0) target = $region17
    $region16: #{tpu_custom_call.1} parent=1 // pred_region
      _
    $region17: #{tpu_custom_call.1} parent=1 // pred_fallthru
      _
    // Predicated region
    $region18: #{tpu_custom_call.1} parent=1 // pred_check
      _
    $region19: #{tpu_custom_call.1} parent=1 // pred_check_branch
      %39 = sbr.rel (0) target = $region21
    $region20: #{tpu_custom_call.1} parent=1 // pred_region
      _
    $region21: #{tpu_custom_call.1} parent=1 // pred_fallthru
      _
    // Predicated region
    $region22: #{tpu_custom_call.1} parent=1 // pred_check
      _
    $region23: #{tpu_custom_call.1} parent=1 // pred_check_branch
      %41 = sbr.rel (0) target = $region25
    $region24: #{tpu_custom_call.1} parent=1 // pred_region
      _
    $region25: #{tpu_custom_call.1} parent=1 // pred_fallthru
      _
    // Predicated region
    $region26: #{tpu_custom_call.1} parent=1 // pred_check
      _
    $region27: #{tpu_custom_call.1} parent=1 // pred_check_branch
      %43 = sbr.rel (0) target = $region29
    $region28: #{tpu_custom_call.1} parent=1 // pred_region
      _
    $region29: #{tpu_custom_call.1} parent=1 // pred_fallthru
      _
    // Predicated region
    $region30: #{tpu_custom_call.1} parent=1 // pred_check
      _
    $region31: #{tpu_custom_call.1} parent=1 // pred_check_branch
      %45 = sbr.rel (0) target = $region33
    $region32: #{tpu_custom_call.1} parent=1 // pred_region
      _
    $region33: #{tpu_custom_call.1} parent=1 // pred_fallthru
      _
    // Predicated region
    $region34: #{tpu_custom_call.1} parent=1 // pred_check
      _
    $region35: #{tpu_custom_call.1} parent=1 // pred_check_branch
      %47 = sbr.rel (0) target = $region37
    $region36: #{tpu_custom_call.1} parent=1 // pred_region
      _
    $region37: #{tpu_custom_call.1} parent=1 // pred_fallthru
      _
    // Predicated region
    $region38: #{tpu_custom_call.1} parent=1 // pred_check
      _
    $region39: #{tpu_custom_call.1} parent=1 // pred_check_branch
      %49 = sbr.rel (0) target = $region41
    $region40: #{tpu_custom_call.1} parent=1 // pred_region
      _
    $region41: #{tpu_custom_call.1} parent=1 // pred_fallthru
      _
    // Predicated region
    $region42: #{tpu_custom_call.1} parent=1 // pred_check
      _
    $region43: #{tpu_custom_call.1} parent=1 // pred_check_branch
      %51 = sbr.rel (0) target = $region45
    $region44: #{tpu_custom_call.1} parent=1 // pred_region
      _
    $region45: #{tpu_custom_call.1} parent=1 // pred_fallthru
      _
    // Predicated region
    $region46: #{tpu_custom_call.1} parent=1 // pred_check
      _
    $region47: #{tpu_custom_call.1} parent=1 // pred_check_branch
      %53 = sbr.rel (0) target = $region49
    $region48: #{tpu_custom_call.1} parent=1 // pred_region
      _
    $region49: #{tpu_custom_call.1} parent=1 // pred_fallthru
      _
    // Predicated region
    $region50: #{tpu_custom_call.1} parent=1 // pred_check
      _
    $region51: #{tpu_custom_call.1} parent=1 // pred_check_branch
      %55 = sbr.rel (0) target = $region53
    $region52: #{tpu_custom_call.1} parent=1 // pred_region
      _
    $region53: #{tpu_custom_call.1} parent=1 // pred_fallthru
      _
    // Predicated region
    $region54: #{tpu_custom_call.1} parent=1 // pred_check
      _
    $region55: #{tpu_custom_call.1} parent=1 // pred_check_branch
      %57 = sbr.rel (0) target = $region57
    $region56: #{tpu_custom_call.1} parent=1 // pred_region
      _
    $region57: #{tpu_custom_call.1} parent=1 // pred_fallthru
      _
    // Predicated region
    $region58: #{tpu_custom_call.1} parent=1 // pred_check
      _
    $region59: #{tpu_custom_call.1} parent=1 // pred_check_branch
      %59 = sbr.rel (0) target = $region61
    $region60: #{tpu_custom_call.1} parent=1 // pred_region
      _
    $region61: #{tpu_custom_call.1} parent=1 // pred_fallthru
      _
    // Predicated region
    $region62: #{tpu_custom_call.1} parent=1 // pred_check
      _
    $region63: #{tpu_custom_call.1} parent=1 // pred_check_branch
      %61 = sbr.rel (0) target = $region65
    $region64: #{tpu_custom_call.1} parent=1 // pred_region
      _
    $region65: #{tpu_custom_call.1} parent=1 // pred_fallthru
      _
    // Predicated region
    $region66: #{tpu_custom_call.1} parent=1 // pred_check
      _
    $region67: #{tpu_custom_call.1} parent=1 // pred_check_branch
      %63 = sbr.rel (0) target = $region69
    $region68: #{tpu_custom_call.1} parent=1 // pred_region
      _
    $region69: #{tpu_custom_call.1} parent=1 // pred_fallthru
      _
    // Predicated region
    $region70: #{tpu_custom_call.1} parent=1 // pred_check
      _
    $region71: #{tpu_custom_call.1} parent=1 // pred_check_branch
      %65 = sbr.rel (0) target = $region73
    $region72: #{tpu_custom_call.1} parent=1 // pred_region
      _
    $region73: #{tpu_custom_call.1} parent=1 // pred_fallthru
      _
    // Predicated region
    $region74: #{tpu_custom_call.1} parent=1 // pred_check
      _
    $region75: #{tpu_custom_call.1} parent=1 // pred_check_branch
      %67 = sbr.rel (0) target = $region77
    $region76: #{tpu_custom_call.1} parent=1 // pred_region
      _
    $region77: #{tpu_custom_call.1} parent=1 // pred_fallthru
      _
    // Predicated region
    $region78: #{tpu_custom_call.1} parent=1 // pred_check
      _
    $region79: #{tpu_custom_call.1} parent=1 // pred_check_branch
      %69 = sbr.rel (0) target = $region81
    $region80: #{tpu_custom_call.1} parent=1 // pred_region
      _
    $region81: #{tpu_custom_call.1} parent=1 // pred_fallthru
      _
    // Predicated region
    $region82: #{tpu_custom_call.1} parent=1 // pred_check
      _
    $region83: #{tpu_custom_call.1} parent=1 // pred_check_branch
      %71 = sbr.rel (0) target = $region85
    $region84: #{tpu_custom_call.1} parent=1 // pred_region
      _
    $region85: #{tpu_custom_call.1} parent=1 // pred_fallthru
      _
    // Predicated region
    $region86: #{tpu_custom_call.1} parent=1 // pred_check
      _
    $region87: #{tpu_custom_call.1} parent=1 // pred_check_branch
      %73 = sbr.rel (0) target = $region89
    $region88: #{tpu_custom_call.1} parent=1 // pred_region
      _
    $region89: #{tpu_custom_call.1} parent=1 // pred_fallthru
      _
    // Predicated region
    $region90: #{tpu_custom_call.1} parent=1 // pred_check
      _
    $region91: #{tpu_custom_call.1} parent=1 // pred_check_branch
      %75 = sbr.rel (0) target = $region93
    $region92: #{tpu_custom_call.1} parent=1 // pred_region
      _
    $region93: #{tpu_custom_call.1} parent=1 // pred_fallthru
      _
    // Predicated region
    $region94: #{tpu_custom_call.1} parent=1 // pred_check
      _
    $region95: #{tpu_custom_call.1} parent=1 // pred_check_branch
      %77 = sbr.rel (0) target = $region97
    $region96: #{tpu_custom_call.1} parent=1 // pred_region
      _
    $region97: #{tpu_custom_call.1} parent=1 // pred_fallthru
      _
    %v79 = vld [vmem:[%s1] sm:$0xff]
    %v80 = vld [vmem:[%s1 + $0x8] sm:$0xff]
    %v81 = vld [vmem:[%s0] sm:$0xff]
    %v82 = vld [vmem:[%s0 + $0x8] sm:$0xff]
    %v83 = vld [vmem:[%s2] sm:$0xf]
    %v84 = vld [vmem:[%s2 + $0x4] sm:$0xf]
    %v85 = vld [vmem:[%s3] sm:$0x3]
    %v86 = vld [vmem:[%s4] sm:$0x1]
    %v87 = vld [vmem:[%s5] sm:$0x1]
    %v88 = vld [vmem:[%s6] sm:$0xf]
    %v89 = vld [vmem:[%s6 + $0x4] sm:$0xf]
    %v90 = vld [vmem:[%s6 + $0x8] sm:$0xf]
    %v91 = vld [vmem:[%s6 + $0xc] sm:$0xf]
    %v92 = vld [vmem:[%s7] sm:$0x1]
    %v93 = vld [vmem:[%s8] sm:$0xf]
    %v94 = vld [vmem:[%s8 + $0x4] sm:$0xf]
    %v95 = vld [vmem:[%s8 + $0x8] sm:$0xf]
    %v96 = vld [vmem:[%s8 + $0xc] sm:$0xf]
    %v97 = vld [vmem:[%s8 + $0x10] sm:$0xf]
    %v98 = vld [vmem:[%s8 + $0x14] sm:$0xf]
    %v99 = vld [vmem:[%s8 + $0x18] sm:$0xf]
    %v100 = vld [vmem:[%s8 + $0x1c] sm:$0xf]
    %v101 = vld [vmem:[%s8 + $0x20] sm:$0xf]
    %v102 = vld [vmem:[%s8 + $0x24] sm:$0xf]
    %v103 = vld [vmem:[%s8 + $0x28] sm:$0xf]
    %v104 = vld [vmem:[%s8 + $0x2c] sm:$0xf]
    %v105 = vld [vmem:[%s8 + $0x30] sm:$0xf]
    %v106 = vld [vmem:[%s8 + $0x34] sm:$0xf]
    %v107 = vld [vmem:[%s8 + $0x38] sm:$0xf]
    %v108 = vld [vmem:[%s8 + $0x3c] sm:$0xf]
    %v109 = vld [vmem:[%s9] sm:$0x1]
    %v110 = vld [vmem:[%s10] sm:$0x1]
    %v111 = vld [vmem:[%s11] sm:$0x1]
    %v112 = vpack.c.bf16 %v82, %v81
    %v115 = vunpack.c.l.b16 %v83
    %v116 = vunpack.c.l.b16 %v84
    %v117 = vpack.c.b16 %v116, %v115
    %vm119 = vcmask 130048
    %v121 = vsel %vm119, %v112, 0
    %123 = vmatprep.subr.bf16.mxu0 0
    %124 = vmatpush1.bf16.msra.mxu0 0
    %125 = vmatprep.subr.bf16.mxu0 0
    %126 = vmatpush1.bf16.msra.mxu0 0
    %127 = vmatprep.subr.bf16.mxu0 0
    %128 = vmatpush1.bf16.msra.mxu0 0
    %129 = vmatprep.subr.bf16.mxu0 0
    %130 = vmatpush1.bf16.msra.mxu0 0
    %131 = vmatprep.subr.bf16.mxu0 0
    %132 = vmatpush1.bf16.msra.mxu0 0
    %133 = vmatprep.subr.bf16.mxu0 0
    %134 = vmatpush1.bf16.msra.mxu0 0
    %135 = vmatprep.subr.bf16.mxu0 0
    %136 = vmatpush1.bf16.msra.mxu0 0
    %137 = vmatprep.subr.bf16.mxu0 0
    %138 = vmatpush1.bf16.msra.mxu0 %v117
    %139 = vmatprep.subr.bf16.mxu0 0
    %140 = vmatpush2.bf16.msra.mxu0 0
    %141 = vmatprep.subr.bf16.mxu0 0
    %142 = vmatpush2.bf16.msra.mxu0 0
    %143 = vmatprep.subr.bf16.mxu0 0
    %144 = vmatpush2.bf16.msra.mxu0 0
    %145 = vmatprep.subr.bf16.mxu0 0
    %146 = vmatpush2.bf16.msra.mxu0 0
    %147 = vmatprep.subr.bf16.mxu0 0
    %148 = vmatpush2.bf16.msra.mxu0 0
    %149 = vmatprep.subr.bf16.mxu0 0
    %150 = vmatpush2.bf16.msra.mxu0 0
    %151 = vmatprep.subr.bf16.mxu0 0
    %152 = vmatpush2.bf16.msra.mxu0 0
    %153 = vmatprep.subr.bf16.mxu0 0
    %154 = vmatpush2.bf16.msra.mxu0 0
    %155 = vmatprep.mubr.bf16.mxu0 0
    %156 = vmatmul.mubr.bf16.gmra.mxu0 %v121
    %v157 = vpop.f32.mrf.mxu0
    %v158 = vadd.f32 0.0, %v157
    %v159 = vpop.f32.mrf.mxu0
    %v160 = vpop.f32.mrf.mxu0
    %v161 = vadd.f32 0.0, %v160
    %v162 = vpop.f32.mrf.mxu0
    %163 = vdwg.mxu0
    %v165 = vsel %vm119, %v85, 0
    %167 = vmatprep.subr.bf16.mxu0 0
    %168 = vmatpush1.bf16.xpose.msra.mxu0 0
    %169 = vmatprep.subr.bf16.mxu0 0
    %170 = vmatpush1.bf16.xpose.msra.mxu0 0
    %171 = vmatprep.subr.bf16.mxu0 0
    %172 = vmatpush1.bf16.xpose.msra.mxu0 0
    %173 = vmatprep.subr.bf16.mxu0 0
    %174 = vmatpush1.bf16.xpose.msra.mxu0 0
    %175 = vmatprep.subr.bf16.mxu0 0
    %176 = vmatpush1.bf16.xpose.msra.mxu0 0
    %177 = vmatprep.subr.bf16.mxu0 0
    %178 = vmatpush1.bf16.xpose.msra.mxu0 0
    %179 = vmatprep.subr.bf16.mxu0 0
    %180 = vmatpush1.bf16.xpose.msra.mxu0 0
    %181 = vmatprep.subr.bf16.mxu0 0
    %182 = vmatpush1.bf16.xpose.msra.mxu0 %v121
    %183 = vmatprep.subr.bf16.mxu0 0
    %184 = vmatpush2.bf16.xpose.msra.mxu0 0
    %185 = vmatprep.subr.bf16.mxu0 0
    %186 = vmatpush2.bf16.xpose.msra.mxu0 0
    %187 = vmatprep.subr.bf16.mxu0 0
    %188 = vmatpush2.bf16.xpose.msra.mxu0 0
    %189 = vmatprep.subr.bf16.mxu0 0
    %190 = vmatpush2.bf16.xpose.msra.mxu0 0
    %191 = vmatprep.subr.bf16.mxu0 0
    %192 = vmatpush2.bf16.xpose.msra.mxu0 0
    %193 = vmatprep.subr.bf16.mxu0 0
    %194 = vmatpush2.bf16.xpose.msra.mxu0 0
    %195 = vmatprep.subr.bf16.mxu0 0
    %196 = vmatpush2.bf16.xpose.msra.mxu0 0
    %197 = vmatprep.subr.bf16.mxu0 0
    %198 = vmatpush2.bf16.xpose.msra.mxu0 0
    %199 = vmatprep.mubr.bf16.mxu0 0
    %200 = vmatmul.mubr.bf16.gmra.mxu0 %v165
    %v201 = vpop.f32.mrf.mxu0
    %v202 = vadd.f32 0.0, %v201
    %v203 = vpop.f32.mrf.mxu0
    %v204 = vpop.f32.mrf.mxu0
    %v205 = vpop.f32.mrf.mxu0
    %206 = vdwg.mxu0
    %208 = vset.pattern.permute.xlu0 32
    %209 = vperm.xlu0 %208, %v158
    %v210 = vpop.permute.xlu0 %209
    %213 = vset.pattern.permute.xlu0 32
    %214 = vperm.xlu0 %213, %v161
    %v215 = vpop.permute.xlu0 %214
    %v217 = vlaneseq
    %v218 = vshrl.u32 %v217, 7
    %v219 = vsub.s32 0, %v218
    %v220 = vrot.slane %v202, %v219
    %v221 = vadd.f32 %v210, %v220
    %v222 = vadd.f32 %v215, %v220
    %v223 = vmul.f32 %v221, 0.2
    %v224 = vmul.f32 %v222, 0.2
    %v225 = vmax.f32 %v221, %v223
    %v226 = vmax.f32 %v222, %v224
    %v227 = vadd.f32 %v225, %v79
    %v228 = vadd.f32 %v226, %v80
    %v229 = vsel %vm119, %v227, -inf
    %230 = vmax.xlane.f32.xlu0 %v229
    %v231 = vpop.xlane.xlu0 %230
    %v232 = vsel %vm119, %v228, -inf
    %233 = vmax.xlane.f32.xlu0 %v232
    %v234 = vpop.xlane.xlu0 %233
    %v235 = vsub.f32 %v227, %v231
    %v236 = vsub.f32 %v228, %v234
    %v237 = vmul.f32 %v235, 1.442695
    %v238 = vpow.pop %v237
    %v239 = vmul.f32 %v236, 1.442695
    %v240 = vpow.pop %v239
    %v241 = vsel %vm119, %v238, 0.0
    %242 = vadd.xlane.f32.xlu0 %v241
    %v243 = vpop.xlane.xlu0 %242
    %v244 = vsel %vm119, %v240, 0.0
    %245 = vadd.xlane.f32.xlu0 %v244
    %v246 = vpop.xlane.xlu0 %245
    %v247 = vadd.f32 %v243, 1e-16
    %v248 = vadd.f32 %v246, 1e-16
    %v249 = vrcp.pop %v247
    %v250 = vrcp.pop %v248
    %v251 = vmul.f32 %v238, %v249
    %v252 = vmul.f32 %v240, %v250
    %v253 = vmul.f32 %v251, 0.85
    %v254 = vmul.f32 %v252, 0.85
    %v255 = vpack.c.bf16 %v254, %v253
    %v256 = vmul.f32 %v158, 0.15
    %v257 = vmul.f32 %v161, 0.15
    %v258 = vpack.c.bf16 %v161, %v158
    %v260 = vsel %vm119, %v255, 0
    %262 = vmatprep.subr.bf16.mxu0 0
    %263 = vmatpush1.bf16.msra.mxu0 0
    %264 = vmatprep.subr.bf16.mxu0 0
    %265 = vmatpush1.bf16.msra.mxu0 0
    %266 = vmatprep.subr.bf16.mxu0 0
    %267 = vmatpush1.bf16.msra.mxu0 0
    %268 = vmatprep.subr.bf16.mxu0 0
    %269 = vmatpush1.bf16.msra.mxu0 0
    %270 = vmatprep.subr.bf16.mxu0 0
    %271 = vmatpush1.bf16.msra.mxu0 0
    %272 = vmatprep.subr.bf16.mxu0 0
    %273 = vmatpush1.bf16.msra.mxu0 0
    %274 = vmatprep.subr.bf16.mxu0 0
    %275 = vmatpush1.bf16.msra.mxu0 0
    %276 = vmatprep.subr.bf16.mxu0 0
    %277 = vmatpush1.bf16.msra.mxu0 %v258
    %278 = vmatprep.subr.bf16.mxu0 0
    %279 = vmatpush2.bf16.msra.mxu0 0
    %280 = vmatprep.subr.bf16.mxu0 0
    %281 = vmatpush2.bf16.msra.mxu0 0
    %282 = vmatprep.subr.bf16.mxu0 0
    %283 = vmatpush2.bf16.msra.mxu0 0
    %284 = vmatprep.subr.bf16.mxu0 0
    %285 = vmatpush2.bf16.msra.mxu0 0
    %286 = vmatprep.subr.bf16.mxu0 0
    %287 = vmatpush2.bf16.msra.mxu0 0
    %288 = vmatprep.subr.bf16.mxu0 0
    %289 = vmatpush2.bf16.msra.mxu0 0
    %290 = vmatprep.subr.bf16.mxu0 0
    %291 = vmatpush2.bf16.msra.mxu0 0
    %292 = vmatprep.subr.bf16.mxu0 0
    %293 = vmatpush2.bf16.msra.mxu0 0
    %294 = vmatprep.mubr.bf16.mxu0 0
    %295 = vmatmul.mubr.bf16.gmra.mxu0 %v260
    %v296 = vpop.f32.mrf.mxu0
    %v297 = vadd.f32 %v256, %v296
    %v298 = vpop.f32.mrf.mxu0
    %v299 = vpop.f32.mrf.mxu0
    %v300 = vadd.f32 %v257, %v299
    %v301 = vpop.f32.mrf.mxu0
    %302 = vdwg.mxu0
    %v303 = vpack.c.bf16 %v300, %v297
    %304 = vmatprep.subr.bf16.mxu0 0
    %305 = vmatpush1.bf16.msra.mxu0 0
    %306 = vmatprep.subr.bf16.mxu0 0
    %307 = vmatpush1.bf16.msra.mxu0 0
    %308 = vmatprep.subr.bf16.mxu0 0
    %309 = vmatpush1.bf16.msra.mxu0 0
    %310 = vmatprep.subr.bf16.mxu0 0
    %311 = vmatpush1.bf16.msra.mxu0 0
    %312 = vmatprep.subr.bf16.mxu0 0
    %313 = vmatpush1.bf16.msra.mxu0 0
    %314 = vmatprep.subr.bf16.mxu0 0
    %315 = vmatpush1.bf16.msra.mxu0 0
    %316 = vmatprep.subr.bf16.mxu0 0
    %317 = vmatpush1.bf16.msra.mxu0 0
    %318 = vmatprep.subr.bf16.mxu0 0
    %319 = vmatpush1.bf16.msra.mxu0 %v303
    %320 = vmatprep.subr.bf16.mxu0 0
    %321 = vmatpush2.bf16.msra.mxu0 0
    %322 = vmatprep.subr.bf16.mxu0 0
    %323 = vmatpush2.bf16.msra.mxu0 0
    %324 = vmatprep.subr.bf16.mxu0 0
    %325 = vmatpush2.bf16.msra.mxu0 0
    %326 = vmatprep.subr.bf16.mxu0 0
    %327 = vmatpush2.bf16.msra.mxu0 0
    %328 = vmatprep.subr.bf16.mxu0 0
    %329 = vmatpush2.bf16.msra.mxu0 0
    %330 = vmatprep.subr.bf16.mxu0 0
    %331 = vmatpush2.bf16.msra.mxu0 0
    %332 = vmatprep.subr.bf16.mxu0 0
    %333 = vmatpush2.bf16.msra.mxu0 0
    %334 = vmatprep.subr.bf16.mxu0 0
    %335 = vmatpush2.bf16.msra.mxu0 0
    %336 = vmatprep.mubr.bf16.mxu0 0
    %337 = vmatmul.mubr.bf16.gmra.mxu0 %v260
    %v338 = vpop.f32.mrf.mxu0
    %v339 = vadd.f32 %v256, %v338
    %v340 = vpop.f32.mrf.mxu0
    %v341 = vpop.f32.mrf.mxu0
    %v342 = vadd.f32 %v257, %v341
    %v343 = vpop.f32.mrf.mxu0
    %344 = vdwg.mxu0
    %v345 = vpack.c.bf16 %v342, %v339
    %346 = vmatprep.subr.bf16.mxu0 0
    %347 = vmatpush1.bf16.msra.mxu0 0
    %348 = vmatprep.subr.bf16.mxu0 0
    %349 = vmatpush1.bf16.msra.mxu0 0
    %350 = vmatprep.subr.bf16.mxu0 0
    %351 = vmatpush1.bf16.msra.mxu0 0
    %352 = vmatprep.subr.bf16.mxu0 0
    %353 = vmatpush1.bf16.msra.mxu0 0
    %354 = vmatprep.subr.bf16.mxu0 0
    %355 = vmatpush1.bf16.msra.mxu0 0
    %356 = vmatprep.subr.bf16.mxu0 0
    %357 = vmatpush1.bf16.msra.mxu0 0
    %358 = vmatprep.subr.bf16.mxu0 0
    %359 = vmatpush1.bf16.msra.mxu0 0
    %360 = vmatprep.subr.bf16.mxu0 0
    %361 = vmatpush1.bf16.msra.mxu0 %v345
    %362 = vmatprep.subr.bf16.mxu0 0
    %363 = vmatpush2.bf16.msra.mxu0 0
    %364 = vmatprep.subr.bf16.mxu0 0
    %365 = vmatpush2.bf16.msra.mxu0 0
    %366 = vmatprep.subr.bf16.mxu0 0
    %367 = vmatpush2.bf16.msra.mxu0 0
    %368 = vmatprep.subr.bf16.mxu0 0
    %369 = vmatpush2.bf16.msra.mxu0 0
    %370 = vmatprep.subr.bf16.mxu0 0
    %371 = vmatpush2.bf16.msra.mxu0 0
    %372 = vmatprep.subr.bf16.mxu0 0
    %373 = vmatpush2.bf16.msra.mxu0 0
    %374 = vmatprep.subr.bf16.mxu0 0
    %375 = vmatpush2.bf16.msra.mxu0 0
    %376 = vmatprep.subr.bf16.mxu0 0
    %377 = vmatpush2.bf16.msra.mxu0 0
    %378 = vmatprep.mubr.bf16.mxu0 0
    %379 = vmatmul.mubr.bf16.gmra.mxu0 %v260
    %v380 = vpop.f32.mrf.mxu0
    %v381 = vadd.f32 %v256, %v380
    %v382 = vpop.f32.mrf.mxu0
    %v383 = vpop.f32.mrf.mxu0
    %v384 = vadd.f32 %v257, %v383
    %v385 = vpop.f32.mrf.mxu0
    %386 = vdwg.mxu0
    %387 = vset.pattern.permute.xlu0 33
    %388 = vperm.xlu0 %387, %v158
    %v389 = vpop.permute.xlu0 %388
    %391 = vset.pattern.permute.xlu0 33
    %392 = vperm.xlu0 %391, %v161
    %v393 = vpop.permute.xlu0 %392
    %v395 = vlaneseq
    %v396 = vshrl.u32 %v395, 7
    %v397 = vsub.s32 1, %v396
    %v398 = vrot.slane %v202, %v397
    %v399 = vadd.f32 %v389, %v398
    %v400 = vadd.f32 %v393, %v398
    %v401 = vmul.f32 %v399, 0.2
    %v402 = vmul.f32 %v400, 0.2
    %v403 = vmax.f32 %v399, %v401
    %v404 = vmax.f32 %v400, %v402
    %v405 = vadd.f32 %v403, %v79
    %v406 = vadd.f32 %v404, %v80
    %v407 = vsel %vm119, %v405, -inf
    %408 = vmax.xlane.f32.xlu0 %v407
    %v409 = vpop.xlane.xlu0 %408
    %v410 = vsel %vm119, %v406, -inf
    %411 = vmax.xlane.f32.xlu0 %v410
    %v412 = vpop.xlane.xlu0 %411
    %v413 = vsub.f32 %v405, %v409
    %v414 = vsub.f32 %v406, %v412
    %v415 = vmul.f32 %v413, 1.442695
    %v416 = vpow.pop %v415
    %v417 = vmul.f32 %v414, 1.442695
    %v418 = vpow.pop %v417
    %v419 = vsel %vm119, %v416, 0.0
    %420 = vadd.xlane.f32.xlu0 %v419
    %v421 = vpop.xlane.xlu0 %420
    %v422 = vsel %vm119, %v418, 0.0
    %423 = vadd.xlane.f32.xlu0 %v422
    %v424 = vpop.xlane.xlu0 %423
    %v425 = vadd.f32 %v421, 1e-16
    %v426 = vadd.f32 %v424, 1e-16
    %v427 = vrcp.pop %v425
    %v428 = vrcp.pop %v426
    %v429 = vmul.f32 %v416, %v427
    %v430 = vmul.f32 %v418, %v428
    %v431 = vmul.f32 %v429, 0.85
    %v432 = vmul.f32 %v430, 0.85
    %v433 = vpack.c.bf16 %v432, %v431
    %435 = vrot.lane.b32.xlu0 %v258, 120
    %v436 = vpop.permute.xlu0 %435
    %440 = vrot.lane.b32.xlu0 %v256, 120
    %v441 = vpop.permute.xlu0 %440
    %442 = vrot.lane.b32.xlu0 %v257, 120
    %v443 = vpop.permute.xlu0 %442
    %v447 = vsel %vm119, %v433, 0
    %449 = vmatprep.subr.bf16.mxu0 0
    %450 = vmatpush1.bf16.msra.mxu0 0
    %451 = vmatprep.subr.bf16.mxu0 0
    %452 = vmatpush1.bf16.msra.mxu0 0
    %453 = vmatprep.subr.bf16.mxu0 0
    %454 = vmatpush1.bf16.msra.mxu0 0
    %455 = vmatprep.subr.bf16.mxu0 0
    %456 = vmatpush1.bf16.msra.mxu0 0
    %457 = vmatprep.subr.bf16.mxu0 0
    %458 = vmatpush1.bf16.msra.mxu0 0
    %459 = vmatprep.subr.bf16.mxu0 0
    %460 = vmatpush1.bf16.msra.mxu0 0
    %461 = vmatprep.subr.bf16.mxu0 0
    %462 = vmatpush1.bf16.msra.mxu0 0
    %463 = vmatprep.subr.bf16.mxu0 0
    %464 = vmatpush1.bf16.msra.mxu0 %v436
    %465 = vmatprep.subr.bf16.mxu0 0
    %466 = vmatpush2.bf16.msra.mxu0 0
    %467 = vmatprep.subr.bf16.mxu0 0
    %468 = vmatpush2.bf16.msra.mxu0 0
    %469 = vmatprep.subr.bf16.mxu0 0
    %470 = vmatpush2.bf16.msra.mxu0 0
    %471 = vmatprep.subr.bf16.mxu0 0
    %472 = vmatpush2.bf16.msra.mxu0 0
    %473 = vmatprep.subr.bf16.mxu0 0
    %474 = vmatpush2.bf16.msra.mxu0 0
    %475 = vmatprep.subr.bf16.mxu0 0
    %476 = vmatpush2.bf16.msra.mxu0 0
    %477 = vmatprep.subr.bf16.mxu0 0
    %478 = vmatpush2.bf16.msra.mxu0 0
    %479 = vmatprep.subr.bf16.mxu0 0
    %480 = vmatpush2.bf16.msra.mxu0 0
    %481 = vmatprep.mubr.bf16.mxu0 0
    %482 = vmatmul.mubr.bf16.gmra.mxu0 %v447
    %v483 = vpop.f32.mrf.mxu0
    %v484 = vadd.f32 %v441, %v483
    %v485 = vpop.f32.mrf.mxu0
    %v486 = vpop.f32.mrf.mxu0
    %v487 = vadd.f32 %v443, %v486
    %v488 = vpop.f32.mrf.mxu0
    %489 = vdwg.mxu0
    %v490 = vpack.c.bf16 %v487, %v484
    %491 = vmatprep.subr.bf16.mxu0 0
    %492 = vmatpush1.bf16.msra.mxu0 0
    %493 = vmatprep.subr.bf16.mxu0 0
    %494 = vmatpush1.bf16.msra.mxu0 0
    %495 = vmatprep.subr.bf16.mxu0 0
    %496 = vmatpush1.bf16.msra.mxu0 0
    %497 = vmatprep.subr.bf16.mxu0 0
    %498 = vmatpush1.bf16.msra.mxu0 0
    %499 = vmatprep.subr.bf16.mxu0 0
    %500 = vmatpush1.bf16.msra.mxu0 0
    %501 = vmatprep.subr.bf16.mxu0 0
    %502 = vmatpush1.bf16.msra.mxu0 0
    %503 = vmatprep.subr.bf16.mxu0 0
    %504 = vmatpush1.bf16.msra.mxu0 0
    %505 = vmatprep.subr.bf16.mxu0 0
    %506 = vmatpush1.bf16.msra.mxu0 %v490
    %507 = vmatprep.subr.bf16.mxu0 0
    %508 = vmatpush2.bf16.msra.mxu0 0
    %509 = vmatprep.subr.bf16.mxu0 0
    %510 = vmatpush2.bf16.msra.mxu0 0
    %511 = vmatprep.subr.bf16.mxu0 0
    %512 = vmatpush2.bf16.msra.mxu0 0
    %513 = vmatprep.subr.bf16.mxu0 0
    %514 = vmatpush2.bf16.msra.mxu0 0
    %515 = vmatprep.subr.bf16.mxu0 0
    %516 = vmatpush2.bf16.msra.mxu0 0
    %517 = vmatprep.subr.bf16.mxu0 0
    %518 = vmatpush2.bf16.msra.mxu0 0
    %519 = vmatprep.subr.bf16.mxu0 0
    %520 = vmatpush2.bf16.msra.mxu0 0
    %521 = vmatprep.subr.bf16.mxu0 0
    %522 = vmatpush2.bf16.msra.mxu0 0
    %523 = vmatprep.mubr.bf16.mxu0 0
    %524 = vmatmul.mubr.bf16.gmra.mxu0 %v447
    %v525 = vpop.f32.mrf.mxu0
    %v526 = vadd.f32 %v441, %v525
    %v527 = vpop.f32.mrf.mxu0
    %v528 = vpop.f32.mrf.mxu0
    %v529 = vadd.f32 %v443, %v528
    %v530 = vpop.f32.mrf.mxu0
    %531 = vdwg.mxu0
    %v532 = vpack.c.bf16 %v529, %v526
    %533 = vmatprep.subr.bf16.mxu0 0
    %534 = vmatpush1.bf16.msra.mxu0 0
    %535 = vmatprep.subr.bf16.mxu0 0
    %536 = vmatpush1.bf16.msra.mxu0 0
    %537 = vmatprep.subr.bf16.mxu0 0
    %538 = vmatpush1.bf16.msra.mxu0 0
    %539 = vmatprep.subr.bf16.mxu0 0
    %540 = vmatpush1.bf16.msra.mxu0 0
    %541 = vmatprep.subr.bf16.mxu0 0
    %542 = vmatpush1.bf16.msra.mxu0 0
    %543 = vmatprep.subr.bf16.mxu0 0
    %544 = vmatpush1.bf16.msra.mxu0 0
    %545 = vmatprep.subr.bf16.mxu0 0
    %546 = vmatpush1.bf16.msra.mxu0 0
    %547 = vmatprep.subr.bf16.mxu0 0
    %548 = vmatpush1.bf16.msra.mxu0 %v532
    %549 = vmatprep.subr.bf16.mxu0 0
    %550 = vmatpush2.bf16.msra.mxu0 0
    %551 = vmatprep.subr.bf16.mxu0 0
    %552 = vmatpush2.bf16.msra.mxu0 0
    %553 = vmatprep.subr.bf16.mxu0 0
    %554 = vmatpush2.bf16.msra.mxu0 0
    %555 = vmatprep.subr.bf16.mxu0 0
    %556 = vmatpush2.bf16.msra.mxu0 0
    %557 = vmatprep.subr.bf16.mxu0 0
    %558 = vmatpush2.bf16.msra.mxu0 0
    %559 = vmatprep.subr.bf16.mxu0 0
    %560 = vmatpush2.bf16.msra.mxu0 0
    %561 = vmatprep.subr.bf16.mxu0 0
    %562 = vmatpush2.bf16.msra.mxu0 0
    %563 = vmatprep.subr.bf16.mxu0 0
    %564 = vmatpush2.bf16.msra.mxu0 0
    %565 = vmatprep.mubr.bf16.mxu0 0
    %566 = vmatmul.mubr.bf16.gmra.mxu0 %v447
    %v567 = vpop.f32.mrf.mxu0
    %v568 = vadd.f32 %v441, %v567
    %v569 = vpop.f32.mrf.mxu0
    %v570 = vpop.f32.mrf.mxu0
    %v571 = vadd.f32 %v443, %v570
    %v572 = vpop.f32.mrf.mxu0
    %573 = vdwg.mxu0
    %574 = vset.pattern.permute.xlu0 34
    %575 = vperm.xlu0 %574, %v158
    %v576 = vpop.permute.xlu0 %575
    %578 = vset.pattern.permute.xlu0 34
    %579 = vperm.xlu0 %578, %v161
    %v580 = vpop.permute.xlu0 %579
    %v582 = vlaneseq
    %v583 = vshrl.u32 %v582, 7
    %v584 = vsub.s32 2, %v583
    %v585 = vrot.slane %v202, %v584
    %v586 = vadd.f32 %v576, %v585
    %v587 = vadd.f32 %v580, %v585
    %v588 = vmul.f32 %v586, 0.2
    %v589 = vmul.f32 %v587, 0.2
    %v590 = vmax.f32 %v586, %v588
    %v591 = vmax.f32 %v587, %v589
    %v592 = vadd.f32 %v590, %v79
    %v593 = vadd.f32 %v591, %v80
    %v594 = vsel %vm119, %v592, -inf
    %595 = vmax.xlane.f32.xlu0 %v594
    %v596 = vpop.xlane.xlu0 %595
    %v597 = vsel %vm119, %v593, -inf
    %598 = vmax.xlane.f32.xlu0 %v597
    %v599 = vpop.xlane.xlu0 %598
    %v600 = vsub.f32 %v592, %v596
    %v601 = vsub.f32 %v593, %v599
    %v602 = vmul.f32 %v600, 1.442695
    %v603 = vpow.pop %v602
    %v604 = vmul.f32 %v601, 1.442695
    %v605 = vpow.pop %v604
    %v606 = vsel %vm119, %v603, 0.0
    %607 = vadd.xlane.f32.xlu0 %v606
    %v608 = vpop.xlane.xlu0 %607
    %v609 = vsel %vm119, %v605, 0.0
    %610 = vadd.xlane.f32.xlu0 %v609
    %v611 = vpop.xlane.xlu0 %610
    %v612 = vadd.f32 %v608, 1e-16
    %v613 = vadd.f32 %v611, 1e-16
    %v614 = vrcp.pop %v612
    %v615 = vrcp.pop %v613
    %v616 = vmul.f32 %v603, %v614
    %v617 = vmul.f32 %v605, %v615
    %v618 = vmul.f32 %v616, 0.85
    %v619 = vmul.f32 %v617, 0.85
    %v620 = vpack.c.bf16 %v619, %v618
    %621 = vrot.lane.b32.xlu0 %v258, 112
    %v622 = vpop.permute.xlu0 %621
    %624 = vrot.lane.b32.xlu0 %v256, 112
    %v625 = vpop.permute.xlu0 %624
    %626 = vrot.lane.b32.xlu0 %v257, 112
    %v627 = vpop.permute.xlu0 %626
    %v631 = vsel %vm119, %v620, 0
    %633 = vmatprep.subr.bf16.mxu0 0
    %634 = vmatpush1.bf16.msra.mxu0 0
    %635 = vmatprep.subr.bf16.mxu0 0
    %636 = vmatpush1.bf16.msra.mxu0 0
    %637 = vmatprep.subr.bf16.mxu0 0
    %638 = vmatpush1.bf16.msra.mxu0 0
    %639 = vmatprep.subr.bf16.mxu0 0
    %640 = vmatpush1.bf16.msra.mxu0 0
    %641 = vmatprep.subr.bf16.mxu0 0
    %642 = vmatpush1.bf16.msra.mxu0 0
    %643 = vmatprep.subr.bf16.mxu0 0
    %644 = vmatpush1.bf16.msra.mxu0 0
    %645 = vmatprep.subr.bf16.mxu0 0
    %646 = vmatpush1.bf16.msra.mxu0 0
    %647 = vmatprep.subr.bf16.mxu0 0
    %648 = vmatpush1.bf16.msra.mxu0 %v622
    %649 = vmatprep.subr.bf16.mxu0 0
    %650 = vmatpush2.bf16.msra.mxu0 0
    %651 = vmatprep.subr.bf16.mxu0 0
    %652 = vmatpush2.bf16.msra.mxu0 0
    %653 = vmatprep.subr.bf16.mxu0 0
    %654 = vmatpush2.bf16.msra.mxu0 0
    %655 = vmatprep.subr.bf16.mxu0 0
    %656 = vmatpush2.bf16.msra.mxu0 0
    %657 = vmatprep.subr.bf16.mxu0 0
    %658 = vmatpush2.bf16.msra.mxu0 0
    %659 = vmatprep.subr.bf16.mxu0 0
    %660 = vmatpush2.bf16.msra.mxu0 0
    %661 = vmatprep.subr.bf16.mxu0 0
    %662 = vmatpush2.bf16.msra.mxu0 0
    %663 = vmatprep.subr.bf16.mxu0 0
    %664 = vmatpush2.bf16.msra.mxu0 0
    %665 = vmatprep.mubr.bf16.mxu0 0
    %666 = vmatmul.mubr.bf16.gmra.mxu0 %v631
    %v667 = vpop.f32.mrf.mxu0
    %v668 = vadd.f32 %v625, %v667
    %v669 = vpop.f32.mrf.mxu0
    %v670 = vpop.f32.mrf.mxu0
    %v671 = vadd.f32 %v627, %v670
    %v672 = vpop.f32.mrf.mxu0
    %673 = vdwg.mxu0
    %v674 = vpack.c.bf16 %v671, %v668
    %675 = vmatprep.subr.bf16.mxu0 0
    %676 = vmatpush1.bf16.msra.mxu0 0
    %677 = vmatprep.subr.bf16.mxu0 0
    %678 = vmatpush1.bf16.msra.mxu0 0
    %679 = vmatprep.subr.bf16.mxu0 0
    %680 = vmatpush1.bf16.msra.mxu0 0
    %681 = vmatprep.subr.bf16.mxu0 0
    %682 = vmatpush1.bf16.msra.mxu0 0
    %683 = vmatprep.subr.bf16.mxu0 0
    %684 = vmatpush1.bf16.msra.mxu0 0
    %685 = vmatprep.subr.bf16.mxu0 0
    %686 = vmatpush1.bf16.msra.mxu0 0
    %687 = vmatprep.subr.bf16.mxu0 0
    %688 = vmatpush1.bf16.msra.mxu0 0
    %689 = vmatprep.subr.bf16.mxu0 0
    %690 = vmatpush1.bf16.msra.mxu0 %v674
    %691 = vmatprep.subr.bf16.mxu0 0
    %692 = vmatpush2.bf16.msra.mxu0 0
    %693 = vmatprep.subr.bf16.mxu0 0
    %694 = vmatpush2.bf16.msra.mxu0 0
    %695 = vmatprep.subr.bf16.mxu0 0
    %696 = vmatpush2.bf16.msra.mxu0 0
    %697 = vmatprep.subr.bf16.mxu0 0
    %698 = vmatpush2.bf16.msra.mxu0 0
    %699 = vmatprep.subr.bf16.mxu0 0
    %700 = vmatpush2.bf16.msra.mxu0 0
    %701 = vmatprep.subr.bf16.mxu0 0
    %702 = vmatpush2.bf16.msra.mxu0 0
    %703 = vmatprep.subr.bf16.mxu0 0
    %704 = vmatpush2.bf16.msra.mxu0 0
    %705 = vmatprep.subr.bf16.mxu0 0
    %706 = vmatpush2.bf16.msra.mxu0 0
    %707 = vmatprep.mubr.bf16.mxu0 0
    %708 = vmatmul.mubr.bf16.gmra.mxu0 %v631
    %v709 = vpop.f32.mrf.mxu0
    %v710 = vadd.f32 %v625, %v709
    %v711 = vpop.f32.mrf.mxu0
    %v712 = vpop.f32.mrf.mxu0
    %v713 = vadd.f32 %v627, %v712
    %v714 = vpop.f32.mrf.mxu0
    %715 = vdwg.mxu0
    %v716 = vpack.c.bf16 %v713, %v710
    %717 = vmatprep.subr.bf16.mxu0 0
    %718 = vmatpush1.bf16.msra.mxu0 0
    %719 = vmatprep.subr.bf16.mxu0 0
    %720 = vmatpush1.bf16.msra.mxu0 0
    %721 = vmatprep.subr.bf16.mxu0 0
    %722 = vmatpush1.bf16.msra.mxu0 0
    %723 = vmatprep.subr.bf16.mxu0 0
    %724 = vmatpush1.bf16.msra.mxu0 0
    %725 = vmatprep.subr.bf16.mxu0 0
    %726 = vmatpush1.bf16.msra.mxu0 0
    %727 = vmatprep.subr.bf16.mxu0 0
    %728 = vmatpush1.bf16.msra.mxu0 0
    %729 = vmatprep.subr.bf16.mxu0 0
    %730 = vmatpush1.bf16.msra.mxu0 0
    %731 = vmatprep.subr.bf16.mxu0 0
    %732 = vmatpush1.bf16.msra.mxu0 %v716
    %733 = vmatprep.subr.bf16.mxu0 0
    %734 = vmatpush2.bf16.msra.mxu0 0
    %735 = vmatprep.subr.bf16.mxu0 0
    %736 = vmatpush2.bf16.msra.mxu0 0
    %737 = vmatprep.subr.bf16.mxu0 0
    %738 = vmatpush2.bf16.msra.mxu0 0
    %739 = vmatprep.subr.bf16.mxu0 0
    %740 = vmatpush2.bf16.msra.mxu0 0
    %741 = vmatprep.subr.bf16.mxu0 0
    %742 = vmatpush2.bf16.msra.mxu0 0
    %743 = vmatprep.subr.bf16.mxu0 0
    %744 = vmatpush2.bf16.msra.mxu0 0
    %745 = vmatprep.subr.bf16.mxu0 0
    %746 = vmatpush2.bf16.msra.mxu0 0
    %747 = vmatprep.subr.bf16.mxu0 0
    %748 = vmatpush2.bf16.msra.mxu0 0
    %749 = vmatprep.mubr.bf16.mxu0 0
    %750 = vmatmul.mubr.bf16.gmra.mxu0 %v631
    %v751 = vpop.f32.mrf.mxu0
    %v752 = vadd.f32 %v625, %v751
    %v753 = vpop.f32.mrf.mxu0
    %v754 = vpop.f32.mrf.mxu0
    %v755 = vadd.f32 %v627, %v754
    %v756 = vpop.f32.mrf.mxu0
    %757 = vdwg.mxu0
    %758 = vset.pattern.permute.xlu0 35
    %759 = vperm.xlu0 %758, %v158
    %v760 = vpop.permute.xlu0 %759
    %762 = vset.pattern.permute.xlu0 35
    %763 = vperm.xlu0 %762, %v161
    %v764 = vpop.permute.xlu0 %763
    %v766 = vlaneseq
    %v767 = vshrl.u32 %v766, 7
    %v768 = vsub.s32 3, %v767
    %v769 = vrot.slane %v202, %v768
    %v770 = vadd.f32 %v760, %v769
    %v771 = vadd.f32 %v764, %v769
    %v772 = vmul.f32 %v770, 0.2
    %v773 = vmul.f32 %v771, 0.2
    %v774 = vmax.f32 %v770, %v772
    %v775 = vmax.f32 %v771, %v773
    %v776 = vadd.f32 %v774, %v79
    %v777 = vadd.f32 %v775, %v80
    %v778 = vsel %vm119, %v776, -inf
    %779 = vmax.xlane.f32.xlu0 %v778
    %v780 = vpop.xlane.xlu0 %779
    %v781 = vsel %vm119, %v777, -inf
    %782 = vmax.xlane.f32.xlu0 %v781
    %v783 = vpop.xlane.xlu0 %782
    %v784 = vsub.f32 %v776, %v780
    %v785 = vsub.f32 %v777, %v783
    %v786 = vmul.f32 %v784, 1.442695
    %v787 = vpow.pop %v786
    %v788 = vmul.f32 %v785, 1.442695
    %v789 = vpow.pop %v788
    %v790 = vsel %vm119, %v787, 0.0
    %791 = vadd.xlane.f32.xlu0 %v790
    %v792 = vpop.xlane.xlu0 %791
    %v793 = vsel %vm119, %v789, 0.0
    %794 = vadd.xlane.f32.xlu0 %v793
    %v795 = vpop.xlane.xlu0 %794
    %v796 = vadd.f32 %v792, 1e-16
    %v797 = vadd.f32 %v795, 1e-16
    %v798 = vrcp.pop %v796
    %v799 = vrcp.pop %v797
    %v800 = vmul.f32 %v787, %v798
    %v801 = vmul.f32 %v789, %v799
    %v802 = vmul.f32 %v800, 0.85
    %v803 = vmul.f32 %v801, 0.85
    %v804 = vpack.c.bf16 %v803, %v802
    %805 = vrot.lane.b32.xlu0 %v258, 104
    %v806 = vpop.permute.xlu0 %805
    %808 = vrot.lane.b32.xlu0 %v256, 104
    %v809 = vpop.permute.xlu0 %808
    %810 = vrot.lane.b32.xlu0 %v257, 104
    %v811 = vpop.permute.xlu0 %810
    %v815 = vsel %vm119, %v804, 0
    %817 = vmatprep.subr.bf16.mxu0 0
    %818 = vmatpush1.bf16.msra.mxu0 0
    %819 = vmatprep.subr.bf16.mxu0 0
    %820 = vmatpush1.bf16.msra.mxu0 0
    %821 = vmatprep.subr.bf16.mxu0 0
    %822 = vmatpush1.bf16.msra.mxu0 0
    %823 = vmatprep.subr.bf16.mxu0 0
    %824 = vmatpush1.bf16.msra.mxu0 0
    %825 = vmatprep.subr.bf16.mxu0 0
    %826 = vmatpush1.bf16.msra.mxu0 0
    %827 = vmatprep.subr.bf16.mxu0 0
    %828 = vmatpush1.bf16.msra.mxu0 0
    %829 = vmatprep.subr.bf16.mxu0 0
    %830 = vmatpush1.bf16.msra.mxu0 0
    %831 = vmatprep.subr.bf16.mxu0 0
    %832 = vmatpush1.bf16.msra.mxu0 %v806
    %833 = vmatprep.subr.bf16.mxu0 0
    %834 = vmatpush2.bf16.msra.mxu0 0
    %835 = vmatprep.subr.bf16.mxu0 0
    %836 = vmatpush2.bf16.msra.mxu0 0
    %837 = vmatprep.subr.bf16.mxu0 0
    %838 = vmatpush2.bf16.msra.mxu0 0
    %839 = vmatprep.subr.bf16.mxu0 0
    %840 = vmatpush2.bf16.msra.mxu0 0
    %841 = vmatprep.subr.bf16.mxu0 0
    %842 = vmatpush2.bf16.msra.mxu0 0
    %843 = vmatprep.subr.bf16.mxu0 0
    %844 = vmatpush2.bf16.msra.mxu0 0
    %845 = vmatprep.subr.bf16.mxu0 0
    %846 = vmatpush2.bf16.msra.mxu0 0
    %847 = vmatprep.subr.bf16.mxu0 0
    %848 = vmatpush2.bf16.msra.mxu0 0
    %849 = vmatprep.mubr.bf16.mxu0 0
    %850 = vmatmul.mubr.bf16.gmra.mxu0 %v815
    %v851 = vpop.f32.mrf.mxu0
    %v852 = vadd.f32 %v809, %v851
    %v853 = vpop.f32.mrf.mxu0
    %v854 = vpop.f32.mrf.mxu0
    %v855 = vadd.f32 %v811, %v854
    %v856 = vpop.f32.mrf.mxu0
    %857 = vdwg.mxu0
    %v858 = vpack.c.bf16 %v855, %v852
    %859 = vmatprep.subr.bf16.mxu0 0
    %860 = vmatpush1.bf16.msra.mxu0 0
    %861 = vmatprep.subr.bf16.mxu0 0
    %862 = vmatpush1.bf16.msra.mxu0 0
    %863 = vmatprep.subr.bf16.mxu0 0
    %864 = vmatpush1.bf16.msra.mxu0 0
    %865 = vmatprep.subr.bf16.mxu0 0
    %866 = vmatpush1.bf16.msra.mxu0 0
    %867 = vmatprep.subr.bf16.mxu0 0
    %868 = vmatpush1.bf16.msra.mxu0 0
    %869 = vmatprep.subr.bf16.mxu0 0
    %870 = vmatpush1.bf16.msra.mxu0 0
    %871 = vmatprep.subr.bf16.mxu0 0
    %872 = vmatpush1.bf16.msra.mxu0 0
    %873 = vmatprep.subr.bf16.mxu0 0
    %874 = vmatpush1.bf16.msra.mxu0 %v858
    %875 = vmatprep.subr.bf16.mxu0 0
    %876 = vmatpush2.bf16.msra.mxu0 0
    %877 = vmatprep.subr.bf16.mxu0 0
    %878 = vmatpush2.bf16.msra.mxu0 0
    %879 = vmatprep.subr.bf16.mxu0 0
    %880 = vmatpush2.bf16.msra.mxu0 0
    %881 = vmatprep.subr.bf16.mxu0 0
    %882 = vmatpush2.bf16.msra.mxu0 0
    %883 = vmatprep.subr.bf16.mxu0 0
    %884 = vmatpush2.bf16.msra.mxu0 0
    %885 = vmatprep.subr.bf16.mxu0 0
    %886 = vmatpush2.bf16.msra.mxu0 0
    %887 = vmatprep.subr.bf16.mxu0 0
    %888 = vmatpush2.bf16.msra.mxu0 0
    %889 = vmatprep.subr.bf16.mxu0 0
    %890 = vmatpush2.bf16.msra.mxu0 0
    %891 = vmatprep.mubr.bf16.mxu0 0
    %892 = vmatmul.mubr.bf16.gmra.mxu0 %v815
    %v893 = vpop.f32.mrf.mxu0
    %v894 = vadd.f32 %v809, %v893
    %v895 = vpop.f32.mrf.mxu0
    %v896 = vpop.f32.mrf.mxu0
    %v897 = vadd.f32 %v811, %v896
    %v898 = vpop.f32.mrf.mxu0
    %899 = vdwg.mxu0
    %v900 = vpack.c.bf16 %v897, %v894
    %901 = vmatprep.subr.bf16.mxu0 0
    %902 = vmatpush1.bf16.msra.mxu0 0
    %903 = vmatprep.subr.bf16.mxu0 0
    %904 = vmatpush1.bf16.msra.mxu0 0
    %905 = vmatprep.subr.bf16.mxu0 0
    %906 = vmatpush1.bf16.msra.mxu0 0
    %907 = vmatprep.subr.bf16.mxu0 0
    %908 = vmatpush1.bf16.msra.mxu0 0
    %909 = vmatprep.subr.bf16.mxu0 0
    %910 = vmatpush1.bf16.msra.mxu0 0
    %911 = vmatprep.subr.bf16.mxu0 0
    %912 = vmatpush1.bf16.msra.mxu0 0
    %913 = vmatprep.subr.bf16.mxu0 0
    %914 = vmatpush1.bf16.msra.mxu0 0
    %915 = vmatprep.subr.bf16.mxu0 0
    %916 = vmatpush1.bf16.msra.mxu0 %v900
    %917 = vmatprep.subr.bf16.mxu0 0
    %918 = vmatpush2.bf16.msra.mxu0 0
    %919 = vmatprep.subr.bf16.mxu0 0
    %920 = vmatpush2.bf16.msra.mxu0 0
    %921 = vmatprep.subr.bf16.mxu0 0
    %922 = vmatpush2.bf16.msra.mxu0 0
    %923 = vmatprep.subr.bf16.mxu0 0
    %924 = vmatpush2.bf16.msra.mxu0 0
    %925 = vmatprep.subr.bf16.mxu0 0
    %926 = vmatpush2.bf16.msra.mxu0 0
    %927 = vmatprep.subr.bf16.mxu0 0
    %928 = vmatpush2.bf16.msra.mxu0 0
    %929 = vmatprep.subr.bf16.mxu0 0
    %930 = vmatpush2.bf16.msra.mxu0 0
    %931 = vmatprep.subr.bf16.mxu0 0
    %932 = vmatpush2.bf16.msra.mxu0 0
    %933 = vmatprep.mubr.bf16.mxu0 0
    %934 = vmatmul.mubr.bf16.gmra.mxu0 %v815
    %v935 = vpop.f32.mrf.mxu0
    %v936 = vadd.f32 %v809, %v935
    %v937 = vpop.f32.mrf.mxu0
    %v938 = vpop.f32.mrf.mxu0
    %v939 = vadd.f32 %v811, %v938
    %v940 = vpop.f32.mrf.mxu0
    %941 = vdwg.mxu0
    %944 = vrot.lane.b32.xlu0 %v568, 8
    %v945 = vpop.permute.xlu0 %944
    %946 = vrot.lane.b32.xlu0 %v571, 8
    %v947 = vpop.permute.xlu0 %946
    %952 = vrot.lane.b32.xlu0 %v752, 16
    %v953 = vpop.permute.xlu0 %952
    %954 = vrot.lane.b32.xlu0 %v755, 16
    %v955 = vpop.permute.xlu0 %954
    %960 = vrot.lane.b32.xlu0 %v936, 24
    %v961 = vpop.permute.xlu0 %960
    %962 = vrot.lane.b32.xlu0 %v939, 24
    %v963 = vpop.permute.xlu0 %962
    %vm966 = vcmask 64512
    %v967 = vsel %vm966, %v381, %v945
    %v968 = vsel %vm966, %v384, %v947
    %v969 = vsel %vm119, %v967, %v953
    %v970 = vsel %vm119, %v968, %v955
    %vm971 = vcmask 195584
    %v972 = vsel %vm971, %v969, %v961
    %v973 = vsel %vm971, %v970, %v963
    %974 = vrot.lane.b32.xlu0 %v158, 92
    %v975 = vpop.permute.xlu0 %974
    %976 = vrot.lane.b32.xlu0 %v161, 92
    %v977 = vpop.permute.xlu0 %976
    %v980 = vadd.f32 %v972, %v975
    %v981 = vadd.f32 %v973, %v977
    %vm982 = vcmask 261120
    %v983 = vsel %vm982, %v980, 0.0
    %984 = vadd.xlane.f32.xlu0 %v983
    %v985 = vpop.xlane.xlu0 %984
    %v986 = vsel %vm982, %v981, 0.0
    %987 = vadd.xlane.f32.xlu0 %v986
    %v988 = vpop.xlane.xlu0 %987
    %v989 = vrcp.pop 32.0
    %v990 = vmul.f32 %v985, %v989
    %v991 = vmul.f32 %v988, %v989
    %v992 = vsub.f32 %v980, %v990
    %v993 = vsub.f32 %v981, %v991
    %v994 = vmul.f32 %v992, %v992
    %v995 = vmul.f32 %v993, %v993
    %v996 = vsel %vm982, %v994, 0.0
    %997 = vadd.xlane.f32.xlu0 %v996
    %v998 = vpop.xlane.xlu0 %997
    %v999 = vsel %vm982, %v995, 0.0
    %1000 = vadd.xlane.f32.xlu0 %v999
    %v1001 = vpop.xlane.xlu0 %1000
    %v1002 = vmul.f32 %v998, %v989
    %v1003 = vmul.f32 %v1001, %v989
    %v1004 = vadd.f32 %v1002, 1e-05
    %v1005 = vadd.f32 %v1003, 1e-05
    %v1006 = vrsqrt.pop %v1004
    %v1007 = vrsqrt.pop %v1005
    %v1008 = vmul.f32 %v992, %v1006
    %v1009 = vmul.f32 %v993, %v1007
    %v1011 = vlaneseq
    %v1012 = vshrl.u32 %v1011, 7
    %v1013 = vsub.s32 0, %v1012
    %v1014 = vrot.slane %v86, %v1013
    %v1016 = vmul.f32 %v1008, %v1014
    %v1017 = vmul.f32 %v1009, %v1014
    %v1019 = vlaneseq
    %v1020 = vshrl.u32 %v1019, 7
    %v1021 = vsub.s32 0, %v1020
    %v1022 = vrot.slane %v87, %v1021
    %v1024 = vadd.f32 %v1016, %v1022
    %v1025 = vadd.f32 %v1017, %v1022
    %v1026 = vpack.c.bf16 %v1025, %v1024
    %v1028 = vlaneseq
    %v1029 = vshrl.u32 %v1028, 7
    %v1030 = vsub.s32 0, %v1029
    %v1031 = vrot.slane %v92, %v1030
    %v1037 = vunpack.c.l.b16 %v88
    %v1038 = vunpack.c.l.b16 %v89
    %v1039 = vunpack.c.l.b16 %v90
    %v1040 = vunpack.c.l.b16 %v91
    %v1041 = vpack.c.b16 %v1038, %v1037
    %v1042 = vpack.c.b16 %v1040, %v1039
    %v1046 = vsel %vm982, %v1026, 0
    %1048 = vmatprep.subr.bf16.mxu0 0
    %1049 = vmatpush1.bf16.msra.mxu0 0
    %1050 = vmatprep.subr.bf16.mxu0 0
    %1051 = vmatpush1.bf16.msra.mxu0 0
    %1052 = vmatprep.subr.bf16.mxu0 0
    %1053 = vmatpush1.bf16.msra.mxu0 0
    %1054 = vmatprep.subr.bf16.mxu0 0
    %1055 = vmatpush1.bf16.msra.mxu0 0
    %1056 = vmatprep.subr.bf16.mxu0 0
    %1057 = vmatpush1.bf16.msra.mxu0 0
    %1058 = vmatprep.subr.bf16.mxu0 0
    %1059 = vmatpush1.bf16.msra.mxu0 0
    %1060 = vmatprep.subr.bf16.mxu0 0
    %1061 = vmatpush1.bf16.msra.mxu0 %v1042
    %1062 = vmatprep.subr.bf16.mxu0 0
    %1063 = vmatpush1.bf16.msra.mxu0 %v1041
    %1064 = vmatprep.subr.bf16.mxu0 0
    %1065 = vmatpush2.bf16.msra.mxu0 0
    %1066 = vmatprep.subr.bf16.mxu0 0
    %1067 = vmatpush2.bf16.msra.mxu0 0
    %1068 = vmatprep.subr.bf16.mxu0 0
    %1069 = vmatpush2.bf16.msra.mxu0 0
    %1070 = vmatprep.subr.bf16.mxu0 0
    %1071 = vmatpush2.bf16.msra.mxu0 0
    %1072 = vmatprep.subr.bf16.mxu0 0
    %1073 = vmatpush2.bf16.msra.mxu0 0
    %1074 = vmatprep.subr.bf16.mxu0 0
    %1075 = vmatpush2.bf16.msra.mxu0 0
    %1076 = vmatprep.subr.bf16.mxu0 0
    %1077 = vmatpush2.bf16.msra.mxu0 0
    %1078 = vmatprep.subr.bf16.mxu0 0
    %1079 = vmatpush2.bf16.msra.mxu0 0
    %1080 = vmatprep.mubr.bf16.mxu0 0
    %1081 = vmatmul.mubr.bf16.gmra.mxu0 %v1046
    %v1082 = vpop.f32.mrf.mxu0
    %v1083 = vadd.f32 %v1031, %v1082
    %v1084 = vpop.f32.mrf.mxu0
    %v1085 = vpop.f32.mrf.mxu0
    %v1086 = vadd.f32 %v1031, %v1085
    %v1087 = vpop.f32.mrf.mxu0
    %1088 = vdwg.mxu0
    %v1089 = vmax.f32 %v1083, 0.0
    %v1090 = vmax.f32 %v1086, 0.0
    %v1091 = vpack.c.bf16 %v1090, %v1089
    %v1093 = vlaneseq
    %v1094 = vshrl.u32 %v1093, 7
    %v1095 = vsub.s32 0, %v1094
    %v1096 = vrot.slane %v109, %v1095
    %v1114 = vunpack.c.l.b16 %v93
    %v1115 = vunpack.c.l.b16 %v94
    %v1116 = vunpack.c.l.b16 %v95
    %v1117 = vunpack.c.l.b16 %v96
    %v1118 = vunpack.c.l.b16 %v97
    %v1119 = vunpack.c.l.b16 %v98
    %v1120 = vunpack.c.l.b16 %v99
    %v1121 = vunpack.c.l.b16 %v100
    %v1122 = vunpack.c.l.b16 %v101
    %v1123 = vunpack.c.l.b16 %v102
    %v1124 = vunpack.c.l.b16 %v103
    %v1125 = vunpack.c.l.b16 %v104
    %v1126 = vunpack.c.l.b16 %v105
    %v1127 = vunpack.c.l.b16 %v106
    %v1128 = vunpack.c.l.b16 %v107
    %v1129 = vunpack.c.l.b16 %v108
    %v1130 = vpack.c.b16 %v1115, %v1114
    %v1131 = vpack.c.b16 %v1117, %v1116
    %v1132 = vpack.c.b16 %v1119, %v1118
    %v1133 = vpack.c.b16 %v1121, %v1120
    %v1134 = vpack.c.b16 %v1123, %v1122
    %v1135 = vpack.c.b16 %v1125, %v1124
    %v1136 = vpack.c.b16 %v1127, %v1126
    %v1137 = vpack.c.b16 %v1129, %v1128
    %1146 = vmatprep.subr.bf16.mxu0 0
    %1147 = vmatpush1.bf16.msra.mxu0 %v1137
    %1148 = vmatprep.subr.bf16.mxu0 0
    %1149 = vmatpush1.bf16.msra.mxu0 %v1136
    %1150 = vmatprep.subr.bf16.mxu0 0
    %1151 = vmatpush1.bf16.msra.mxu0 %v1135
    %1152 = vmatprep.subr.bf16.mxu0 0
    %1153 = vmatpush1.bf16.msra.mxu0 %v1134
    %1154 = vmatprep.subr.bf16.mxu0 0
    %1155 = vmatpush1.bf16.msra.mxu0 %v1133
    %1156 = vmatprep.subr.bf16.mxu0 0
    %1157 = vmatpush1.bf16.msra.mxu0 %v1132
    %1158 = vmatprep.subr.bf16.mxu0 0
    %1159 = vmatpush1.bf16.msra.mxu0 %v1131
    %1160 = vmatprep.subr.bf16.mxu0 0
    %1161 = vmatpush1.bf16.msra.mxu0 %v1130
    %1162 = vmatprep.subr.bf16.mxu0 0
    %1163 = vmatpush2.bf16.msra.mxu0 0
    %1164 = vmatprep.subr.bf16.mxu0 0
    %1165 = vmatpush2.bf16.msra.mxu0 0
    %1166 = vmatprep.subr.bf16.mxu0 0
    %1167 = vmatpush2.bf16.msra.mxu0 0
    %1168 = vmatprep.subr.bf16.mxu0 0
    %1169 = vmatpush2.bf16.msra.mxu0 0
    %1170 = vmatprep.subr.bf16.mxu0 0
    %1171 = vmatpush2.bf16.msra.mxu0 0
    %1172 = vmatprep.subr.bf16.mxu0 0
    %1173 = vmatpush2.bf16.msra.mxu0 0
    %1174 = vmatprep.subr.bf16.mxu0 0
    %1175 = vmatpush2.bf16.msra.mxu0 0
    %1176 = vmatprep.subr.bf16.mxu0 0
    %1177 = vmatpush2.bf16.msra.mxu0 0
    %1178 = vmatprep.mubr.bf16.mxu0 0
    %1179 = vmatmul.mubr.bf16.gmra.mxu0 %v1091
    %v1180 = vpop.f32.mrf.mxu0
    %v1181 = vadd.f32 %v1096, %v1180
    %v1182 = vpop.f32.mrf.mxu0
    %v1183 = vpop.f32.mrf.mxu0
    %v1184 = vadd.f32 %v1096, %v1183
    %v1185 = vpop.f32.mrf.mxu0
    %1186 = vdwg.mxu0
    %v1187 = vadd.f32 %v1024, %v1181
    %v1188 = vadd.f32 %v1025, %v1184
    %v1189 = vsel %vm982, %v1187, 0.0
    %1190 = vadd.xlane.f32.xlu0 %v1189
    %v1191 = vpop.xlane.xlu0 %1190
    %v1192 = vsel %vm982, %v1188, 0.0
    %1193 = vadd.xlane.f32.xlu0 %v1192
    %v1194 = vpop.xlane.xlu0 %1193
    %v1195 = vmul.f32 %v1191, %v989
    %v1196 = vmul.f32 %v1194, %v989
    %v1197 = vsub.f32 %v1187, %v1195
    %v1198 = vsub.f32 %v1188, %v1196
    %v1199 = vmul.f32 %v1197, %v1197
    %v1200 = vmul.f32 %v1198, %v1198
    %v1201 = vsel %vm982, %v1199, 0.0
    %1202 = vadd.xlane.f32.xlu0 %v1201
    %v1203 = vpop.xlane.xlu0 %1202
    %v1204 = vsel %vm982, %v1200, 0.0
    %1205 = vadd.xlane.f32.xlu0 %v1204
    %v1206 = vpop.xlane.xlu0 %1205
    %v1207 = vmul.f32 %v1203, %v989
    %v1208 = vmul.f32 %v1206, %v989
    %v1209 = vadd.f32 %v1207, 1e-05
    %v1210 = vadd.f32 %v1208, 1e-05
    %v1211 = vrsqrt.pop %v1209
    %v1212 = vrsqrt.pop %v1210
    %v1213 = vmul.f32 %v1197, %v1211
    %v1214 = vmul.f32 %v1198, %v1212
    %v1216 = vlaneseq
    %v1217 = vshrl.u32 %v1216, 7
    %v1218 = vsub.s32 0, %v1217
    %v1219 = vrot.slane %v110, %v1218
    %v1221 = vmul.f32 %v1213, %v1219
    %v1222 = vmul.f32 %v1214, %v1219
    %v1224 = vlaneseq
    %v1225 = vshrl.u32 %v1224, 7
    %v1226 = vsub.s32 0, %v1225
    %v1227 = vrot.slane %v111, %v1226
    %v1229 = vadd.f32 %v1221, %v1227
    %v1230 = vadd.f32 %v1222, %v1227
    %v1231 = vld [vmem:[%s12] sm:$0xf]
    %v1232 = vld [vmem:[%s12 + $0x4] sm:$0xf]
    %v1233 = vld [vmem:[%s12 + $0x8] sm:$0xf]
    %v1234 = vld [vmem:[%s12 + $0xc] sm:$0xf]
    %v1235 = vld [vmem:[%s13] sm:$0x3]
    %v1236 = vld [vmem:[%s14] sm:$0x1]
    %v1237 = vld [vmem:[%s15] sm:$0x1]
    %v1238 = vld [vmem:[%s16] sm:$0xf]
    %v1239 = vld [vmem:[%s16 + $0x4] sm:$0xf]
    %v1240 = vld [vmem:[%s16 + $0x8] sm:$0xf]
    %v1241 = vld [vmem:[%s16 + $0xc] sm:$0xf]
    %v1242 = vld [vmem:[%s17] sm:$0x1]
    %v1243 = vld [vmem:[%s18] sm:$0xf]
    %v1244 = vld [vmem:[%s18 + $0x4] sm:$0xf]
    %v1245 = vld [vmem:[%s18 + $0x8] sm:$0xf]
    %v1246 = vld [vmem:[%s18 + $0xc] sm:$0xf]
    %v1247 = vld [vmem:[%s18 + $0x10] sm:$0xf]
    %v1248 = vld [vmem:[%s18 + $0x14] sm:$0xf]
    %v1249 = vld [vmem:[%s18 + $0x18] sm:$0xf]
    %v1250 = vld [vmem:[%s18 + $0x1c] sm:$0xf]
    %v1251 = vld [vmem:[%s18 + $0x20] sm:$0xf]
    %v1252 = vld [vmem:[%s18 + $0x24] sm:$0xf]
    %v1253 = vld [vmem:[%s18 + $0x28] sm:$0xf]
    %v1254 = vld [vmem:[%s18 + $0x2c] sm:$0xf]
    %v1255 = vld [vmem:[%s18 + $0x30] sm:$0xf]
    %v1256 = vld [vmem:[%s18 + $0x34] sm:$0xf]
    %v1257 = vld [vmem:[%s18 + $0x38] sm:$0xf]
    %v1258 = vld [vmem:[%s18 + $0x3c] sm:$0xf]
    %v1259 = vld [vmem:[%s19] sm:$0x1]
    %v1260 = vld [vmem:[%s20] sm:$0x1]
    %v1261 = vld [vmem:[%s21] sm:$0x1]
    %v1262 = vpack.c.bf16 %v1230, %v1229
    %v1267 = vunpack.c.l.b16 %v1231
    %v1268 = vunpack.c.l.b16 %v1232
    %v1269 = vunpack.c.l.b16 %v1233
    %v1270 = vunpack.c.l.b16 %v1234
    %v1271 = vpack.c.b16 %v1268, %v1267
    %v1272 = vpack.c.b16 %v1270, %v1269
    %v1276 = vsel %vm982, %v1262, 0
    %1278 = vmatprep.subr.bf16.mxu0 0
    %1279 = vmatpush1.bf16.msra.mxu0 0
    %1280 = vmatprep.subr.bf16.mxu0 0
    %1281 = vmatpush1.bf16.msra.mxu0 0
    %1282 = vmatprep.subr.bf16.mxu0 0
    %1283 = vmatpush1.bf16.msra.mxu0 0
    %1284 = vmatprep.subr.bf16.mxu0 0
    %1285 = vmatpush1.bf16.msra.mxu0 0
    %1286 = vmatprep.subr.bf16.mxu0 0
    %1287 = vmatpush1.bf16.msra.mxu0 0
    %1288 = vmatprep.subr.bf16.mxu0 0
    %1289 = vmatpush1.bf16.msra.mxu0 0
    %1290 = vmatprep.subr.bf16.mxu0 0
    %1291 = vmatpush1.bf16.msra.mxu0 %v1272
    %1292 = vmatprep.subr.bf16.mxu0 0
    %1293 = vmatpush1.bf16.msra.mxu0 %v1271
    %1294 = vmatprep.subr.bf16.mxu0 0
    %1295 = vmatpush2.bf16.msra.mxu0 0
    %1296 = vmatprep.subr.bf16.mxu0 0
    %1297 = vmatpush2.bf16.msra.mxu0 0
    %1298 = vmatprep.subr.bf16.mxu0 0
    %1299 = vmatpush2.bf16.msra.mxu0 0
    %1300 = vmatprep.subr.bf16.mxu0 0
    %1301 = vmatpush2.bf16.msra.mxu0 0
    %1302 = vmatprep.subr.bf16.mxu0 0
    %1303 = vmatpush2.bf16.msra.mxu0 0
    %1304 = vmatprep.subr.bf16.mxu0 0
    %1305 = vmatpush2.bf16.msra.mxu0 0
    %1306 = vmatprep.subr.bf16.mxu0 0
    %1307 = vmatpush2.bf16.msra.mxu0 0
    %1308 = vmatprep.subr.bf16.mxu0 0
    %1309 = vmatpush2.bf16.msra.mxu0 0
    %1310 = vmatprep.mubr.bf16.mxu0 0
    %1311 = vmatmul.mubr.bf16.gmra.mxu0 %v1276
    %v1312 = vpop.f32.mrf.mxu0
    %v1313 = vadd.f32 0.0, %v1312
    %v1314 = vpop.f32.mrf.mxu0
    %v1315 = vpop.f32.mrf.mxu0
    %v1316 = vadd.f32 0.0, %v1315
    %v1317 = vpop.f32.mrf.mxu0
    %1318 = vdwg.mxu0
    %v1320 = vsel %vm982, %v1235, 0
    %1322 = vmatprep.subr.bf16.mxu0 0
    %1323 = vmatpush1.bf16.xpose.msra.mxu0 0
    %1324 = vmatprep.subr.bf16.mxu0 0
    %1325 = vmatpush1.bf16.xpose.msra.mxu0 0
    %1326 = vmatprep.subr.bf16.mxu0 0
    %1327 = vmatpush1.bf16.xpose.msra.mxu0 0
    %1328 = vmatprep.subr.bf16.mxu0 0
    %1329 = vmatpush1.bf16.xpose.msra.mxu0 0
    %1330 = vmatprep.subr.bf16.mxu0 0
    %1331 = vmatpush1.bf16.xpose.msra.mxu0 0
    %1332 = vmatprep.subr.bf16.mxu0 0
    %1333 = vmatpush1.bf16.xpose.msra.mxu0 0
    %1334 = vmatprep.subr.bf16.mxu0 0
    %1335 = vmatpush1.bf16.xpose.msra.mxu0 0
    %1336 = vmatprep.subr.bf16.mxu0 0
    %1337 = vmatpush1.bf16.xpose.msra.mxu0 %v1276
    %1338 = vmatprep.subr.bf16.mxu0 0
    %1339 = vmatpush2.bf16.xpose.msra.mxu0 0
    %1340 = vmatprep.subr.bf16.mxu0 0
    %1341 = vmatpush2.bf16.xpose.msra.mxu0 0
    %1342 = vmatprep.subr.bf16.mxu0 0
    %1343 = vmatpush2.bf16.xpose.msra.mxu0 0
    %1344 = vmatprep.subr.bf16.mxu0 0
    %1345 = vmatpush2.bf16.xpose.msra.mxu0 0
    %1346 = vmatprep.subr.bf16.mxu0 0
    %1347 = vmatpush2.bf16.xpose.msra.mxu0 0
    %1348 = vmatprep.subr.bf16.mxu0 0
    %1349 = vmatpush2.bf16.xpose.msra.mxu0 0
    %1350 = vmatprep.subr.bf16.mxu0 0
    %1351 = vmatpush2.bf16.xpose.msra.mxu0 0
    %1352 = vmatprep.subr.bf16.mxu0 0
    %1353 = vmatpush2.bf16.xpose.msra.mxu0 0
    %1354 = vmatprep.mubr.bf16.mxu0 0
    %1355 = vmatmul.mubr.bf16.gmra.mxu0 %v1320
    %v1356 = vpop.f32.mrf.mxu0
    %v1357 = vadd.f32 0.0, %v1356
    %v1358 = vpop.f32.mrf.mxu0
    %v1359 = vpop.f32.mrf.mxu0
    %v1360 = vpop.f32.mrf.mxu0
    %1361 = vdwg.mxu0
    %1363 = vset.pattern.permute.xlu0 32
    %1364 = vperm.xlu0 %1363, %v1313
    %v1365 = vpop.permute.xlu0 %1364
    %1368 = vset.pattern.permute.xlu0 32
    %1369 = vperm.xlu0 %1368, %v1316
    %v1370 = vpop.permute.xlu0 %1369
    %v1372 = vlaneseq
    %v1373 = vshrl.u32 %v1372, 7
    %v1374 = vsub.s32 0, %v1373
    %v1375 = vrot.slane %v1357, %v1374
    %v1376 = vadd.f32 %v1365, %v1375
    %v1377 = vadd.f32 %v1370, %v1375
    %v1378 = vmul.f32 %v1376, 0.2
    %v1379 = vmul.f32 %v1377, 0.2
    %v1380 = vmax.f32 %v1376, %v1378
    %v1381 = vmax.f32 %v1377, %v1379
    %v1382 = vadd.f32 %v1380, %v79
    %v1383 = vadd.f32 %v1381, %v80
    %v1384 = vsel %vm119, %v1382, -inf
    %1385 = vmax.xlane.f32.xlu0 %v1384
    %v1386 = vpop.xlane.xlu0 %1385
    %v1387 = vsel %vm119, %v1383, -inf
    %1388 = vmax.xlane.f32.xlu0 %v1387
    %v1389 = vpop.xlane.xlu0 %1388
    %v1390 = vsub.f32 %v1382, %v1386
    %v1391 = vsub.f32 %v1383, %v1389
    %v1392 = vmul.f32 %v1390, 1.442695
    %v1393 = vpow.pop %v1392
    %v1394 = vmul.f32 %v1391, 1.442695
    %v1395 = vpow.pop %v1394
    %v1396 = vsel %vm119, %v1393, 0.0
    %1397 = vadd.xlane.f32.xlu0 %v1396
    %v1398 = vpop.xlane.xlu0 %1397
    %v1399 = vsel %vm119, %v1395, 0.0
    %1400 = vadd.xlane.f32.xlu0 %v1399
    %v1401 = vpop.xlane.xlu0 %1400
    %v1402 = vadd.f32 %v1398, 1e-16
    %v1403 = vadd.f32 %v1401, 1e-16
    %v1404 = vrcp.pop %v1402
    %v1405 = vrcp.pop %v1403
    %v1406 = vmul.f32 %v1393, %v1404
    %v1407 = vmul.f32 %v1395, %v1405
    %v1408 = vmul.f32 %v1406, 0.85
    %v1409 = vmul.f32 %v1407, 0.85
    %v1410 = vpack.c.bf16 %v1409, %v1408
    %v1411 = vmul.f32 %v1313, 0.15
    %v1412 = vmul.f32 %v1316, 0.15
    %v1413 = vpack.c.bf16 %v1316, %v1313
    %v1415 = vsel %vm119, %v1410, 0
    %1417 = vmatprep.subr.bf16.mxu0 0
    %1418 = vmatpush1.bf16.msra.mxu0 0
    %1419 = vmatprep.subr.bf16.mxu0 0
    %1420 = vmatpush1.bf16.msra.mxu0 0
    %1421 = vmatprep.subr.bf16.mxu0 0
    %1422 = vmatpush1.bf16.msra.mxu0 0
    %1423 = vmatprep.subr.bf16.mxu0 0
    %1424 = vmatpush1.bf16.msra.mxu0 0
    %1425 = vmatprep.subr.bf16.mxu0 0
    %1426 = vmatpush1.bf16.msra.mxu0 0
    %1427 = vmatprep.subr.bf16.mxu0 0
    %1428 = vmatpush1.bf16.msra.mxu0 0
    %1429 = vmatprep.subr.bf16.mxu0 0
    %1430 = vmatpush1.bf16.msra.mxu0 0
    %1431 = vmatprep.subr.bf16.mxu0 0
    %1432 = vmatpush1.bf16.msra.mxu0 %v1413
    %1433 = vmatprep.subr.bf16.mxu0 0
    %1434 = vmatpush2.bf16.msra.mxu0 0
    %1435 = vmatprep.subr.bf16.mxu0 0
    %1436 = vmatpush2.bf16.msra.mxu0 0
    %1437 = vmatprep.subr.bf16.mxu0 0
    %1438 = vmatpush2.bf16.msra.mxu0 0
    %1439 = vmatprep.subr.bf16.mxu0 0
    %1440 = vmatpush2.bf16.msra.mxu0 0
    %1441 = vmatprep.subr.bf16.mxu0 0
    %1442 = vmatpush2.bf16.msra.mxu0 0
    %1443 = vmatprep.subr.bf16.mxu0 0
    %1444 = vmatpush2.bf16.msra.mxu0 0
    %1445 = vmatprep.subr.bf16.mxu0 0
    %1446 = vmatpush2.bf16.msra.mxu0 0
    %1447 = vmatprep.subr.bf16.mxu0 0
    %1448 = vmatpush2.bf16.msra.mxu0 0
    %1449 = vmatprep.mubr.bf16.mxu0 0
    %1450 = vmatmul.mubr.bf16.gmra.mxu0 %v1415
    %v1451 = vpop.f32.mrf.mxu0
    %v1452 = vadd.f32 %v1411, %v1451
    %v1453 = vpop.f32.mrf.mxu0
    %v1454 = vpop.f32.mrf.mxu0
    %v1455 = vadd.f32 %v1412, %v1454
    %v1456 = vpop.f32.mrf.mxu0
    %1457 = vdwg.mxu0
    %v1458 = vpack.c.bf16 %v1455, %v1452
    %1459 = vmatprep.subr.bf16.mxu0 0
    %1460 = vmatpush1.bf16.msra.mxu0 0
    %1461 = vmatprep.subr.bf16.mxu0 0
    %1462 = vmatpush1.bf16.msra.mxu0 0
    %1463 = vmatprep.subr.bf16.mxu0 0
    %1464 = vmatpush1.bf16.msra.mxu0 0
    %1465 = vmatprep.subr.bf16.mxu0 0
    %1466 = vmatpush1.bf16.msra.mxu0 0
    %1467 = vmatprep.subr.bf16.mxu0 0
    %1468 = vmatpush1.bf16.msra.mxu0 0
    %1469 = vmatprep.subr.bf16.mxu0 0
    %1470 = vmatpush1.bf16.msra.mxu0 0
    %1471 = vmatprep.subr.bf16.mxu0 0
    %1472 = vmatpush1.bf16.msra.mxu0 0
    %1473 = vmatprep.subr.bf16.mxu0 0
    %1474 = vmatpush1.bf16.msra.mxu0 %v1458
    %1475 = vmatprep.subr.bf16.mxu0 0
    %1476 = vmatpush2.bf16.msra.mxu0 0
    %1477 = vmatprep.subr.bf16.mxu0 0
    %1478 = vmatpush2.bf16.msra.mxu0 0
    %1479 = vmatprep.subr.bf16.mxu0 0
    %1480 = vmatpush2.bf16.msra.mxu0 0
    %1481 = vmatprep.subr.bf16.mxu0 0
    %1482 = vmatpush2.bf16.msra.mxu0 0
    %1483 = vmatprep.subr.bf16.mxu0 0
    %1484 = vmatpush2.bf16.msra.mxu0 0
    %1485 = vmatprep.subr.bf16.mxu0 0
    %1486 = vmatpush2.bf16.msra.mxu0 0
    %1487 = vmatprep.subr.bf16.mxu0 0
    %1488 = vmatpush2.bf16.msra.mxu0 0
    %1489 = vmatprep.subr.bf16.mxu0 0
    %1490 = vmatpush2.bf16.msra.mxu0 0
    %1491 = vmatprep.mubr.bf16.mxu0 0
    %1492 = vmatmul.mubr.bf16.gmra.mxu0 %v1415
    %v1493 = vpop.f32.mrf.mxu0
    %v1494 = vadd.f32 %v1411, %v1493
    %v1495 = vpop.f32.mrf.mxu0
    %v1496 = vpop.f32.mrf.mxu0
    %v1497 = vadd.f32 %v1412, %v1496
    %v1498 = vpop.f32.mrf.mxu0
    %1499 = vdwg.mxu0
    %v1500 = vpack.c.bf16 %v1497, %v1494
    %1501 = vmatprep.subr.bf16.mxu0 0
    %1502 = vmatpush1.bf16.msra.mxu0 0
    %1503 = vmatprep.subr.bf16.mxu0 0
    %1504 = vmatpush1.bf16.msra.mxu0 0
    %1505 = vmatprep.subr.bf16.mxu0 0
    %1506 = vmatpush1.bf16.msra.mxu0 0
    %1507 = vmatprep.subr.bf16.mxu0 0
    %1508 = vmatpush1.bf16.msra.mxu0 0
    %1509 = vmatprep.subr.bf16.mxu0 0
    %1510 = vmatpush1.bf16.msra.mxu0 0
    %1511 = vmatprep.subr.bf16.mxu0 0
    %1512 = vmatpush1.bf16.msra.mxu0 0
    %1513 = vmatprep.subr.bf16.mxu0 0
    %1514 = vmatpush1.bf16.msra.mxu0 0
    %1515 = vmatprep.subr.bf16.mxu0 0
    %1516 = vmatpush1.bf16.msra.mxu0 %v1500
    %1517 = vmatprep.subr.bf16.mxu0 0
    %1518 = vmatpush2.bf16.msra.mxu0 0
    %1519 = vmatprep.subr.bf16.mxu0 0
    %1520 = vmatpush2.bf16.msra.mxu0 0
    %1521 = vmatprep.subr.bf16.mxu0 0
    %1522 = vmatpush2.bf16.msra.mxu0 0
    %1523 = vmatprep.subr.bf16.mxu0 0
    %1524 = vmatpush2.bf16.msra.mxu0 0
    %1525 = vmatprep.subr.bf16.mxu0 0
    %1526 = vmatpush2.bf16.msra.mxu0 0
    %1527 = vmatprep.subr.bf16.mxu0 0
    %1528 = vmatpush2.bf16.msra.mxu0 0
    %1529 = vmatprep.subr.bf16.mxu0 0
    %1530 = vmatpush2.bf16.msra.mxu0 0
    %1531 = vmatprep.subr.bf16.mxu0 0
    %1532 = vmatpush2.bf16.msra.mxu0 0
    %1533 = vmatprep.mubr.bf16.mxu0 0
    %1534 = vmatmul.mubr.bf16.gmra.mxu0 %v1415
    %v1535 = vpop.f32.mrf.mxu0
    %v1536 = vadd.f32 %v1411, %v1535
    %v1537 = vpop.f32.mrf.mxu0
    %v1538 = vpop.f32.mrf.mxu0
    %v1539 = vadd.f32 %v1412, %v1538
    %v1540 = vpop.f32.mrf.mxu0
    %1541 = vdwg.mxu0
    %1542 = vset.pattern.permute.xlu0 33
    %1543 = vperm.xlu0 %1542, %v1313
    %v1544 = vpop.permute.xlu0 %1543
    %1546 = vset.pattern.permute.xlu0 33
    %1547 = vperm.xlu0 %1546, %v1316
    %v1548 = vpop.permute.xlu0 %1547
    %v1550 = vlaneseq
    %v1551 = vshrl.u32 %v1550, 7
    %v1552 = vsub.s32 1, %v1551
    %v1553 = vrot.slane %v1357, %v1552
    %v1554 = vadd.f32 %v1544, %v1553
    %v1555 = vadd.f32 %v1548, %v1553
    %v1556 = vmul.f32 %v1554, 0.2
    %v1557 = vmul.f32 %v1555, 0.2
    %v1558 = vmax.f32 %v1554, %v1556
    %v1559 = vmax.f32 %v1555, %v1557
    %v1560 = vadd.f32 %v1558, %v79
    %v1561 = vadd.f32 %v1559, %v80
    %v1562 = vsel %vm119, %v1560, -inf
    %1563 = vmax.xlane.f32.xlu0 %v1562
    %v1564 = vpop.xlane.xlu0 %1563
    %v1565 = vsel %vm119, %v1561, -inf
    %1566 = vmax.xlane.f32.xlu0 %v1565
    %v1567 = vpop.xlane.xlu0 %1566
    %v1568 = vsub.f32 %v1560, %v1564
    %v1569 = vsub.f32 %v1561, %v1567
    %v1570 = vmul.f32 %v1568, 1.442695
    %v1571 = vpow.pop %v1570
    %v1572 = vmul.f32 %v1569, 1.442695
    %v1573 = vpow.pop %v1572
    %v1574 = vsel %vm119, %v1571, 0.0
    %1575 = vadd.xlane.f32.xlu0 %v1574
    %v1576 = vpop.xlane.xlu0 %1575
    %v1577 = vsel %vm119, %v1573, 0.0
    %1578 = vadd.xlane.f32.xlu0 %v1577
    %v1579 = vpop.xlane.xlu0 %1578
    %v1580 = vadd.f32 %v1576, 1e-16
    %v1581 = vadd.f32 %v1579, 1e-16
    %v1582 = vrcp.pop %v1580
    %v1583 = vrcp.pop %v1581
    %v1584 = vmul.f32 %v1571, %v1582
    %v1585 = vmul.f32 %v1573, %v1583
    %v1586 = vmul.f32 %v1584, 0.85
    %v1587 = vmul.f32 %v1585, 0.85
    %v1588 = vpack.c.bf16 %v1587, %v1586
    %1590 = vrot.lane.b32.xlu0 %v1413, 120
    %v1591 = vpop.permute.xlu0 %1590
    %1595 = vrot.lane.b32.xlu0 %v1411, 120
    %v1596 = vpop.permute.xlu0 %1595
    %1597 = vrot.lane.b32.xlu0 %v1412, 120
    %v1598 = vpop.permute.xlu0 %1597
    %v1602 = vsel %vm119, %v1588, 0
    %1604 = vmatprep.subr.bf16.mxu0 0
    %1605 = vmatpush1.bf16.msra.mxu0 0
    %1606 = vmatprep.subr.bf16.mxu0 0
    %1607 = vmatpush1.bf16.msra.mxu0 0
    %1608 = vmatprep.subr.bf16.mxu0 0
    %1609 = vmatpush1.bf16.msra.mxu0 0
    %1610 = vmatprep.subr.bf16.mxu0 0
    %1611 = vmatpush1.bf16.msra.mxu0 0
    %1612 = vmatprep.subr.bf16.mxu0 0
    %1613 = vmatpush1.bf16.msra.mxu0 0
    %1614 = vmatprep.subr.bf16.mxu0 0
    %1615 = vmatpush1.bf16.msra.mxu0 0
    %1616 = vmatprep.subr.bf16.mxu0 0
    %1617 = vmatpush1.bf16.msra.mxu0 0
    %1618 = vmatprep.subr.bf16.mxu0 0
    %1619 = vmatpush1.bf16.msra.mxu0 %v1591
    %1620 = vmatprep.subr.bf16.mxu0 0
    %1621 = vmatpush2.bf16.msra.mxu0 0
    %1622 = vmatprep.subr.bf16.mxu0 0
    %1623 = vmatpush2.bf16.msra.mxu0 0
    %1624 = vmatprep.subr.bf16.mxu0 0
    %1625 = vmatpush2.bf16.msra.mxu0 0
    %1626 = vmatprep.subr.bf16.mxu0 0
    %1627 = vmatpush2.bf16.msra.mxu0 0
    %1628 = vmatprep.subr.bf16.mxu0 0
    %1629 = vmatpush2.bf16.msra.mxu0 0
    %1630 = vmatprep.subr.bf16.mxu0 0
    %1631 = vmatpush2.bf16.msra.mxu0 0
    %1632 = vmatprep.subr.bf16.mxu0 0
    %1633 = vmatpush2.bf16.msra.mxu0 0
    %1634 = vmatprep.subr.bf16.mxu0 0
    %1635 = vmatpush2.bf16.msra.mxu0 0
    %1636 = vmatprep.mubr.bf16.mxu0 0
    %1637 = vmatmul.mubr.bf16.gmra.mxu0 %v1602
    %v1638 = vpop.f32.mrf.mxu0
    %v1639 = vadd.f32 %v1596, %v1638
    %v1640 = vpop.f32.mrf.mxu0
    %v1641 = vpop.f32.mrf.mxu0
    %v1642 = vadd.f32 %v1598, %v1641
    %v1643 = vpop.f32.mrf.mxu0
    %1644 = vdwg.mxu0
    %v1645 = vpack.c.bf16 %v1642, %v1639
    %1646 = vmatprep.subr.bf16.mxu0 0
    %1647 = vmatpush1.bf16.msra.mxu0 0
    %1648 = vmatprep.subr.bf16.mxu0 0
    %1649 = vmatpush1.bf16.msra.mxu0 0
    %1650 = vmatprep.subr.bf16.mxu0 0
    %1651 = vmatpush1.bf16.msra.mxu0 0
    %1652 = vmatprep.subr.bf16.mxu0 0
    %1653 = vmatpush1.bf16.msra.mxu0 0
    %1654 = vmatprep.subr.bf16.mxu0 0
    %1655 = vmatpush1.bf16.msra.mxu0 0
    %1656 = vmatprep.subr.bf16.mxu0 0
    %1657 = vmatpush1.bf16.msra.mxu0 0
    %1658 = vmatprep.subr.bf16.mxu0 0
    %1659 = vmatpush1.bf16.msra.mxu0 0
    %1660 = vmatprep.subr.bf16.mxu0 0
    %1661 = vmatpush1.bf16.msra.mxu0 %v1645
    %1662 = vmatprep.subr.bf16.mxu0 0
    %1663 = vmatpush2.bf16.msra.mxu0 0
    %1664 = vmatprep.subr.bf16.mxu0 0
    %1665 = vmatpush2.bf16.msra.mxu0 0
    %1666 = vmatprep.subr.bf16.mxu0 0
    %1667 = vmatpush2.bf16.msra.mxu0 0
    %1668 = vmatprep.subr.bf16.mxu0 0
    %1669 = vmatpush2.bf16.msra.mxu0 0
    %1670 = vmatprep.subr.bf16.mxu0 0
    %1671 = vmatpush2.bf16.msra.mxu0 0
    %1672 = vmatprep.subr.bf16.mxu0 0
    %1673 = vmatpush2.bf16.msra.mxu0 0
    %1674 = vmatprep.subr.bf16.mxu0 0
    %1675 = vmatpush2.bf16.msra.mxu0 0
    %1676 = vmatprep.subr.bf16.mxu0 0
    %1677 = vmatpush2.bf16.msra.mxu0 0
    %1678 = vmatprep.mubr.bf16.mxu0 0
    %1679 = vmatmul.mubr.bf16.gmra.mxu0 %v1602
    %v1680 = vpop.f32.mrf.mxu0
    %v1681 = vadd.f32 %v1596, %v1680
    %v1682 = vpop.f32.mrf.mxu0
    %v1683 = vpop.f32.mrf.mxu0
    %v1684 = vadd.f32 %v1598, %v1683
    %v1685 = vpop.f32.mrf.mxu0
    %1686 = vdwg.mxu0
    %v1687 = vpack.c.bf16 %v1684, %v1681
    %1688 = vmatprep.subr.bf16.mxu0 0
    %1689 = vmatpush1.bf16.msra.mxu0 0
    %1690 = vmatprep.subr.bf16.mxu0 0
    %1691 = vmatpush1.bf16.msra.mxu0 0
    %1692 = vmatprep.subr.bf16.mxu0 0
    %1693 = vmatpush1.bf16.msra.mxu0 0
    %1694 = vmatprep.subr.bf16.mxu0 0
    %1695 = vmatpush1.bf16.msra.mxu0 0
    %1696 = vmatprep.subr.bf16.mxu0 0
    %1697 = vmatpush1.bf16.msra.mxu0 0
    %1698 = vmatprep.subr.bf16.mxu0 0
    %1699 = vmatpush1.bf16.msra.mxu0 0
    %1700 = vmatprep.subr.bf16.mxu0 0
    %1701 = vmatpush1.bf16.msra.mxu0 0
    %1702 = vmatprep.subr.bf16.mxu0 0
    %1703 = vmatpush1.bf16.msra.mxu0 %v1687
    %1704 = vmatprep.subr.bf16.mxu0 0
    %1705 = vmatpush2.bf16.msra.mxu0 0
    %1706 = vmatprep.subr.bf16.mxu0 0
    %1707 = vmatpush2.bf16.msra.mxu0 0
    %1708 = vmatprep.subr.bf16.mxu0 0
    %1709 = vmatpush2.bf16.msra.mxu0 0
    %1710 = vmatprep.subr.bf16.mxu0 0
    %1711 = vmatpush2.bf16.msra.mxu0 0
    %1712 = vmatprep.subr.bf16.mxu0 0
    %1713 = vmatpush2.bf16.msra.mxu0 0
    %1714 = vmatprep.subr.bf16.mxu0 0
    %1715 = vmatpush2.bf16.msra.mxu0 0
    %1716 = vmatprep.subr.bf16.mxu0 0
    %1717 = vmatpush2.bf16.msra.mxu0 0
    %1718 = vmatprep.subr.bf16.mxu0 0
    %1719 = vmatpush2.bf16.msra.mxu0 0
    %1720 = vmatprep.mubr.bf16.mxu0 0
    %1721 = vmatmul.mubr.bf16.gmra.mxu0 %v1602
    %v1722 = vpop.f32.mrf.mxu0
    %v1723 = vadd.f32 %v1596, %v1722
    %v1724 = vpop.f32.mrf.mxu0
    %v1725 = vpop.f32.mrf.mxu0
    %v1726 = vadd.f32 %v1598, %v1725
    %v1727 = vpop.f32.mrf.mxu0
    %1728 = vdwg.mxu0
    %1729 = vset.pattern.permute.xlu0 34
    %1730 = vperm.xlu0 %1729, %v1313
    %v1731 = vpop.permute.xlu0 %1730
    %1733 = vset.pattern.permute.xlu0 34
    %1734 = vperm.xlu0 %1733, %v1316
    %v1735 = vpop.permute.xlu0 %1734
    %v1737 = vlaneseq
    %v1738 = vshrl.u32 %v1737, 7
    %v1739 = vsub.s32 2, %v1738
    %v1740 = vrot.slane %v1357, %v1739
    %v1741 = vadd.f32 %v1731, %v1740
    %v1742 = vadd.f32 %v1735, %v1740
    %v1743 = vmul.f32 %v1741, 0.2
    %v1744 = vmul.f32 %v1742, 0.2
    %v1745 = vmax.f32 %v1741, %v1743
    %v1746 = vmax.f32 %v1742, %v1744
    %v1747 = vadd.f32 %v1745, %v79
    %v1748 = vadd.f32 %v1746, %v80
    %v1749 = vsel %vm119, %v1747, -inf
    %1750 = vmax.xlane.f32.xlu0 %v1749
    %v1751 = vpop.xlane.xlu0 %1750
    %v1752 = vsel %vm119, %v1748, -inf
    %1753 = vmax.xlane.f32.xlu0 %v1752
    %v1754 = vpop.xlane.xlu0 %1753
    %v1755 = vsub.f32 %v1747, %v1751
    %v1756 = vsub.f32 %v1748, %v1754
    %v1757 = vmul.f32 %v1755, 1.442695
    %v1758 = vpow.pop %v1757
    %v1759 = vmul.f32 %v1756, 1.442695
    %v1760 = vpow.pop %v1759
    %v1761 = vsel %vm119, %v1758, 0.0
    %1762 = vadd.xlane.f32.xlu0 %v1761
    %v1763 = vpop.xlane.xlu0 %1762
    %v1764 = vsel %vm119, %v1760, 0.0
    %1765 = vadd.xlane.f32.xlu0 %v1764
    %v1766 = vpop.xlane.xlu0 %1765
    %v1767 = vadd.f32 %v1763, 1e-16
    %v1768 = vadd.f32 %v1766, 1e-16
    %v1769 = vrcp.pop %v1767
    %v1770 = vrcp.pop %v1768
    %v1771 = vmul.f32 %v1758, %v1769
    %v1772 = vmul.f32 %v1760, %v1770
    %v1773 = vmul.f32 %v1771, 0.85
    %v1774 = vmul.f32 %v1772, 0.85
    %v1775 = vpack.c.bf16 %v1774, %v1773
    %1776 = vrot.lane.b32.xlu0 %v1413, 112
    %v1777 = vpop.permute.xlu0 %1776
    %1779 = vrot.lane.b32.xlu0 %v1411, 112
    %v1780 = vpop.permute.xlu0 %1779
    %1781 = vrot.lane.b32.xlu0 %v1412, 112
    %v1782 = vpop.permute.xlu0 %1781
    %v1786 = vsel %vm119, %v1775, 0
    %1788 = vmatprep.subr.bf16.mxu0 0
    %1789 = vmatpush1.bf16.msra.mxu0 0
    %1790 = vmatprep.subr.bf16.mxu0 0
    %1791 = vmatpush1.bf16.msra.mxu0 0
    %1792 = vmatprep.subr.bf16.mxu0 0
    %1793 = vmatpush1.bf16.msra.mxu0 0
    %1794 = vmatprep.subr.bf16.mxu0 0
    %1795 = vmatpush1.bf16.msra.mxu0 0
    %1796 = vmatprep.subr.bf16.mxu0 0
    %1797 = vmatpush1.bf16.msra.mxu0 0
    %1798 = vmatprep.subr.bf16.mxu0 0
    %1799 = vmatpush1.bf16.msra.mxu0 0
    %1800 = vmatprep.subr.bf16.mxu0 0
    %1801 = vmatpush1.bf16.msra.mxu0 0
    %1802 = vmatprep.subr.bf16.mxu0 0
    %1803 = vmatpush1.bf16.msra.mxu0 %v1777
    %1804 = vmatprep.subr.bf16.mxu0 0
    %1805 = vmatpush2.bf16.msra.mxu0 0
    %1806 = vmatprep.subr.bf16.mxu0 0
    %1807 = vmatpush2.bf16.msra.mxu0 0
    %1808 = vmatprep.subr.bf16.mxu0 0
    %1809 = vmatpush2.bf16.msra.mxu0 0
    %1810 = vmatprep.subr.bf16.mxu0 0
    %1811 = vmatpush2.bf16.msra.mxu0 0
    %1812 = vmatprep.subr.bf16.mxu0 0
    %1813 = vmatpush2.bf16.msra.mxu0 0
    %1814 = vmatprep.subr.bf16.mxu0 0
    %1815 = vmatpush2.bf16.msra.mxu0 0
    %1816 = vmatprep.subr.bf16.mxu0 0
    %1817 = vmatpush2.bf16.msra.mxu0 0
    %1818 = vmatprep.subr.bf16.mxu0 0
    %1819 = vmatpush2.bf16.msra.mxu0 0
    %1820 = vmatprep.mubr.bf16.mxu0 0
    %1821 = vmatmul.mubr.bf16.gmra.mxu0 %v1786
    %v1822 = vpop.f32.mrf.mxu0
    %v1823 = vadd.f32 %v1780, %v1822
    %v1824 = vpop.f32.mrf.mxu0
    %v1825 = vpop.f32.mrf.mxu0
    %v1826 = vadd.f32 %v1782, %v1825
    %v1827 = vpop.f32.mrf.mxu0
    %1828 = vdwg.mxu0
    %v1829 = vpack.c.bf16 %v1826, %v1823
    %1830 = vmatprep.subr.bf16.mxu0 0
    %1831 = vmatpush1.bf16.msra.mxu0 0
    %1832 = vmatprep.subr.bf16.mxu0 0
    %1833 = vmatpush1.bf16.msra.mxu0 0
    %1834 = vmatprep.subr.bf16.mxu0 0
    %1835 = vmatpush1.bf16.msra.mxu0 0
    %1836 = vmatprep.subr.bf16.mxu0 0
    %1837 = vmatpush1.bf16.msra.mxu0 0
    %1838 = vmatprep.subr.bf16.mxu0 0
    %1839 = vmatpush1.bf16.msra.mxu0 0
    %1840 = vmatprep.subr.bf16.mxu0 0
    %1841 = vmatpush1.bf16.msra.mxu0 0
    %1842 = vmatprep.subr.bf16.mxu0 0
    %1843 = vmatpush1.bf16.msra.mxu0 0
    %1844 = vmatprep.subr.bf16.mxu0 0
    %1845 = vmatpush1.bf16.msra.mxu0 %v1829
    %1846 = vmatprep.subr.bf16.mxu0 0
    %1847 = vmatpush2.bf16.msra.mxu0 0
    %1848 = vmatprep.subr.bf16.mxu0 0
    %1849 = vmatpush2.bf16.msra.mxu0 0
    %1850 = vmatprep.subr.bf16.mxu0 0
    %1851 = vmatpush2.bf16.msra.mxu0 0
    %1852 = vmatprep.subr.bf16.mxu0 0
    %1853 = vmatpush2.bf16.msra.mxu0 0
    %1854 = vmatprep.subr.bf16.mxu0 0
    %1855 = vmatpush2.bf16.msra.mxu0 0
    %1856 = vmatprep.subr.bf16.mxu0 0
    %1857 = vmatpush2.bf16.msra.mxu0 0
    %1858 = vmatprep.subr.bf16.mxu0 0
    %1859 = vmatpush2.bf16.msra.mxu0 0
    %1860 = vmatprep.subr.bf16.mxu0 0
    %1861 = vmatpush2.bf16.msra.mxu0 0
    %1862 = vmatprep.mubr.bf16.mxu0 0
    %1863 = vmatmul.mubr.bf16.gmra.mxu0 %v1786
    %v1864 = vpop.f32.mrf.mxu0
    %v1865 = vadd.f32 %v1780, %v1864
    %v1866 = vpop.f32.mrf.mxu0
    %v1867 = vpop.f32.mrf.mxu0
    %v1868 = vadd.f32 %v1782, %v1867
    %v1869 = vpop.f32.mrf.mxu0
    %1870 = vdwg.mxu0
    %v1871 = vpack.c.bf16 %v1868, %v1865
    %1872 = vmatprep.subr.bf16.mxu0 0
    %1873 = vmatpush1.bf16.msra.mxu0 0
    %1874 = vmatprep.subr.bf16.mxu0 0
    %1875 = vmatpush1.bf16.msra.mxu0 0
    %1876 = vmatprep.subr.bf16.mxu0 0
    %1877 = vmatpush1.bf16.msra.mxu0 0
    %1878 = vmatprep.subr.bf16.mxu0 0
    %1879 = vmatpush1.bf16.msra.mxu0 0
    %1880 = vmatprep.subr.bf16.mxu0 0
    %1881 = vmatpush1.bf16.msra.mxu0 0
    %1882 = vmatprep.subr.bf16.mxu0 0
    %1883 = vmatpush1.bf16.msra.mxu0 0
    %1884 = vmatprep.subr.bf16.mxu0 0
    %1885 = vmatpush1.bf16.msra.mxu0 0
    %1886 = vmatprep.subr.bf16.mxu0 0
    %1887 = vmatpush1.bf16.msra.mxu0 %v1871
    %1888 = vmatprep.subr.bf16.mxu0 0
    %1889 = vmatpush2.bf16.msra.mxu0 0
    %1890 = vmatprep.subr.bf16.mxu0 0
    %1891 = vmatpush2.bf16.msra.mxu0 0
    %1892 = vmatprep.subr.bf16.mxu0 0
    %1893 = vmatpush2.bf16.msra.mxu0 0
    %1894 = vmatprep.subr.bf16.mxu0 0
    %1895 = vmatpush2.bf16.msra.mxu0 0
    %1896 = vmatprep.subr.bf16.mxu0 0
    %1897 = vmatpush2.bf16.msra.mxu0 0
    %1898 = vmatprep.subr.bf16.mxu0 0
    %1899 = vmatpush2.bf16.msra.mxu0 0
    %1900 = vmatprep.subr.bf16.mxu0 0
    %1901 = vmatpush2.bf16.msra.mxu0 0
    %1902 = vmatprep.subr.bf16.mxu0 0
    %1903 = vmatpush2.bf16.msra.mxu0 0
    %1904 = vmatprep.mubr.bf16.mxu0 0
    %1905 = vmatmul.mubr.bf16.gmra.mxu0 %v1786
    %v1906 = vpop.f32.mrf.mxu0
    %v1907 = vadd.f32 %v1780, %v1906
    %v1908 = vpop.f32.mrf.mxu0
    %v1909 = vpop.f32.mrf.mxu0
    %v1910 = vadd.f32 %v1782, %v1909
    %v1911 = vpop.f32.mrf.mxu0
    %1912 = vdwg.mxu0
    %1913 = vset.pattern.permute.xlu0 35
    %1914 = vperm.xlu0 %1913, %v1313
    %v1915 = vpop.permute.xlu0 %1914
    %1917 = vset.pattern.permute.xlu0 35
    %1918 = vperm.xlu0 %1917, %v1316
    %v1919 = vpop.permute.xlu0 %1918
    %v1921 = vlaneseq
    %v1922 = vshrl.u32 %v1921, 7
    %v1923 = vsub.s32 3, %v1922
    %v1924 = vrot.slane %v1357, %v1923
    %v1925 = vadd.f32 %v1915, %v1924
    %v1926 = vadd.f32 %v1919, %v1924
    %v1927 = vmul.f32 %v1925, 0.2
    %v1928 = vmul.f32 %v1926, 0.2
    %v1929 = vmax.f32 %v1925, %v1927
    %v1930 = vmax.f32 %v1926, %v1928
    %v1931 = vadd.f32 %v1929, %v79
    %v1932 = vadd.f32 %v1930, %v80
    %v1933 = vsel %vm119, %v1931, -inf
    %1934 = vmax.xlane.f32.xlu0 %v1933
    %v1935 = vpop.xlane.xlu0 %1934
    %v1936 = vsel %vm119, %v1932, -inf
    %1937 = vmax.xlane.f32.xlu0 %v1936
    %v1938 = vpop.xlane.xlu0 %1937
    %v1939 = vsub.f32 %v1931, %v1935
    %v1940 = vsub.f32 %v1932, %v1938
    %v1941 = vmul.f32 %v1939, 1.442695
    %v1942 = vpow.pop %v1941
    %v1943 = vmul.f32 %v1940, 1.442695
    %v1944 = vpow.pop %v1943
    %v1945 = vsel %vm119, %v1942, 0.0
    %1946 = vadd.xlane.f32.xlu0 %v1945
    %v1947 = vpop.xlane.xlu0 %1946
    %v1948 = vsel %vm119, %v1944, 0.0
    %1949 = vadd.xlane.f32.xlu0 %v1948
    %v1950 = vpop.xlane.xlu0 %1949
    %v1951 = vadd.f32 %v1947, 1e-16
    %v1952 = vadd.f32 %v1950, 1e-16
    %v1953 = vrcp.pop %v1951
    %v1954 = vrcp.pop %v1952
    %v1955 = vmul.f32 %v1942, %v1953
    %v1956 = vmul.f32 %v1944, %v1954
    %v1957 = vmul.f32 %v1955, 0.85
    %v1958 = vmul.f32 %v1956, 0.85
    %v1959 = vpack.c.bf16 %v1958, %v1957
    %1960 = vrot.lane.b32.xlu0 %v1413, 104
    %v1961 = vpop.permute.xlu0 %1960
    %1963 = vrot.lane.b32.xlu0 %v1411, 104
    %v1964 = vpop.permute.xlu0 %1963
    %1965 = vrot.lane.b32.xlu0 %v1412, 104
    %v1966 = vpop.permute.xlu0 %1965
    %v1970 = vsel %vm119, %v1959, 0
    %1972 = vmatprep.subr.bf16.mxu0 0
    %1973 = vmatpush1.bf16.msra.mxu0 0
    %1974 = vmatprep.subr.bf16.mxu0 0
    %1975 = vmatpush1.bf16.msra.mxu0 0
    %1976 = vmatprep.subr.bf16.mxu0 0
    %1977 = vmatpush1.bf16.msra.mxu0 0
    %1978 = vmatprep.subr.bf16.mxu0 0
    %1979 = vmatpush1.bf16.msra.mxu0 0
    %1980 = vmatprep.subr.bf16.mxu0 0
    %1981 = vmatpush1.bf16.msra.mxu0 0
    %1982 = vmatprep.subr.bf16.mxu0 0
    %1983 = vmatpush1.bf16.msra.mxu0 0
    %1984 = vmatprep.subr.bf16.mxu0 0
    %1985 = vmatpush1.bf16.msra.mxu0 0
    %1986 = vmatprep.subr.bf16.mxu0 0
    %1987 = vmatpush1.bf16.msra.mxu0 %v1961
    %1988 = vmatprep.subr.bf16.mxu0 0
    %1989 = vmatpush2.bf16.msra.mxu0 0
    %1990 = vmatprep.subr.bf16.mxu0 0
    %1991 = vmatpush2.bf16.msra.mxu0 0
    %1992 = vmatprep.subr.bf16.mxu0 0
    %1993 = vmatpush2.bf16.msra.mxu0 0
    %1994 = vmatprep.subr.bf16.mxu0 0
    %1995 = vmatpush2.bf16.msra.mxu0 0
    %1996 = vmatprep.subr.bf16.mxu0 0
    %1997 = vmatpush2.bf16.msra.mxu0 0
    %1998 = vmatprep.subr.bf16.mxu0 0
    %1999 = vmatpush2.bf16.msra.mxu0 0
    %2000 = vmatprep.subr.bf16.mxu0 0
    %2001 = vmatpush2.bf16.msra.mxu0 0
    %2002 = vmatprep.subr.bf16.mxu0 0
    %2003 = vmatpush2.bf16.msra.mxu0 0
    %2004 = vmatprep.mubr.bf16.mxu0 0
    %2005 = vmatmul.mubr.bf16.gmra.mxu0 %v1970
    %v2006 = vpop.f32.mrf.mxu0
    %v2007 = vadd.f32 %v1964, %v2006
    %v2008 = vpop.f32.mrf.mxu0
    %v2009 = vpop.f32.mrf.mxu0
    %v2010 = vadd.f32 %v1966, %v2009
    %v2011 = vpop.f32.mrf.mxu0
    %2012 = vdwg.mxu0
    %v2013 = vpack.c.bf16 %v2010, %v2007
    %2014 = vmatprep.subr.bf16.mxu0 0
    %2015 = vmatpush1.bf16.msra.mxu0 0
    %2016 = vmatprep.subr.bf16.mxu0 0
    %2017 = vmatpush1.bf16.msra.mxu0 0
    %2018 = vmatprep.subr.bf16.mxu0 0
    %2019 = vmatpush1.bf16.msra.mxu0 0
    %2020 = vmatprep.subr.bf16.mxu0 0
    %2021 = vmatpush1.bf16.msra.mxu0 0
    %2022 = vmatprep.subr.bf16.mxu0 0
    %2023 = vmatpush1.bf16.msra.mxu0 0
    %2024 = vmatprep.subr.bf16.mxu0 0
    %2025 = vmatpush1.bf16.msra.mxu0 0
    %2026 = vmatprep.subr.bf16.mxu0 0
    %2027 = vmatpush1.bf16.msra.mxu0 0
    %2028 = vmatprep.subr.bf16.mxu0 0
    %2029 = vmatpush1.bf16.msra.mxu0 %v2013
    %2030 = vmatprep.subr.bf16.mxu0 0
    %2031 = vmatpush2.bf16.msra.mxu0 0
    %2032 = vmatprep.subr.bf16.mxu0 0
    %2033 = vmatpush2.bf16.msra.mxu0 0
    %2034 = vmatprep.subr.bf16.mxu0 0
    %2035 = vmatpush2.bf16.msra.mxu0 0
    %2036 = vmatprep.subr.bf16.mxu0 0
    %2037 = vmatpush2.bf16.msra.mxu0 0
    %2038 = vmatprep.subr.bf16.mxu0 0
    %2039 = vmatpush2.bf16.msra.mxu0 0
    %2040 = vmatprep.subr.bf16.mxu0 0
    %2041 = vmatpush2.bf16.msra.mxu0 0
    %2042 = vmatprep.subr.bf16.mxu0 0
    %2043 = vmatpush2.bf16.msra.mxu0 0
    %2044 = vmatprep.subr.bf16.mxu0 0
    %2045 = vmatpush2.bf16.msra.mxu0 0
    %2046 = vmatprep.mubr.bf16.mxu0 0
    %2047 = vmatmul.mubr.bf16.gmra.mxu0 %v1970
    %v2048 = vpop.f32.mrf.mxu0
    %v2049 = vadd.f32 %v1964, %v2048
    %v2050 = vpop.f32.mrf.mxu0
    %v2051 = vpop.f32.mrf.mxu0
    %v2052 = vadd.f32 %v1966, %v2051
    %v2053 = vpop.f32.mrf.mxu0
    %2054 = vdwg.mxu0
    %v2055 = vpack.c.bf16 %v2052, %v2049
    %2056 = vmatprep.subr.bf16.mxu0 0
    %2057 = vmatpush1.bf16.msra.mxu0 0
    %2058 = vmatprep.subr.bf16.mxu0 0
    %2059 = vmatpush1.bf16.msra.mxu0 0
    %2060 = vmatprep.subr.bf16.mxu0 0
    %2061 = vmatpush1.bf16.msra.mxu0 0
    %2062 = vmatprep.subr.bf16.mxu0 0
    %2063 = vmatpush1.bf16.msra.mxu0 0
    %2064 = vmatprep.subr.bf16.mxu0 0
    %2065 = vmatpush1.bf16.msra.mxu0 0
    %2066 = vmatprep.subr.bf16.mxu0 0
    %2067 = vmatpush1.bf16.msra.mxu0 0
    %2068 = vmatprep.subr.bf16.mxu0 0
    %2069 = vmatpush1.bf16.msra.mxu0 0
    %2070 = vmatprep.subr.bf16.mxu0 0
    %2071 = vmatpush1.bf16.msra.mxu0 %v2055
    %2072 = vmatprep.subr.bf16.mxu0 0
    %2073 = vmatpush2.bf16.msra.mxu0 0
    %2074 = vmatprep.subr.bf16.mxu0 0
    %2075 = vmatpush2.bf16.msra.mxu0 0
    %2076 = vmatprep.subr.bf16.mxu0 0
    %2077 = vmatpush2.bf16.msra.mxu0 0
    %2078 = vmatprep.subr.bf16.mxu0 0
    %2079 = vmatpush2.bf16.msra.mxu0 0
    %2080 = vmatprep.subr.bf16.mxu0 0
    %2081 = vmatpush2.bf16.msra.mxu0 0
    %2082 = vmatprep.subr.bf16.mxu0 0
    %2083 = vmatpush2.bf16.msra.mxu0 0
    %2084 = vmatprep.subr.bf16.mxu0 0
    %2085 = vmatpush2.bf16.msra.mxu0 0
    %2086 = vmatprep.subr.bf16.mxu0 0
    %2087 = vmatpush2.bf16.msra.mxu0 0
    %2088 = vmatprep.mubr.bf16.mxu0 0
    %2089 = vmatmul.mubr.bf16.gmra.mxu0 %v1970
    %v2090 = vpop.f32.mrf.mxu0
    %v2091 = vadd.f32 %v1964, %v2090
    %v2092 = vpop.f32.mrf.mxu0
    %v2093 = vpop.f32.mrf.mxu0
    %v2094 = vadd.f32 %v1966, %v2093
    %v2095 = vpop.f32.mrf.mxu0
    %2096 = vdwg.mxu0
    %2099 = vrot.lane.b32.xlu0 %v1723, 8
    %v2100 = vpop.permute.xlu0 %2099
    %2101 = vrot.lane.b32.xlu0 %v1726, 8
    %v2102 = vpop.permute.xlu0 %2101
    %2107 = vrot.lane.b32.xlu0 %v1907, 16
    %v2108 = vpop.permute.xlu0 %2107
    %2109 = vrot.lane.b32.xlu0 %v1910, 16
    %v2110 = vpop.permute.xlu0 %2109
    %2115 = vrot.lane.b32.xlu0 %v2091, 24
    %v2116 = vpop.permute.xlu0 %2115
    %2117 = vrot.lane.b32.xlu0 %v2094, 24
    %v2118 = vpop.permute.xlu0 %2117
    %v2121 = vsel %vm966, %v1536, %v2100
    %v2122 = vsel %vm966, %v1539, %v2102
    %v2123 = vsel %vm119, %v2121, %v2108
    %v2124 = vsel %vm119, %v2122, %v2110
    %v2125 = vsel %vm971, %v2123, %v2116
    %v2126 = vsel %vm971, %v2124, %v2118
    %v2127 = vadd.f32 %v2125, %v1229
    %v2128 = vadd.f32 %v2126, %v1230
    %v2129 = vsel %vm982, %v2127, 0.0
    %2130 = vadd.xlane.f32.xlu0 %v2129
    %v2131 = vpop.xlane.xlu0 %2130
    %v2132 = vsel %vm982, %v2128, 0.0
    %2133 = vadd.xlane.f32.xlu0 %v2132
    %v2134 = vpop.xlane.xlu0 %2133
    %v2135 = vmul.f32 %v2131, %v989
    %v2136 = vmul.f32 %v2134, %v989
    %v2137 = vsub.f32 %v2127, %v2135
    %v2138 = vsub.f32 %v2128, %v2136
    %v2139 = vmul.f32 %v2137, %v2137
    %v2140 = vmul.f32 %v2138, %v2138
    %v2141 = vsel %vm982, %v2139, 0.0
    %2142 = vadd.xlane.f32.xlu0 %v2141
    %v2143 = vpop.xlane.xlu0 %2142
    %v2144 = vsel %vm982, %v2140, 0.0
    %2145 = vadd.xlane.f32.xlu0 %v2144
    %v2146 = vpop.xlane.xlu0 %2145
    %v2147 = vmul.f32 %v2143, %v989
    %v2148 = vmul.f32 %v2146, %v989
    %v2149 = vadd.f32 %v2147, 1e-05
    %v2150 = vadd.f32 %v2148, 1e-05
    %v2151 = vrsqrt.pop %v2149
    %v2152 = vrsqrt.pop %v2150
    %v2153 = vmul.f32 %v2137, %v2151
    %v2154 = vmul.f32 %v2138, %v2152
    %v2156 = vlaneseq
    %v2157 = vshrl.u32 %v2156, 7
    %v2158 = vsub.s32 0, %v2157
    %v2159 = vrot.slane %v1236, %v2158
    %v2161 = vmul.f32 %v2153, %v2159
    %v2162 = vmul.f32 %v2154, %v2159
    %v2164 = vlaneseq
    %v2165 = vshrl.u32 %v2164, 7
    %v2166 = vsub.s32 0, %v2165
    %v2167 = vrot.slane %v1237, %v2166
    %v2169 = vadd.f32 %v2161, %v2167
    %v2170 = vadd.f32 %v2162, %v2167
    %v2171 = vpack.c.bf16 %v2170, %v2169
    %v2173 = vlaneseq
    %v2174 = vshrl.u32 %v2173, 7
    %v2175 = vsub.s32 0, %v2174
    %v2176 = vrot.slane %v1242, %v2175
    %v2182 = vunpack.c.l.b16 %v1238
    %v2183 = vunpack.c.l.b16 %v1239
    %v2184 = vunpack.c.l.b16 %v1240
    %v2185 = vunpack.c.l.b16 %v1241
    %v2186 = vpack.c.b16 %v2183, %v2182
    %v2187 = vpack.c.b16 %v2185, %v2184
    %v2191 = vsel %vm982, %v2171, 0
    %2193 = vmatprep.subr.bf16.mxu0 0
    %2194 = vmatpush1.bf16.msra.mxu0 0
    %2195 = vmatprep.subr.bf16.mxu0 0
    %2196 = vmatpush1.bf16.msra.mxu0 0
    %2197 = vmatprep.subr.bf16.mxu0 0
    %2198 = vmatpush1.bf16.msra.mxu0 0
    %2199 = vmatprep.subr.bf16.mxu0 0
    %2200 = vmatpush1.bf16.msra.mxu0 0
    %2201 = vmatprep.subr.bf16.mxu0 0
    %2202 = vmatpush1.bf16.msra.mxu0 0
    %2203 = vmatprep.subr.bf16.mxu0 0
    %2204 = vmatpush1.bf16.msra.mxu0 0
    %2205 = vmatprep.subr.bf16.mxu0 0
    %2206 = vmatpush1.bf16.msra.mxu0 %v2187
    %2207 = vmatprep.subr.bf16.mxu0 0
    %2208 = vmatpush1.bf16.msra.mxu0 %v2186
    %2209 = vmatprep.subr.bf16.mxu0 0
    %2210 = vmatpush2.bf16.msra.mxu0 0
    %2211 = vmatprep.subr.bf16.mxu0 0
    %2212 = vmatpush2.bf16.msra.mxu0 0
    %2213 = vmatprep.subr.bf16.mxu0 0
    %2214 = vmatpush2.bf16.msra.mxu0 0
    %2215 = vmatprep.subr.bf16.mxu0 0
    %2216 = vmatpush2.bf16.msra.mxu0 0
    %2217 = vmatprep.subr.bf16.mxu0 0
    %2218 = vmatpush2.bf16.msra.mxu0 0
    %2219 = vmatprep.subr.bf16.mxu0 0
    %2220 = vmatpush2.bf16.msra.mxu0 0
    %2221 = vmatprep.subr.bf16.mxu0 0
    %2222 = vmatpush2.bf16.msra.mxu0 0
    %2223 = vmatprep.subr.bf16.mxu0 0
    %2224 = vmatpush2.bf16.msra.mxu0 0
    %2225 = vmatprep.mubr.bf16.mxu0 0
    %2226 = vmatmul.mubr.bf16.gmra.mxu0 %v2191
    %v2227 = vpop.f32.mrf.mxu0
    %v2228 = vadd.f32 %v2176, %v2227
    %v2229 = vpop.f32.mrf.mxu0
    %v2230 = vpop.f32.mrf.mxu0
    %v2231 = vadd.f32 %v2176, %v2230
    %v2232 = vpop.f32.mrf.mxu0
    %2233 = vdwg.mxu0
    %v2234 = vmax.f32 %v2228, 0.0
    %v2235 = vmax.f32 %v2231, 0.0
    %v2236 = vpack.c.bf16 %v2235, %v2234
    %v2238 = vlaneseq
    %v2239 = vshrl.u32 %v2238, 7
    %v2240 = vsub.s32 0, %v2239
    %v2241 = vrot.slane %v1259, %v2240
    %v2259 = vunpack.c.l.b16 %v1243
    %v2260 = vunpack.c.l.b16 %v1244
    %v2261 = vunpack.c.l.b16 %v1245
    %v2262 = vunpack.c.l.b16 %v1246
    %v2263 = vunpack.c.l.b16 %v1247
    %v2264 = vunpack.c.l.b16 %v1248
    %v2265 = vunpack.c.l.b16 %v1249
    %v2266 = vunpack.c.l.b16 %v1250
    %v2267 = vunpack.c.l.b16 %v1251
    %v2268 = vunpack.c.l.b16 %v1252
    %v2269 = vunpack.c.l.b16 %v1253
    %v2270 = vunpack.c.l.b16 %v1254
    %v2271 = vunpack.c.l.b16 %v1255
    %v2272 = vunpack.c.l.b16 %v1256
    %v2273 = vunpack.c.l.b16 %v1257
    %v2274 = vunpack.c.l.b16 %v1258
    %v2275 = vpack.c.b16 %v2260, %v2259
    %v2276 = vpack.c.b16 %v2262, %v2261
    %v2277 = vpack.c.b16 %v2264, %v2263
    %v2278 = vpack.c.b16 %v2266, %v2265
    %v2279 = vpack.c.b16 %v2268, %v2267
    %v2280 = vpack.c.b16 %v2270, %v2269
    %v2281 = vpack.c.b16 %v2272, %v2271
    %v2282 = vpack.c.b16 %v2274, %v2273
    %2291 = vmatprep.subr.bf16.mxu0 0
    %2292 = vmatpush1.bf16.msra.mxu0 %v2282
    %2293 = vmatprep.subr.bf16.mxu0 0
    %2294 = vmatpush1.bf16.msra.mxu0 %v2281
    %2295 = vmatprep.subr.bf16.mxu0 0
    %2296 = vmatpush1.bf16.msra.mxu0 %v2280
    %2297 = vmatprep.subr.bf16.mxu0 0
    %2298 = vmatpush1.bf16.msra.mxu0 %v2279
    %2299 = vmatprep.subr.bf16.mxu0 0
    %2300 = vmatpush1.bf16.msra.mxu0 %v2278
    %2301 = vmatprep.subr.bf16.mxu0 0
    %2302 = vmatpush1.bf16.msra.mxu0 %v2277
    %2303 = vmatprep.subr.bf16.mxu0 0
    %2304 = vmatpush1.bf16.msra.mxu0 %v2276
    %2305 = vmatprep.subr.bf16.mxu0 0
    %2306 = vmatpush1.bf16.msra.mxu0 %v2275
    %2307 = vmatprep.subr.bf16.mxu0 0
    %2308 = vmatpush2.bf16.msra.mxu0 0
    %2309 = vmatprep.subr.bf16.mxu0 0
    %2310 = vmatpush2.bf16.msra.mxu0 0
    %2311 = vmatprep.subr.bf16.mxu0 0
    %2312 = vmatpush2.bf16.msra.mxu0 0
    %2313 = vmatprep.subr.bf16.mxu0 0
    %2314 = vmatpush2.bf16.msra.mxu0 0
    %2315 = vmatprep.subr.bf16.mxu0 0
    %2316 = vmatpush2.bf16.msra.mxu0 0
    %2317 = vmatprep.subr.bf16.mxu0 0
    %2318 = vmatpush2.bf16.msra.mxu0 0
    %2319 = vmatprep.subr.bf16.mxu0 0
    %2320 = vmatpush2.bf16.msra.mxu0 0
    %2321 = vmatprep.subr.bf16.mxu0 0
    %2322 = vmatpush2.bf16.msra.mxu0 0
    %2323 = vmatprep.mubr.bf16.mxu0 0
    %2324 = vmatmul.mubr.bf16.gmra.mxu0 %v2236
    %v2325 = vpop.f32.mrf.mxu0
    %v2326 = vadd.f32 %v2241, %v2325
    %v2327 = vpop.f32.mrf.mxu0
    %v2328 = vpop.f32.mrf.mxu0
    %v2329 = vadd.f32 %v2241, %v2328
    %v2330 = vpop.f32.mrf.mxu0
    %2331 = vdwg.mxu0
    %v2332 = vadd.f32 %v2169, %v2326
    %v2333 = vadd.f32 %v2170, %v2329
    %v2334 = vsel %vm982, %v2332, 0.0
    %2335 = vadd.xlane.f32.xlu0 %v2334
    %v2336 = vpop.xlane.xlu0 %2335
    %v2337 = vsel %vm982, %v2333, 0.0
    %2338 = vadd.xlane.f32.xlu0 %v2337
    %v2339 = vpop.xlane.xlu0 %2338
    %v2340 = vmul.f32 %v2336, %v989
    %v2341 = vmul.f32 %v2339, %v989
    %v2342 = vsub.f32 %v2332, %v2340
    %v2343 = vsub.f32 %v2333, %v2341
    %v2344 = vmul.f32 %v2342, %v2342
    %v2345 = vmul.f32 %v2343, %v2343
    %v2346 = vsel %vm982, %v2344, 0.0
    %2347 = vadd.xlane.f32.xlu0 %v2346
    %v2348 = vpop.xlane.xlu0 %2347
    %v2349 = vsel %vm982, %v2345, 0.0
    %2350 = vadd.xlane.f32.xlu0 %v2349
    %v2351 = vpop.xlane.xlu0 %2350
    %v2352 = vmul.f32 %v2348, %v989
    %v2353 = vmul.f32 %v2351, %v989
    %v2354 = vadd.f32 %v2352, 1e-05
    %v2355 = vadd.f32 %v2353, 1e-05
    %v2356 = vrsqrt.pop %v2354
    %v2357 = vrsqrt.pop %v2355
    %v2358 = vmul.f32 %v2342, %v2356
    %v2359 = vmul.f32 %v2343, %v2357
    %v2361 = vlaneseq
    %v2362 = vshrl.u32 %v2361, 7
    %v2363 = vsub.s32 0, %v2362
    %v2364 = vrot.slane %v1260, %v2363
    %v2366 = vmul.f32 %v2358, %v2364
    %v2367 = vmul.f32 %v2359, %v2364
    %v2369 = vlaneseq
    %v2370 = vshrl.u32 %v2369, 7
    %v2371 = vsub.s32 0, %v2370
    %v2372 = vrot.slane %v1261, %v2371
    %v2374 = vadd.f32 %v2366, %v2372
    %v2375 = vadd.f32 %v2367, %v2372
    %v2376 = vpack.c.bf16 %v2375, %v2374
    %v2377 = vld [vmem:[%s22] sm:$0xf]
    %v2378 = vld [vmem:[%s22 + $0x4] sm:$0xf]
    %v2379 = vld [vmem:[%s22 + $0x8] sm:$0xf]
    %v2380 = vld [vmem:[%s22 + $0xc] sm:$0xf]
    %v2381 = vld [vmem:[%s23] sm:$0x1]
    %v2383 = vlaneseq
    %v2384 = vshrl.u32 %v2383, 7
    %v2385 = vsub.s32 0, %v2384
    %v2386 = vrot.slane %v2381, %v2385
    %v2392 = vunpack.c.l.b16 %v2377
    %v2393 = vunpack.c.l.b16 %v2378
    %v2394 = vunpack.c.l.b16 %v2379
    %v2395 = vunpack.c.l.b16 %v2380
    %v2396 = vpack.c.b16 %v2393, %v2392
    %v2397 = vpack.c.b16 %v2395, %v2394
    %v2401 = vsel %vm982, %v2376, 0
    %2403 = vmatprep.subr.bf16.mxu0 0
    %2404 = vmatpush1.bf16.msra.mxu0 0
    %2405 = vmatprep.subr.bf16.mxu0 0
    %2406 = vmatpush1.bf16.msra.mxu0 0
    %2407 = vmatprep.subr.bf16.mxu0 0
    %2408 = vmatpush1.bf16.msra.mxu0 0
    %2409 = vmatprep.subr.bf16.mxu0 0
    %2410 = vmatpush1.bf16.msra.mxu0 0
    %2411 = vmatprep.subr.bf16.mxu0 0
    %2412 = vmatpush1.bf16.msra.mxu0 0
    %2413 = vmatprep.subr.bf16.mxu0 0
    %2414 = vmatpush1.bf16.msra.mxu0 0
    %2415 = vmatprep.subr.bf16.mxu0 0
    %2416 = vmatpush1.bf16.msra.mxu0 %v2397
    %2417 = vmatprep.subr.bf16.mxu0 0
    %2418 = vmatpush1.bf16.msra.mxu0 %v2396
    %2419 = vmatprep.subr.bf16.mxu0 0
    %2420 = vmatpush2.bf16.msra.mxu0 0
    %2421 = vmatprep.subr.bf16.mxu0 0
    %2422 = vmatpush2.bf16.msra.mxu0 0
    %2423 = vmatprep.subr.bf16.mxu0 0
    %2424 = vmatpush2.bf16.msra.mxu0 0
    %2425 = vmatprep.subr.bf16.mxu0 0
    %2426 = vmatpush2.bf16.msra.mxu0 0
    %2427 = vmatprep.subr.bf16.mxu0 0
    %2428 = vmatpush2.bf16.msra.mxu0 0
    %2429 = vmatprep.subr.bf16.mxu0 0
    %2430 = vmatpush2.bf16.msra.mxu0 0
    %2431 = vmatprep.subr.bf16.mxu0 0
    %2432 = vmatpush2.bf16.msra.mxu0 0
    %2433 = vmatprep.subr.bf16.mxu0 0
    %2434 = vmatpush2.bf16.msra.mxu0 0
    %2435 = vmatprep.mubr.bf16.mxu0 0
    %2436 = vmatmul.mubr.bf16.gmra.mxu0 %v2401
    %v2437 = vpop.f32.mrf.mxu0
    %v2438 = vadd.f32 %v2386, %v2437
    %v2439 = vpop.f32.mrf.mxu0
    %v2440 = vpop.f32.mrf.mxu0
    %v2441 = vadd.f32 %v2386, %v2440
    %v2442 = vpop.f32.mrf.mxu0
    %2443 = vdwg.mxu0
    %2444 = vst [vmem:[#allocation2] sm:$0xff] %v2438
    %2445 = vst [vmem:[#allocation2 + $0x8] sm:$0xff] %v2441
    // Predicated region
    $region98: #{tpu_custom_call.1} parent=1 // pred_check
      _
    $region99: #{tpu_custom_call.1} parent=1 // pred_check_branch
      %2447 = sbr.rel (0) target = $region101
    $region100: #{tpu_custom_call.1} parent=1 // pred_region
      %s2449 = ssub.s32 256, 256
      %2450 = vsyncadd [#allocation3], %s2449
      %s2451 = sshll.u32 [#allocation2], 4
      %s2452 = int_to_ptr.vmem [resolvable:$true] %s2451
      %2457 = dma.vmem_to_hbm [thread:$0]  %s2452, 256, %s24, [#allocation3], 128, 128, 8
    $region101: #{tpu_custom_call.1} parent=1 // pred_fallthru
      _
    // Predicated region
    $region102: #{tpu_custom_call.1} parent=1 // pred_check
      _
    $region103: #{tpu_custom_call.1} parent=1 // pred_check_branch
      %2459 = sbr.rel (0) target = $region105
    $region104: #{tpu_custom_call.1} parent=1 // pred_region
      %2460 = dma.done [#allocation3], 256
    $region105: #{tpu_custom_call.1} parent=1 // pred_fallthru
      _
    %2461 = vsyncpa [#allocation3], 1

</llo_original>
